<compile_context>
chip_gen: v7x
topology: tpu7x:2x2x1
jax: 0.10.0
libtpu: 0.0.40
codegen_flags: <defaults>
</compile_context>

<pallas_src>
import functools

import jax
import jax.numpy as jnp
from jax import lax
from jax.experimental import pallas as pl
from jax.experimental.pallas import tpu as pltpu


def _round_up(x, m):
    return (x + m - 1) // m * m


def _stable_softmax(s):
    m = jnp.max(s, axis=-1, keepdims=True)
    e = jnp.exp(s - m)
    return e / jnp.sum(e, axis=-1, keepdims=True)


def _layer_norm(x, gamma, beta, lane_mask, d, eps=1e-6):
    # x: [S, Dp] f32 with zero pad lanes; gamma/beta: [1, Dp] (zero in pads).
    mean = jnp.sum(x, axis=-1, keepdims=True) * (1.0 / d)
    cen = (x - mean) * lane_mask
    var = jnp.sum(cen * cen, axis=-1, keepdims=True) * (1.0 / d)
    inv = lax.rsqrt(var + eps)
    return cen * inv * gamma + beta


def _decoder_layer_kernel(
        dec_area_ref, dec_shot_ref, enc_ref, slf_mask_ref, enc_mask_ref,
        w_area_qkv_ref, w_shot_qkv_ref, w_fc1_ref,
        w_dec_q_ref, w_enc_kv_ref, w_fc2_ref,
        w_ffn1_ref, b_ffn1_ref, w_ffn2_ref, b_ffn2_ref,
        ln_g_ref, ln_b_ref, dmask_ref,
        out_ref, slf_attn_ref, enc_attn_ref,
        *, n_head, d_model, dk_p, dv_p, inv_temp):
    f32 = jnp.float32
    xa = dec_area_ref[...]          # [Sq, Dp]
    xs = dec_shot_ref[...]          # [Sq, Dp]
    enc = enc_ref[...]              # [Sk, Dp]
    slf_mask = slf_mask_ref[...]    # [Sq, Sq]  (1 keep / 0 drop)
    enc_mask = enc_mask_ref[...]    # [Sq, Sk]
    dmask = dmask_ref[...]          # [1, Dp]
    ln_g = ln_g_ref[...]            # [3, Dp]
    ln_b = ln_b_ref[...]            # [3, Dp]

    qw = n_head * dk_p
    vw = n_head * dv_p
    sq = xa.shape[0]
    dp = xa.shape[1]

    # ---- TypeAreaMultiHeadAttention (disentangled self-attention) ----
    # sum of 4 cross score matmuls == (q_a+q_s)(k_a+k_s)^T ; value = v_a+v_s.
    proj = (jnp.dot(xa, w_area_qkv_ref[...], preferred_element_type=f32)
            + jnp.dot(xs, w_shot_qkv_ref[...], preferred_element_type=f32))
    q1 = proj[:, :qw]
    k1 = proj[:, qw:2 * qw]
    v1 = proj[:, 2 * qw:2 * qw + vw]

    fc1_in = jnp.zeros((sq, dp), f32)
    for h in range(n_head):
        q_h = q1[:, h * dk_p:(h + 1) * dk_p]
        k_h = k1[:, h * dk_p:(h + 1) * dk_p]
        v_h = v1[:, h * dv_p:(h + 1) * dv_p]
        s = lax.dot_general(q_h, k_h, (((1,), (1,)), ((), ())),
                            preferred_element_type=f32) * inv_temp
        s = jnp.where(slf_mask > 0.0, s, -1e9)
        p = _stable_softmax(s)
        slf_attn_ref[h] = p.astype(slf_attn_ref.dtype)
        o_h = jnp.dot(p, v_h, preferred_element_type=f32)
        fc1_in = fc1_in + jnp.dot(o_h, w_fc1_ref[h], preferred_element_type=f32)

    dec1 = _layer_norm(fc1_in + xa + xs, ln_g[0:1, :], ln_b[0:1, :],
                       dmask, d_model)

    # ---- MultiHeadAttention (decoder-encoder attention) ----
    q2 = jnp.dot(dec1, w_dec_q_ref[...], preferred_element_type=f32)
    kv2 = jnp.dot(enc, w_enc_kv_ref[...], preferred_element_type=f32)
    k2 = kv2[:, :qw]
    v2 = kv2[:, qw:qw + vw]

    fc2_in = jnp.zeros((sq, dp), f32)
    for h in range(n_head):
        q_h = q2[:, h * dk_p:(h + 1) * dk_p]
        k_h = k2[:, h * dk_p:(h + 1) * dk_p]
        v_h = v2[:, h * dv_p:(h + 1) * dv_p]
        s = lax.dot_general(q_h, k_h, (((1,), (1,)), ((), ())),
                            preferred_element_type=f32) * inv_temp
        s = jnp.where(enc_mask > 0.0, s, -1e9)
        p = _stable_softmax(s)
        enc_attn_ref[h] = p.astype(enc_attn_ref.dtype)
        o_h = jnp.dot(p, v_h, preferred_element_type=f32)
        fc2_in = fc2_in + jnp.dot(o_h, w_fc2_ref[h], preferred_element_type=f32)

    dec2 = _layer_norm(fc2_in + dec1, ln_g[1:2, :], ln_b[1:2, :],
                       dmask, d_model)

    # ---- PositionwiseFeedForward ----
    hdn = jnp.maximum(
        jnp.dot(dec2, w_ffn1_ref[...], preferred_element_type=f32)
        + b_ffn1_ref[...], 0.0)
    ffn = (jnp.dot(hdn, w_ffn2_ref[...], preferred_element_type=f32)
           + b_ffn2_ref[...])
    out = _layer_norm(ffn + dec2, ln_g[2:3, :], ln_b[2:3, :], dmask, d_model)
    out_ref[...] = out.astype(out_ref.dtype)


@functools.partial(jax.jit, static_argnames=("n_head", "d_k", "d_v"))
def decoder_layer_forward(decode_area, decode_shot, encode_output, params,
                          slf_attn_mask=None, dec_enc_attn_mask=None,
                          *, n_head, d_k, d_v):
    """Pallas implementation of DecoderLayer.forward (eval mode).

    Returns (decode_output, dec_slf_attn, dec_enc_attn, disentangled_weight)
    with disentangled_weight == None (return_attns=None path).
    """
    B, Sq, D = decode_area.shape
    Sk = encode_output.shape[1]
    F = params["ffn_w1"].shape[0]

    LANE, SUB = 128, 8
    Dp = _round_up(D, LANE)
    Fp = _round_up(F, LANE)
    dk_p = _round_up(d_k, LANE)
    dv_p = _round_up(d_v, LANE)
    Sqp = _round_up(Sq, SUB)
    Skp = _round_up(Sk, SUB)
    qw = n_head * dk_p
    vw = n_head * dv_p

    f32 = jnp.float32

    def pad3(x, Sp):
        return jnp.pad(x.astype(f32),
                       ((0, 0), (0, Sp - x.shape[1]), (0, Dp - x.shape[2])))

    dec_area_p = pad3(decode_area, Sqp)
    dec_shot_p = pad3(decode_shot, Sqp)
    enc_p = pad3(encode_output, Skp)

    def head_pad(w, dh, dh_p):
        # nn.Linear weight [H*dh, D] -> [Dp, H*dh_p] (x @ result == Linear(x)),
        # head h occupies output columns [h*dh_p, h*dh_p + dh).
        wt = w.T.astype(f32).reshape(D, n_head, dh)
        wt = jnp.pad(wt, ((0, Dp - D), (0, 0), (0, dh_p - dh)))
        return wt.reshape(Dp, n_head * dh_p)

    def fc_pad(w):
        # fc weight [D, H*dv] -> per-head slabs [H, dv_p, Dp] of fc.T.
        wt = w.T.astype(f32).reshape(n_head, d_v, D)
        return jnp.pad(wt, ((0, 0), (0, dv_p - d_v), (0, Dp - D)))

    def lin_pad(w, in_p, out_p):
        wt = w.T.astype(f32)
        return jnp.pad(wt, ((0, in_p - wt.shape[0]), (0, out_p - wt.shape[1])))

    w_area_qkv = jnp.concatenate(
        [head_pad(params["w_qs_area"], d_k, dk_p),
         head_pad(params["w_ks_area"], d_k, dk_p),
         head_pad(params["w_vs_area"], d_v, dv_p)], axis=1)
    w_shot_qkv = jnp.concatenate(
        [head_pad(params["w_qs_shot"], d_k, dk_p),
         head_pad(params["w_ks_shot"], d_k, dk_p),
         head_pad(params["w_vs_shot"], d_v, dv_p)], axis=1)
    w_fc1 = fc_pad(params["fc1"])

    w_dec_q = head_pad(params["w_qs2"], d_k, dk_p)
    w_enc_kv = jnp.concatenate(
        [head_pad(params["w_ks2"], d_k, dk_p),
         head_pad(params["w_vs2"], d_v, dv_p)], axis=1)
    w_fc2 = fc_pad(params["fc2"])

    w_ffn1 = lin_pad(params["ffn_w1"], Dp, Fp)
    b_ffn1 = jnp.pad(params["ffn_b1"].astype(f32), (0, Fp - F))[None, :]
    w_ffn2 = lin_pad(params["ffn_w2"], Fp, Dp)
    b_ffn2 = jnp.pad(params["ffn_b2"].astype(f32), (0, Dp - D))[None, :]

    ln_g = jnp.stack([jnp.pad(params[k].astype(f32), (0, Dp - D))
                      for k in ("ln1_g", "ln2_g", "ln3_g")])
    ln_b = jnp.stack([jnp.pad(params[k].astype(f32), (0, Dp - D))
                      for k in ("ln1_b", "ln2_b", "ln3_b")])
    dmask = (jnp.arange(Dp) < D).astype(f32)[None, :]

    def build_mask(m, sk, skp):
        if m is None:
            m = jnp.ones((B, Sq, sk), f32)
        else:
            m = m.astype(f32)
            if m.ndim == 2:
                m = jnp.broadcast_to(m[None], (B, Sq, sk))
        return jnp.pad(m, ((0, 0), (0, Sqp - Sq), (0, skp - sk)))

    slf_mask = build_mask(slf_attn_mask, Sq, Sqp)
    enc_mask = build_mask(dec_enc_attn_mask, Sk, Skp)

    kernel = functools.partial(
        _decoder_layer_kernel, n_head=n_head, d_model=D,
        dk_p=dk_p, dv_p=dv_p, inv_temp=1.0 / (d_k ** 0.5))

    in_specs = [
        pl.BlockSpec((None, Sqp, Dp), lambda b: (b, 0, 0)),     # decode_area
        pl.BlockSpec((None, Sqp, Dp), lambda b: (b, 0, 0)),     # decode_shot
        pl.BlockSpec((None, Skp, Dp), lambda b: (b, 0, 0)),     # encode_output
        pl.BlockSpec((None, Sqp, Sqp), lambda b: (b, 0, 0)),    # slf mask
        pl.BlockSpec((None, Sqp, Skp), lambda b: (b, 0, 0)),    # enc mask
        pl.BlockSpec((Dp, 2 * qw + vw), lambda b: (0, 0)),      # w_area_qkv
        pl.BlockSpec((Dp, 2 * qw + vw), lambda b: (0, 0)),      # w_shot_qkv
        pl.BlockSpec((n_head, dv_p, Dp), lambda b: (0, 0, 0)),  # w_fc1
        pl.BlockSpec((Dp, qw), lambda b: (0, 0)),               # w_dec_q
        pl.BlockSpec((Dp, qw + vw), lambda b: (0, 0)),          # w_enc_kv
        pl.BlockSpec((n_head, dv_p, Dp), lambda b: (0, 0, 0)),  # w_fc2
        pl.BlockSpec((Dp, Fp), lambda b: (0, 0)),               # w_ffn1
        pl.BlockSpec((1, Fp), lambda b: (0, 0)),                # b_ffn1
        pl.BlockSpec((Fp, Dp), lambda b: (0, 0)),               # w_ffn2
        pl.BlockSpec((1, Dp), lambda b: (0, 0)),                # b_ffn2
        pl.BlockSpec((3, Dp), lambda b: (0, 0)),                # ln gammas
        pl.BlockSpec((3, Dp), lambda b: (0, 0)),                # ln betas
        pl.BlockSpec((1, Dp), lambda b: (0, 0)),                # lane mask
    ]
    out_shapes = (
        jax.ShapeDtypeStruct((B, Sqp, Dp), f32),
        jax.ShapeDtypeStruct((B, n_head, Sqp, Sqp), f32),
        jax.ShapeDtypeStruct((B, n_head, Sqp, Skp), f32),
    )
    out_specs = (
        pl.BlockSpec((None, Sqp, Dp), lambda b: (b, 0, 0)),
        pl.BlockSpec((None, n_head, Sqp, Sqp), lambda b: (b, 0, 0, 0)),
        pl.BlockSpec((None, n_head, Sqp, Skp), lambda b: (b, 0, 0, 0)),
    )

    out, slf_attn, enc_attn = pl.pallas_call(
        kernel,
        out_shape=out_shapes,
        grid=(B,),
        in_specs=in_specs,
        out_specs=out_specs,
        compiler_params=pltpu.CompilerParams(
            dimension_semantics=("parallel",)),
    )(dec_area_p, dec_shot_p, enc_p, slf_mask, enc_mask,
      w_area_qkv, w_shot_qkv, w_fc1, w_dec_q, w_enc_kv, w_fc2,
      w_ffn1, b_ffn1, w_ffn2, b_ffn2, ln_g, ln_b, dmask)

    # TODO(synk): dropout layers are eval-mode identities; the
    # return_attns=True disentangled-weight branch is not materialized
    # (DecoderLayer is called with return_attns=None here), so it returns None.
    return (out[:, :Sq, :D].astype(decode_area.dtype),
            slf_attn[:, :, :Sq, :Sq],
            enc_attn[:, :, :Sq, :Sk],
            None)


def reference_forward(decode_area, decode_shot, encode_output, params,
                      slf_attn_mask=None, dec_enc_attn_mask=None,
                      *, n_head, d_k, d_v):
    """Pure-JAX (f32) replica of the PyTorch DecoderLayer forward (eval)."""
    B, Sq, D = decode_area.shape
    eps = 1e-6

    def layer_norm(x, g, b):
        mu = x.mean(-1, keepdims=True)
        var = ((x - mu) ** 2).mean(-1, keepdims=True)
        return (x - mu) / jnp.sqrt(var + eps) * g + b

    def split_heads(x, dh):
        return x.reshape(B, -1, n_head, dh).transpose(0, 2, 1, 3)

    temp = d_k ** 0.5

    # --- TypeAreaMultiHeadAttention (disentangled self-attention) ---
    residual = decode_area + decode_shot
    q_a = split_heads(decode_area @ params["w_qs_area"].T, d_k)
    k_a = split_heads(decode_area @ params["w_ks_area"].T, d_k)
    v_a = split_heads(decode_area @ params["w_vs_area"].T, d_v)
    q_s = split_heads(decode_shot @ params["w_qs_shot"].T, d_k)
    k_s = split_heads(decode_shot @ params["w_ks_shot"].T, d_k)
    v_s = split_heads(decode_shot @ params["w_vs_shot"].T, d_v)

    score = (jnp.einsum("bhqd,bhkd->bhqk", q_a, k_a)
             + jnp.einsum("bhqd,bhkd->bhqk", q_s, k_s)
             + jnp.einsum("bhqd,bhkd->bhqk", q_a, k_s)
             + jnp.einsum("bhqd,bhkd->bhqk", q_s, k_a)) / temp
    if slf_attn_mask is not None:
        m = slf_attn_mask if slf_attn_mask.ndim == 3 else slf_attn_mask[None]
        score = jnp.where(m[:, None] == 0, -1e9, score)
    slf_attn = jax.nn.softmax(score, axis=-1)
    o = jnp.einsum("bhqk,bhkd->bhqd", slf_attn, v_a + v_s)
    o = o.transpose(0, 2, 1, 3).reshape(B, Sq, n_head * d_v)
    dec1 = layer_norm(o @ params["fc1"].T + residual,
                      params["ln1_g"], params["ln1_b"])

    # --- MultiHeadAttention (decoder-encoder attention) ---
    q = split_heads(dec1 @ params["w_qs2"].T, d_k)
    k = split_heads(encode_output @ params["w_ks2"].T, d_k)
    v = split_heads(encode_output @ params["w_vs2"].T, d_v)
    score = jnp.einsum("bhqd,bhkd->bhqk", q / temp, k)
    if dec_enc_attn_mask is not None:
        m = (dec_enc_attn_mask if dec_enc_attn_mask.ndim == 3
             else dec_enc_attn_mask[None])
        score = jnp.where(m[:, None] == 0, -1e9, score)
    enc_attn = jax.nn.softmax(score, axis=-1)
    o = jnp.einsum("bhqk,bhkd->bhqd", enc_attn, v)
    o = o.transpose(0, 2, 1, 3).reshape(B, Sq, n_head * d_v)
    dec2 = layer_norm(o @ params["fc2"].T + dec1,
                      params["ln2_g"], params["ln2_b"])

    # --- PositionwiseFeedForward ---
    x = jax.nn.relu(dec2 @ params["ffn_w1"].T + params["ffn_b1"])
    x = x @ params["ffn_w2"].T + params["ffn_b2"]
    out = layer_norm(x + dec2, params["ln3_g"], params["ln3_b"])
    return out, slf_attn, enc_attn, None


def init_params(key, d_model, d_inner, n_head, d_k, d_v):
    ks = jax.random.split(key, 16)
    s = 0.1
    w = lambda k, shape: s * jax.random.normal(k, shape, jnp.float32)
    return {
        "w_qs_area": w(ks[0], (n_head * d_k, d_model)),
        "w_ks_area": w(ks[1], (n_head * d_k, d_model)),
        "w_vs_area": w(ks[2], (n_head * d_v, d_model)),
        "w_qs_shot": w(ks[3], (n_head * d_k, d_model)),
        "w_ks_shot": w(ks[4], (n_head * d_k, d_model)),
        "w_vs_shot": w(ks[5], (n_head * d_v, d_model)),
        "fc1": w(ks[6], (d_model, n_head * d_v)),
        "ln1_g": 1.0 + 0.1 * jax.random.normal(ks[7], (d_model,), jnp.float32),
        "ln1_b": 0.1 * jax.random.normal(ks[8], (d_model,), jnp.float32),
        "w_qs2": w(ks[9], (n_head * d_k, d_model)),
        "w_ks2": w(ks[10], (n_head * d_k, d_model)),
        "w_vs2": w(ks[11], (n_head * d_v, d_model)),
        "fc2": w(ks[12], (d_model, n_head * d_v)),
        "ln2_g": jnp.ones((d_model,), jnp.float32),
        "ln2_b": jnp.zeros((d_model,), jnp.float32),
        "ffn_w1": w(ks[13], (d_inner, d_model)),
        "ffn_b1": 0.1 * jax.random.normal(ks[14], (d_inner,), jnp.float32),
        "ffn_w2": w(ks[15], (d_model, d_inner)),
        "ffn_b2": jnp.zeros((d_model,), jnp.float32),
        "ln3_g": jnp.ones((d_model,), jnp.float32),
        "ln3_b": jnp.zeros((d_model,), jnp.float32),
    }


if __name__ == "__main__":
    # small shapes: batch=2, decode seq=8, encode seq=16, d_model=32,
    # d_inner=64, n_head=2, d_k=d_v=16
    B, Sq, Sk = 2, 8, 16
    d_model, d_inner, n_head, d_k, d_v = 32, 64, 2, 16, 16

    key = jax.random.PRNGKey(0)
    kp, ka, ksh, ke = jax.random.split(key, 4)
    params = init_params(kp, d_model, d_inner, n_head, d_k, d_v)

    decode_area = jax.random.normal(ka, (B, Sq, d_model), jnp.float32)
    decode_shot = jax.random.normal(ksh, (B, Sq, d_model), jnp.float32)
    encode_output = jax.random.normal(ke, (B, Sk, d_model), jnp.float32)

    # causal self-attention mask (1 = attend, 0 = masked)
    slf_mask = jnp.broadcast_to(
        jnp.tril(jnp.ones((Sq, Sq), jnp.float32))[None], (B, Sq, Sq))

    out, slf_attn, enc_attn, disent = decoder_layer_forward(
        decode_area, decode_shot, encode_output, params,
        slf_attn_mask=slf_mask, dec_enc_attn_mask=None,
        n_head=n_head, d_k=d_k, d_v=d_v)
    out = jax.block_until_ready(out)

    ref_out, ref_slf, ref_enc, _ = reference_forward(
        decode_area, decode_shot, encode_output, params,
        slf_attn_mask=slf_mask, dec_enc_attn_mask=None,
        n_head=n_head, d_k=d_k, d_v=d_v)

    assert out.shape == (B, Sq, d_model)
    assert slf_attn.shape == (B, n_head, Sq, Sq)
    assert enc_attn.shape == (B, n_head, Sq, Sk)
    assert disent is None
    err = max(float(jnp.max(jnp.abs(out - ref_out))),
              float(jnp.max(jnp.abs(slf_attn - ref_slf))),
              float(jnp.max(jnp.abs(enc_attn - ref_enc))))
    # f32 kernel vs f32 reference; loose bound only to absorb MXU-pass vs XLA
    # default-precision matmul differences (semantic bugs would be >> 1e-1).
    assert err < 2e-2, f"mismatch vs reference: max abs err {err}"

    print("KERNEL_OK")
</pallas_src>

<mosaic_0001>
module attributes {stable_mosaic.version = 11 : i64} {
  func.func @_decoder_layer_kernel(%arg0: i32, %arg1: memref<1x8x128xf32, #tpu.memory_space<vmem>>, %arg2: memref<1x8x128xf32, #tpu.memory_space<vmem>>, %arg3: memref<1x16x128xf32, #tpu.memory_space<vmem>>, %arg4: memref<1x8x8xf32, #tpu.memory_space<vmem>>, %arg5: memref<1x8x16xf32, #tpu.memory_space<vmem>>, %arg6: memref<128x768xf32, #tpu.memory_space<vmem>>, %arg7: memref<128x768xf32, #tpu.memory_space<vmem>>, %arg8: memref<2x128x128xf32, #tpu.memory_space<vmem>>, %arg9: memref<128x256xf32, #tpu.memory_space<vmem>>, %arg10: memref<128x512xf32, #tpu.memory_space<vmem>>, %arg11: memref<2x128x128xf32, #tpu.memory_space<vmem>>, %arg12: memref<128x128xf32, #tpu.memory_space<vmem>>, %arg13: memref<1x128xf32, #tpu.memory_space<vmem>>, %arg14: memref<128x128xf32, #tpu.memory_space<vmem>>, %arg15: memref<1x128xf32, #tpu.memory_space<vmem>>, %arg16: memref<3x128xf32, #tpu.memory_space<vmem>>, %arg17: memref<3x128xf32, #tpu.memory_space<vmem>>, %arg18: memref<1x128xf32, #tpu.memory_space<vmem>>, %arg19: memref<1x8x128xf32, #tpu.memory_space<vmem>>, %arg20: memref<1x2x8x8xf32, #tpu.memory_space<vmem>>, %arg21: memref<1x2x8x16xf32, #tpu.memory_space<vmem>>) attributes {dimension_semantics = [#tpu.dimension_semantics<parallel>], iteration_bounds = array<i64: 2>, scalar_prefetch = 0 : i64, scratch_operands = 0 : i64, tpu.core_type = #tpu.core_type<tc>, window_params = [{transform_indices = @transform_0, window_bounds = array<i64: 1, 8, 128>}, {transform_indices = @transform_1, window_bounds = array<i64: 1, 8, 128>}, {transform_indices = @transform_2, window_bounds = array<i64: 1, 16, 128>}, {transform_indices = @transform_3, window_bounds = array<i64: 1, 8, 8>}, {transform_indices = @transform_4, window_bounds = array<i64: 1, 8, 16>}, {pipeline_mode = #tpu.pipeline_mode<synchronous>, transform_indices = @transform_5, window_bounds = array<i64: 128, 768>}, {pipeline_mode = #tpu.pipeline_mode<synchronous>, transform_indices = @transform_6, window_bounds = array<i64: 128, 768>}, {pipeline_mode = #tpu.pipeline_mode<synchronous>, transform_indices = @transform_7, window_bounds = array<i64: 2, 128, 128>}, {pipeline_mode = #tpu.pipeline_mode<synchronous>, transform_indices = @transform_8, window_bounds = array<i64: 128, 256>}, {pipeline_mode = #tpu.pipeline_mode<synchronous>, transform_indices = @transform_9, window_bounds = array<i64: 128, 512>}, {pipeline_mode = #tpu.pipeline_mode<synchronous>, transform_indices = @transform_10, window_bounds = array<i64: 2, 128, 128>}, {pipeline_mode = #tpu.pipeline_mode<synchronous>, transform_indices = @transform_11, window_bounds = array<i64: 128, 128>}, {pipeline_mode = #tpu.pipeline_mode<synchronous>, transform_indices = @transform_12, window_bounds = array<i64: 1, 128>}, {pipeline_mode = #tpu.pipeline_mode<synchronous>, transform_indices = @transform_13, window_bounds = array<i64: 128, 128>}, {pipeline_mode = #tpu.pipeline_mode<synchronous>, transform_indices = @transform_14, window_bounds = array<i64: 1, 128>}, {pipeline_mode = #tpu.pipeline_mode<synchronous>, transform_indices = @transform_15, window_bounds = array<i64: 3, 128>}, {pipeline_mode = #tpu.pipeline_mode<synchronous>, transform_indices = @transform_16, window_bounds = array<i64: 3, 128>}, {pipeline_mode = #tpu.pipeline_mode<synchronous>, transform_indices = @transform_17, window_bounds = array<i64: 1, 128>}, {transform_indices = @transform_18, window_bounds = array<i64: 1, 8, 128>}, {transform_indices = @transform_19, window_bounds = array<i64: 1, 2, 8, 8>}, {transform_indices = @transform_20, window_bounds = array<i64: 1, 2, 8, 16>}]} {
    %c0 = arith.constant 0 : index
    %c0_0 = arith.constant 0 : index
    %c0_1 = arith.constant 0 : index
    %0 = vector.load %arg1[%c0, %c0_0, %c0_1] : memref<1x8x128xf32, #tpu.memory_space<vmem>>, vector<1x8x128xf32>
    %1 = vector.shape_cast %0 : vector<1x8x128xf32> to vector<8x128xf32>
    %c0_2 = arith.constant 0 : index
    %c0_3 = arith.constant 0 : index
    %c0_4 = arith.constant 0 : index
    %2 = vector.load %arg2[%c0_2, %c0_3, %c0_4] : memref<1x8x128xf32, #tpu.memory_space<vmem>>, vector<1x8x128xf32>
    %3 = vector.shape_cast %2 : vector<1x8x128xf32> to vector<8x128xf32>
    %c0_5 = arith.constant 0 : index
    %c0_6 = arith.constant 0 : index
    %c0_7 = arith.constant 0 : index
    %4 = vector.load %arg3[%c0_5, %c0_6, %c0_7] : memref<1x16x128xf32, #tpu.memory_space<vmem>>, vector<1x16x128xf32>
    %5 = vector.shape_cast %4 : vector<1x16x128xf32> to vector<16x128xf32>
    %c0_8 = arith.constant 0 : index
    %c0_9 = arith.constant 0 : index
    %c0_10 = arith.constant 0 : index
    %6 = vector.load %arg4[%c0_8, %c0_9, %c0_10] : memref<1x8x8xf32, #tpu.memory_space<vmem>>, vector<1x8x8xf32>
    %7 = vector.shape_cast %6 : vector<1x8x8xf32> to vector<8x8xf32>
    %c0_11 = arith.constant 0 : index
    %c0_12 = arith.constant 0 : index
    %c0_13 = arith.constant 0 : index
    %8 = vector.load %arg5[%c0_11, %c0_12, %c0_13] : memref<1x8x16xf32, #tpu.memory_space<vmem>>, vector<1x8x16xf32>
    %9 = vector.shape_cast %8 : vector<1x8x16xf32> to vector<8x16xf32>
    %c0_14 = arith.constant 0 : index
    %c0_15 = arith.constant 0 : index
    %10 = vector.load %arg18[%c0_14, %c0_15] : memref<1x128xf32, #tpu.memory_space<vmem>>, vector<1x128xf32>
    %c0_16 = arith.constant 0 : index
    %c0_17 = arith.constant 0 : index
    %11 = vector.load %arg16[%c0_16, %c0_17] : memref<3x128xf32, #tpu.memory_space<vmem>>, vector<3x128xf32>
    %c0_18 = arith.constant 0 : index
    %c0_19 = arith.constant 0 : index
    %12 = vector.load %arg17[%c0_18, %c0_19] : memref<3x128xf32, #tpu.memory_space<vmem>>, vector<3x128xf32>
    %c0_20 = arith.constant 0 : index
    %c0_21 = arith.constant 0 : index
    %13 = vector.load %arg6[%c0_20, %c0_21] : memref<128x768xf32, #tpu.memory_space<vmem>>, vector<128x768xf32>
    %cst = arith.constant dense<0.000000e+00> : vector<8x768xf32>
    %14 = tpu.matmul %1, %13, %cst {dimension_numbers = #tpu.dot_dimension_numbers<[1], [0], [0], [1], [0, 0, 1, 1], [], []>} : vector<8x128xf32>, vector<128x768xf32>, vector<8x768xf32> -> vector<8x768xf32>
    %c0_22 = arith.constant 0 : index
    %c0_23 = arith.constant 0 : index
    %15 = vector.load %arg7[%c0_22, %c0_23] : memref<128x768xf32, #tpu.memory_space<vmem>>, vector<128x768xf32>
    %cst_24 = arith.constant dense<0.000000e+00> : vector<8x768xf32>
    %16 = tpu.matmul %3, %15, %cst_24 {dimension_numbers = #tpu.dot_dimension_numbers<[1], [0], [0], [1], [0, 0, 1, 1], [], []>} : vector<8x128xf32>, vector<128x768xf32>, vector<8x768xf32> -> vector<8x768xf32>
    %17 = arith.addf %14, %16 : vector<8x768xf32>
    %18 = vector.extract_strided_slice %17 {offsets = [0, 0], sizes = [8, 256], strides = [1, 1]} : vector<8x768xf32> to vector<8x256xf32>
    %19 = vector.extract_strided_slice %17 {offsets = [0, 256], sizes = [8, 256], strides = [1, 1]} : vector<8x768xf32> to vector<8x256xf32>
    %20 = vector.extract_strided_slice %17 {offsets = [0, 512], sizes = [8, 256], strides = [1, 1]} : vector<8x768xf32> to vector<8x256xf32>
    %cst_25 = arith.constant 0.000000e+00 : f32
    %21 = vector.broadcast %cst_25 : f32 to vector<8x128xf32>
    %22 = vector.extract_strided_slice %18 {offsets = [0, 0], sizes = [8, 128], strides = [1, 1]} : vector<8x256xf32> to vector<8x128xf32>
    %23 = vector.extract_strided_slice %19 {offsets = [0, 0], sizes = [8, 128], strides = [1, 1]} : vector<8x256xf32> to vector<8x128xf32>
    %24 = vector.extract_strided_slice %20 {offsets = [0, 0], sizes = [8, 128], strides = [1, 1]} : vector<8x256xf32> to vector<8x128xf32>
    %cst_26 = arith.constant dense<0.000000e+00> : vector<8x8xf32>
    %25 = tpu.matmul %22, %23, %cst_26 {dimension_numbers = #tpu.dot_dimension_numbers<[1], [1], [0], [0], [0, 0, 1, 0], [], []>} : vector<8x128xf32>, vector<8x128xf32>, vector<8x8xf32> -> vector<8x8xf32>
    %cst_27 = arith.constant 2.500000e-01 : f32
    %26 = vector.broadcast %cst_27 : f32 to vector<8x8xf32>
    %27 = arith.mulf %25, %26 : vector<8x8xf32>
    %cst_28 = arith.constant 0.000000e+00 : f32
    %28 = vector.broadcast %cst_28 : f32 to vector<8x8xf32>
    %29 = arith.cmpf ogt, %7, %28 : vector<8x8xf32>
    %cst_29 = arith.constant -1.000000e+09 : f32
    %30 = vector.broadcast %cst_29 : f32 to vector<8x8xf32>
    %31 = arith.select %29, %27, %30 : vector<8x8xi1>, vector<8x8xf32>
    %cst_30 = arith.constant dense<0xFF800000> : vector<8xf32>
    %32 = vector.multi_reduction <maximumf>, %31, %cst_30 [1] : vector<8x8xf32> to vector<8xf32>
    %33 = vector.shape_cast %32 : vector<8xf32> to vector<8x1xf32>
    %34 = vector.broadcast %33 : vector<8x1xf32> to vector<8x8xf32>
    %35 = arith.subf %31, %34 : vector<8x8xf32>
    %36 = math.exp %35 : vector<8x8xf32>
    %cst_31 = arith.constant dense<0.000000e+00> : vector<8xf32>
    %37 = vector.multi_reduction <add>, %36, %cst_31 [1] : vector<8x8xf32> to vector<8xf32>
    %38 = vector.shape_cast %37 : vector<8xf32> to vector<8x1xf32>
    %39 = vector.broadcast %38 : vector<8x1xf32> to vector<8x8xf32>
    %40 = arith.divf %36, %39 : vector<8x8xf32>
    %c0_32 = arith.constant 0 : index
    %c0_33 = arith.constant 0 : index
    %c0_34 = arith.constant 0 : index
    %c0_35 = arith.constant 0 : index
    %41 = vector.load %arg20[%c0_32, %c0_33, %c0_34, %c0_35] : memref<1x2x8x8xf32, #tpu.memory_space<vmem>>, vector<1x1x8x8xf32>
    %42 = vector.shape_cast %41 : vector<1x1x8x8xf32> to vector<8x8xf32>
    %43 = vector.shape_cast %40 : vector<8x8xf32> to vector<1x1x8x8xf32>
    tpu.vector_store %arg20[%c0_32, %c0_33, %c0_34, %c0_35], %43 {strides = array<i32>} : memref<1x2x8x8xf32, #tpu.memory_space<vmem>>, vector<1x1x8x8xf32>,
    %cst_36 = arith.constant dense<0.000000e+00> : vector<8x128xf32>
    %44 = tpu.matmul %40, %24, %cst_36 {dimension_numbers = #tpu.dot_dimension_numbers<[1], [0], [0], [1], [0, 0, 1, 1], [], []>} : vector<8x8xf32>, vector<8x128xf32>, vector<8x128xf32> -> vector<8x128xf32>
    %c0_37 = arith.constant 0 : index
    %c0_38 = arith.constant 0 : index
    %c0_39 = arith.constant 0 : index
    %45 = vector.load %arg8[%c0_37, %c0_38, %c0_39] : memref<2x128x128xf32, #tpu.memory_space<vmem>>, vector<1x128x128xf32>
    %46 = vector.shape_cast %45 : vector<1x128x128xf32> to vector<128x128xf32>
    %cst_40 = arith.constant dense<0.000000e+00> : vector<8x128xf32>
    %47 = tpu.matmul %44, %46, %cst_40 {dimension_numbers = #tpu.dot_dimension_numbers<[1], [0], [0], [1], [0, 0, 1, 1], [], []>} : vector<8x128xf32>, vector<128x128xf32>, vector<8x128xf32> -> vector<8x128xf32>
    %48 = arith.addf %21, %47 : vector<8x128xf32>
    %49 = vector.extract_strided_slice %18 {offsets = [0, 128], sizes = [8, 128], strides = [1, 1]} : vector<8x256xf32> to vector<8x128xf32>
    %50 = vector.extract_strided_slice %19 {offsets = [0, 128], sizes = [8, 128], strides = [1, 1]} : vector<8x256xf32> to vector<8x128xf32>
    %51 = vector.extract_strided_slice %20 {offsets = [0, 128], sizes = [8, 128], strides = [1, 1]} : vector<8x256xf32> to vector<8x128xf32>
    %cst_41 = arith.constant dense<0.000000e+00> : vector<8x8xf32>
    %52 = tpu.matmul %49, %50, %cst_41 {dimension_numbers = #tpu.dot_dimension_numbers<[1], [1], [0], [0], [0, 0, 1, 0], [], []>} : vector<8x128xf32>, vector<8x128xf32>, vector<8x8xf32> -> vector<8x8xf32>
    %cst_42 = arith.constant 2.500000e-01 : f32
    %53 = vector.broadcast %cst_42 : f32 to vector<8x8xf32>
    %54 = arith.mulf %52, %53 : vector<8x8xf32>
    %cst_43 = arith.constant 0.000000e+00 : f32
    %55 = vector.broadcast %cst_43 : f32 to vector<8x8xf32>
    %56 = arith.cmpf ogt, %7, %55 : vector<8x8xf32>
    %cst_44 = arith.constant -1.000000e+09 : f32
    %57 = vector.broadcast %cst_44 : f32 to vector<8x8xf32>
    %58 = arith.select %56, %54, %57 : vector<8x8xi1>, vector<8x8xf32>
    %cst_45 = arith.constant dense<0xFF800000> : vector<8xf32>
    %59 = vector.multi_reduction <maximumf>, %58, %cst_45 [1] : vector<8x8xf32> to vector<8xf32>
    %60 = vector.shape_cast %59 : vector<8xf32> to vector<8x1xf32>
    %61 = vector.broadcast %60 : vector<8x1xf32> to vector<8x8xf32>
    %62 = arith.subf %58, %61 : vector<8x8xf32>
    %63 = math.exp %62 : vector<8x8xf32>
    %cst_46 = arith.constant dense<0.000000e+00> : vector<8xf32>
    %64 = vector.multi_reduction <add>, %63, %cst_46 [1] : vector<8x8xf32> to vector<8xf32>
    %65 = vector.shape_cast %64 : vector<8xf32> to vector<8x1xf32>
    %66 = vector.broadcast %65 : vector<8x1xf32> to vector<8x8xf32>
    %67 = arith.divf %63, %66 : vector<8x8xf32>
    %c0_47 = arith.constant 0 : index
    %c1 = arith.constant 1 : index
    %c0_48 = arith.constant 0 : index
    %c0_49 = arith.constant 0 : index
    %68 = vector.load %arg20[%c0_47, %c1, %c0_48, %c0_49] : memref<1x2x8x8xf32, #tpu.memory_space<vmem>>, vector<1x1x8x8xf32>
    %69 = vector.shape_cast %68 : vector<1x1x8x8xf32> to vector<8x8xf32>
    %70 = vector.shape_cast %67 : vector<8x8xf32> to vector<1x1x8x8xf32>
    tpu.vector_store %arg20[%c0_47, %c1, %c0_48, %c0_49], %70 {strides = array<i32>} : memref<1x2x8x8xf32, #tpu.memory_space<vmem>>, vector<1x1x8x8xf32>,
    %cst_50 = arith.constant dense<0.000000e+00> : vector<8x128xf32>
    %71 = tpu.matmul %67, %51, %cst_50 {dimension_numbers = #tpu.dot_dimension_numbers<[1], [0], [0], [1], [0, 0, 1, 1], [], []>} : vector<8x8xf32>, vector<8x128xf32>, vector<8x128xf32> -> vector<8x128xf32>
    %c1_51 = arith.constant 1 : index
    %c0_52 = arith.constant 0 : index
    %c0_53 = arith.constant 0 : index
    %72 = vector.load %arg8[%c1_51, %c0_52, %c0_53] : memref<2x128x128xf32, #tpu.memory_space<vmem>>, vector<1x128x128xf32>
    %73 = vector.shape_cast %72 : vector<1x128x128xf32> to vector<128x128xf32>
    %cst_54 = arith.constant dense<0.000000e+00> : vector<8x128xf32>
    %74 = tpu.matmul %71, %73, %cst_54 {dimension_numbers = #tpu.dot_dimension_numbers<[1], [0], [0], [1], [0, 0, 1, 1], [], []>} : vector<8x128xf32>, vector<128x128xf32>, vector<8x128xf32> -> vector<8x128xf32>
    %75 = arith.addf %48, %74 : vector<8x128xf32>
    %76 = arith.addf %75, %1 : vector<8x128xf32>
    %77 = arith.addf %76, %3 : vector<8x128xf32>
    %78 = vector.extract_strided_slice %11 {offsets = [0, 0], sizes = [1, 128], strides = [1, 1]} : vector<3x128xf32> to vector<1x128xf32>
    %79 = vector.extract_strided_slice %12 {offsets = [0, 0], sizes = [1, 128], strides = [1, 1]} : vector<3x128xf32> to vector<1x128xf32>
    %cst_55 = arith.constant dense<0.000000e+00> : vector<8xf32>
    %80 = vector.multi_reduction <add>, %77, %cst_55 [1] : vector<8x128xf32> to vector<8xf32>
    %81 = vector.shape_cast %80 : vector<8xf32> to vector<8x1xf32>
    %cst_56 = arith.constant 3.125000e-02 : f32
    %82 = vector.broadcast %cst_56 : f32 to vector<8x1xf32>
    %83 = arith.mulf %81, %82 : vector<8x1xf32>
    %84 = vector.broadcast %83 : vector<8x1xf32> to vector<8x128xf32>
    %85 = arith.subf %77, %84 : vector<8x128xf32>
    %86 = vector.broadcast %10 : vector<1x128xf32> to vector<8x128xf32>
    %87 = arith.mulf %85, %86 : vector<8x128xf32>
    %88 = arith.mulf %87, %87 : vector<8x128xf32>
    %cst_57 = arith.constant dense<0.000000e+00> : vector<8xf32>
    %89 = vector.multi_reduction <add>, %88, %cst_57 [1] : vector<8x128xf32> to vector<8xf32>
    %90 = vector.shape_cast %89 : vector<8xf32> to vector<8x1xf32>
    %cst_58 = arith.constant 3.125000e-02 : f32
    %91 = vector.broadcast %cst_58 : f32 to vector<8x1xf32>
    %92 = arith.mulf %90, %91 : vector<8x1xf32>
    %cst_59 = arith.constant 9.99999997E-7 : f32
    %93 = vector.broadcast %cst_59 : f32 to vector<8x1xf32>
    %94 = arith.addf %92, %93 : vector<8x1xf32>
    %95 = math.rsqrt %94 : vector<8x1xf32>
    %96 = vector.broadcast %95 : vector<8x1xf32> to vector<8x128xf32>
    %97 = arith.mulf %87, %96 : vector<8x128xf32>
    %98 = vector.broadcast %78 : vector<1x128xf32> to vector<8x128xf32>
    %99 = arith.mulf %97, %98 : vector<8x128xf32>
    %100 = vector.broadcast %79 : vector<1x128xf32> to vector<8x128xf32>
    %101 = arith.addf %99, %100 : vector<8x128xf32>
    %c0_60 = arith.constant 0 : index
    %c0_61 = arith.constant 0 : index
    %102 = vector.load %arg9[%c0_60, %c0_61] : memref<128x256xf32, #tpu.memory_space<vmem>>, vector<128x256xf32>
    %cst_62 = arith.constant dense<0.000000e+00> : vector<8x256xf32>
    %103 = tpu.matmul %101, %102, %cst_62 {dimension_numbers = #tpu.dot_dimension_numbers<[1], [0], [0], [1], [0, 0, 1, 1], [], []>} : vector<8x128xf32>, vector<128x256xf32>, vector<8x256xf32> -> vector<8x256xf32>
    %c0_63 = arith.constant 0 : index
    %c0_64 = arith.constant 0 : index
    %104 = vector.load %arg10[%c0_63, %c0_64] : memref<128x512xf32, #tpu.memory_space<vmem>>, vector<128x512xf32>
    %cst_65 = arith.constant dense<0.000000e+00> : vector<16x512xf32>
    %105 = tpu.matmul %5, %104, %cst_65 {dimension_numbers = #tpu.dot_dimension_numbers<[1], [0], [0], [1], [0, 0, 1, 1], [], []>} : vector<16x128xf32>, vector<128x512xf32>, vector<16x512xf32> -> vector<16x512xf32>
    %106 = vector.extract_strided_slice %105 {offsets = [0, 0], sizes = [16, 256], strides = [1, 1]} : vector<16x512xf32> to vector<16x256xf32>
    %107 = vector.extract_strided_slice %105 {offsets = [0, 256], sizes = [16, 256], strides = [1, 1]} : vector<16x512xf32> to vector<16x256xf32>
    %cst_66 = arith.constant 0.000000e+00 : f32
    %108 = vector.broadcast %cst_66 : f32 to vector<8x128xf32>
    %109 = vector.extract_strided_slice %103 {offsets = [0, 0], sizes = [8, 128], strides = [1, 1]} : vector<8x256xf32> to vector<8x128xf32>
    %110 = vector.extract_strided_slice %106 {offsets = [0, 0], sizes = [16, 128], strides = [1, 1]} : vector<16x256xf32> to vector<16x128xf32>
    %111 = vector.extract_strided_slice %107 {offsets = [0, 0], sizes = [16, 128], strides = [1, 1]} : vector<16x256xf32> to vector<16x128xf32>
    %cst_67 = arith.constant dense<0.000000e+00> : vector<8x16xf32>
    %112 = tpu.matmul %109, %110, %cst_67 {dimension_numbers = #tpu.dot_dimension_numbers<[1], [1], [0], [0], [0, 0, 1, 0], [], []>} : vector<8x128xf32>, vector<16x128xf32>, vector<8x16xf32> -> vector<8x16xf32>
    %cst_68 = arith.constant 2.500000e-01 : f32
    %113 = vector.broadcast %cst_68 : f32 to vector<8x16xf32>
    %114 = arith.mulf %112, %113 : vector<8x16xf32>
    %cst_69 = arith.constant 0.000000e+00 : f32
    %115 = vector.broadcast %cst_69 : f32 to vector<8x16xf32>
    %116 = arith.cmpf ogt, %9, %115 : vector<8x16xf32>
    %cst_70 = arith.constant -1.000000e+09 : f32
    %117 = vector.broadcast %cst_70 : f32 to vector<8x16xf32>
    %118 = arith.select %116, %114, %117 : vector<8x16xi1>, vector<8x16xf32>
    %cst_71 = arith.constant dense<0xFF800000> : vector<8xf32>
    %119 = vector.multi_reduction <maximumf>, %118, %cst_71 [1] : vector<8x16xf32> to vector<8xf32>
    %120 = vector.shape_cast %119 : vector<8xf32> to vector<8x1xf32>
    %121 = vector.broadcast %120 : vector<8x1xf32> to vector<8x16xf32>
    %122 = arith.subf %118, %121 : vector<8x16xf32>
    %123 = math.exp %122 : vector<8x16xf32>
    %cst_72 = arith.constant dense<0.000000e+00> : vector<8xf32>
    %124 = vector.multi_reduction <add>, %123, %cst_72 [1] : vector<8x16xf32> to vector<8xf32>
    %125 = vector.shape_cast %124 : vector<8xf32> to vector<8x1xf32>
    %126 = vector.broadcast %125 : vector<8x1xf32> to vector<8x16xf32>
    %127 = arith.divf %123, %126 : vector<8x16xf32>
    %c0_73 = arith.constant 0 : index
    %c0_74 = arith.constant 0 : index
    %c0_75 = arith.constant 0 : index
    %c0_76 = arith.constant 0 : index
    %128 = vector.load %arg21[%c0_73, %c0_74, %c0_75, %c0_76] : memref<1x2x8x16xf32, #tpu.memory_space<vmem>>, vector<1x1x8x16xf32>
    %129 = vector.shape_cast %128 : vector<1x1x8x16xf32> to vector<8x16xf32>
    %130 = vector.shape_cast %127 : vector<8x16xf32> to vector<1x1x8x16xf32>
    tpu.vector_store %arg21[%c0_73, %c0_74, %c0_75, %c0_76], %130 {strides = array<i32>} : memref<1x2x8x16xf32, #tpu.memory_space<vmem>>, vector<1x1x8x16xf32>,
    %cst_77 = arith.constant dense<0.000000e+00> : vector<8x128xf32>
    %131 = tpu.matmul %127, %111, %cst_77 {dimension_numbers = #tpu.dot_dimension_numbers<[1], [0], [0], [1], [0, 0, 1, 1], [], []>} : vector<8x16xf32>, vector<16x128xf32>, vector<8x128xf32> -> vector<8x128xf32>
    %c0_78 = arith.constant 0 : index
    %c0_79 = arith.constant 0 : index
    %c0_80 = arith.constant 0 : index
    %132 = vector.load %arg11[%c0_78, %c0_79, %c0_80] : memref<2x128x128xf32, #tpu.memory_space<vmem>>, vector<1x128x128xf32>
    %133 = vector.shape_cast %132 : vector<1x128x128xf32> to vector<128x128xf32>
    %cst_81 = arith.constant dense<0.000000e+00> : vector<8x128xf32>
    %134 = tpu.matmul %131, %133, %cst_81 {dimension_numbers = #tpu.dot_dimension_numbers<[1], [0], [0], [1], [0, 0, 1, 1], [], []>} : vector<8x128xf32>, vector<128x128xf32>, vector<8x128xf32> -> vector<8x128xf32>
    %135 = arith.addf %108, %134 : vector<8x128xf32>
    %136 = vector.extract_strided_slice %103 {offsets = [0, 128], sizes = [8, 128], strides = [1, 1]} : vector<8x256xf32> to vector<8x128xf32>
    %137 = vector.extract_strided_slice %106 {offsets = [0, 128], sizes = [16, 128], strides = [1, 1]} : vector<16x256xf32> to vector<16x128xf32>
    %138 = vector.extract_strided_slice %107 {offsets = [0, 128], sizes = [16, 128], strides = [1, 1]} : vector<16x256xf32> to vector<16x128xf32>
    %cst_82 = arith.constant dense<0.000000e+00> : vector<8x16xf32>
    %139 = tpu.matmul %136, %137, %cst_82 {dimension_numbers = #tpu.dot_dimension_numbers<[1], [1], [0], [0], [0, 0, 1, 0], [], []>} : vector<8x128xf32>, vector<16x128xf32>, vector<8x16xf32> -> vector<8x16xf32>
    %cst_83 = arith.constant 2.500000e-01 : f32
    %140 = vector.broadcast %cst_83 : f32 to vector<8x16xf32>
    %141 = arith.mulf %139, %140 : vector<8x16xf32>
    %cst_84 = arith.constant 0.000000e+00 : f32
    %142 = vector.broadcast %cst_84 : f32 to vector<8x16xf32>
    %143 = arith.cmpf ogt, %9, %142 : vector<8x16xf32>
    %cst_85 = arith.constant -1.000000e+09 : f32
    %144 = vector.broadcast %cst_85 : f32 to vector<8x16xf32>
    %145 = arith.select %143, %141, %144 : vector<8x16xi1>, vector<8x16xf32>
    %cst_86 = arith.constant dense<0xFF800000> : vector<8xf32>
    %146 = vector.multi_reduction <maximumf>, %145, %cst_86 [1] : vector<8x16xf32> to vector<8xf32>
    %147 = vector.shape_cast %146 : vector<8xf32> to vector<8x1xf32>
    %148 = vector.broadcast %147 : vector<8x1xf32> to vector<8x16xf32>
    %149 = arith.subf %145, %148 : vector<8x16xf32>
    %150 = math.exp %149 : vector<8x16xf32>
    %cst_87 = arith.constant dense<0.000000e+00> : vector<8xf32>
    %151 = vector.multi_reduction <add>, %150, %cst_87 [1] : vector<8x16xf32> to vector<8xf32>
    %152 = vector.shape_cast %151 : vector<8xf32> to vector<8x1xf32>
    %153 = vector.broadcast %152 : vector<8x1xf32> to vector<8x16xf32>
    %154 = arith.divf %150, %153 : vector<8x16xf32>
    %c0_88 = arith.constant 0 : index
    %c1_89 = arith.constant 1 : index
    %c0_90 = arith.constant 0 : index
    %c0_91 = arith.constant 0 : index
    %155 = vector.load %arg21[%c0_88, %c1_89, %c0_90, %c0_91] : memref<1x2x8x16xf32, #tpu.memory_space<vmem>>, vector<1x1x8x16xf32>
    %156 = vector.shape_cast %155 : vector<1x1x8x16xf32> to vector<8x16xf32>
    %157 = vector.shape_cast %154 : vector<8x16xf32> to vector<1x1x8x16xf32>
    tpu.vector_store %arg21[%c0_88, %c1_89, %c0_90, %c0_91], %157 {strides = array<i32>} : memref<1x2x8x16xf32, #tpu.memory_space<vmem>>, vector<1x1x8x16xf32>,
    %cst_92 = arith.constant dense<0.000000e+00> : vector<8x128xf32>
    %158 = tpu.matmul %154, %138, %cst_92 {dimension_numbers = #tpu.dot_dimension_numbers<[1], [0], [0], [1], [0, 0, 1, 1], [], []>} : vector<8x16xf32>, vector<16x128xf32>, vector<8x128xf32> -> vector<8x128xf32>
    %c1_93 = arith.constant 1 : index
    %c0_94 = arith.constant 0 : index
    %c0_95 = arith.constant 0 : index
    %159 = vector.load %arg11[%c1_93, %c0_94, %c0_95] : memref<2x128x128xf32, #tpu.memory_space<vmem>>, vector<1x128x128xf32>
    %160 = vector.shape_cast %159 : vector<1x128x128xf32> to vector<128x128xf32>
    %cst_96 = arith.constant dense<0.000000e+00> : vector<8x128xf32>
    %161 = tpu.matmul %158, %160, %cst_96 {dimension_numbers = #tpu.dot_dimension_numbers<[1], [0], [0], [1], [0, 0, 1, 1], [], []>} : vector<8x128xf32>, vector<128x128xf32>, vector<8x128xf32> -> vector<8x128xf32>
    %162 = arith.addf %135, %161 : vector<8x128xf32>
    %163 = arith.addf %162, %101 : vector<8x128xf32>
    %164 = vector.extract_strided_slice %11 {offsets = [1, 0], sizes = [1, 128], strides = [1, 1]} : vector<3x128xf32> to vector<1x128xf32>
    %165 = vector.extract_strided_slice %12 {offsets = [1, 0], sizes = [1, 128], strides = [1, 1]} : vector<3x128xf32> to vector<1x128xf32>
    %cst_97 = arith.constant dense<0.000000e+00> : vector<8xf32>
    %166 = vector.multi_reduction <add>, %163, %cst_97 [1] : vector<8x128xf32> to vector<8xf32>
    %167 = vector.shape_cast %166 : vector<8xf32> to vector<8x1xf32>
    %cst_98 = arith.constant 3.125000e-02 : f32
    %168 = vector.broadcast %cst_98 : f32 to vector<8x1xf32>
    %169 = arith.mulf %167, %168 : vector<8x1xf32>
    %170 = vector.broadcast %169 : vector<8x1xf32> to vector<8x128xf32>
    %171 = arith.subf %163, %170 : vector<8x128xf32>
    %172 = vector.broadcast %10 : vector<1x128xf32> to vector<8x128xf32>
    %173 = arith.mulf %171, %172 : vector<8x128xf32>
    %174 = arith.mulf %173, %173 : vector<8x128xf32>
    %cst_99 = arith.constant dense<0.000000e+00> : vector<8xf32>
    %175 = vector.multi_reduction <add>, %174, %cst_99 [1] : vector<8x128xf32> to vector<8xf32>
    %176 = vector.shape_cast %175 : vector<8xf32> to vector<8x1xf32>
    %cst_100 = arith.constant 3.125000e-02 : f32
    %177 = vector.broadcast %cst_100 : f32 to vector<8x1xf32>
    %178 = arith.mulf %176, %177 : vector<8x1xf32>
    %cst_101 = arith.constant 9.99999997E-7 : f32
    %179 = vector.broadcast %cst_101 : f32 to vector<8x1xf32>
    %180 = arith.addf %178, %179 : vector<8x1xf32>
    %181 = math.rsqrt %180 : vector<8x1xf32>
    %182 = vector.broadcast %181 : vector<8x1xf32> to vector<8x128xf32>
    %183 = arith.mulf %173, %182 : vector<8x128xf32>
    %184 = vector.broadcast %164 : vector<1x128xf32> to vector<8x128xf32>
    %185 = arith.mulf %183, %184 : vector<8x128xf32>
    %186 = vector.broadcast %165 : vector<1x128xf32> to vector<8x128xf32>
    %187 = arith.addf %185, %186 : vector<8x128xf32>
    %c0_102 = arith.constant 0 : index
    %c0_103 = arith.constant 0 : index
    %188 = vector.load %arg12[%c0_102, %c0_103] : memref<128x128xf32, #tpu.memory_space<vmem>>, vector<128x128xf32>
    %cst_104 = arith.constant dense<0.000000e+00> : vector<8x128xf32>
    %189 = tpu.matmul %187, %188, %cst_104 {dimension_numbers = #tpu.dot_dimension_numbers<[1], [0], [0], [1], [0, 0, 1, 1], [], []>} : vector<8x128xf32>, vector<128x128xf32>, vector<8x128xf32> -> vector<8x128xf32>
    %c0_105 = arith.constant 0 : index
    %c0_106 = arith.constant 0 : index
    %190 = vector.load %arg13[%c0_105, %c0_106] : memref<1x128xf32, #tpu.memory_space<vmem>>, vector<1x128xf32>
    %191 = vector.broadcast %190 : vector<1x128xf32> to vector<8x128xf32>
    %192 = arith.addf %189, %191 : vector<8x128xf32>
    %cst_107 = arith.constant 0.000000e+00 : f32
    %193 = vector.broadcast %cst_107 : f32 to vector<8x128xf32>
    %194 = arith.maximumf %192, %193 : vector<8x128xf32>
    %c0_108 = arith.constant 0 : index
    %c0_109 = arith.constant 0 : index
    %195 = vector.load %arg14[%c0_108, %c0_109] : memref<128x128xf32, #tpu.memory_space<vmem>>, vector<128x128xf32>
    %cst_110 = arith.constant dense<0.000000e+00> : vector<8x128xf32>
    %196 = tpu.matmul %194, %195, %cst_110 {dimension_numbers = #tpu.dot_dimension_numbers<[1], [0], [0], [1], [0, 0, 1, 1], [], []>} : vector<8x128xf32>, vector<128x128xf32>, vector<8x128xf32> -> vector<8x128xf32>
    %c0_111 = arith.constant 0 : index
    %c0_112 = arith.constant 0 : index
    %197 = vector.load %arg15[%c0_111, %c0_112] : memref<1x128xf32, #tpu.memory_space<vmem>>, vector<1x128xf32>
    %198 = vector.broadcast %197 : vector<1x128xf32> to vector<8x128xf32>
    %199 = arith.addf %196, %198 : vector<8x128xf32>
    %200 = arith.addf %199, %187 : vector<8x128xf32>
    %201 = vector.extract_strided_slice %11 {offsets = [2, 0], sizes = [1, 128], strides = [1, 1]} : vector<3x128xf32> to vector<1x128xf32>
    %202 = vector.extract_strided_slice %12 {offsets = [2, 0], sizes = [1, 128], strides = [1, 1]} : vector<3x128xf32> to vector<1x128xf32>
    %cst_113 = arith.constant dense<0.000000e+00> : vector<8xf32>
    %203 = vector.multi_reduction <add>, %200, %cst_113 [1] : vector<8x128xf32> to vector<8xf32>
    %204 = vector.shape_cast %203 : vector<8xf32> to vector<8x1xf32>
    %cst_114 = arith.constant 3.125000e-02 : f32
    %205 = vector.broadcast %cst_114 : f32 to vector<8x1xf32>
    %206 = arith.mulf %204, %205 : vector<8x1xf32>
    %207 = vector.broadcast %206 : vector<8x1xf32> to vector<8x128xf32>
    %208 = arith.subf %200, %207 : vector<8x128xf32>
    %209 = vector.broadcast %10 : vector<1x128xf32> to vector<8x128xf32>
    %210 = arith.mulf %208, %209 : vector<8x128xf32>
    %211 = arith.mulf %210, %210 : vector<8x128xf32>
    %cst_115 = arith.constant dense<0.000000e+00> : vector<8xf32>
    %212 = vector.multi_reduction <add>, %211, %cst_115 [1] : vector<8x128xf32> to vector<8xf32>
    %213 = vector.shape_cast %212 : vector<8xf32> to vector<8x1xf32>
    %cst_116 = arith.constant 3.125000e-02 : f32
    %214 = vector.broadcast %cst_116 : f32 to vector<8x1xf32>
    %215 = arith.mulf %213, %214 : vector<8x1xf32>
    %cst_117 = arith.constant 9.99999997E-7 : f32
    %216 = vector.broadcast %cst_117 : f32 to vector<8x1xf32>
    %217 = arith.addf %215, %216 : vector<8x1xf32>
    %218 = math.rsqrt %217 : vector<8x1xf32>
    %219 = vector.broadcast %218 : vector<8x1xf32> to vector<8x128xf32>
    %220 = arith.mulf %210, %219 : vector<8x128xf32>
    %221 = vector.broadcast %201 : vector<1x128xf32> to vector<8x128xf32>
    %222 = arith.mulf %220, %221 : vector<8x128xf32>
    %223 = vector.broadcast %202 : vector<1x128xf32> to vector<8x128xf32>
    %224 = arith.addf %222, %223 : vector<8x128xf32>
    %c0_118 = arith.constant 0 : index
    %c0_119 = arith.constant 0 : index
    %c0_120 = arith.constant 0 : index
    %225 = vector.load %arg19[%c0_118, %c0_119, %c0_120] : memref<1x8x128xf32, #tpu.memory_space<vmem>>, vector<1x8x128xf32>
    %226 = vector.shape_cast %225 : vector<1x8x128xf32> to vector<8x128xf32>
    %227 = vector.shape_cast %224 : vector<8x128xf32> to vector<1x8x128xf32>
    tpu.vector_store %arg19[%c0_118, %c0_119, %c0_120], %227 {strides = array<i32>} : memref<1x8x128xf32, #tpu.memory_space<vmem>>, vector<1x8x128xf32>,
    return
  }
  func.func @transform_0(%arg0: i32) -> (i32, i32, i32) {
    %c0_i32 = arith.constant 0 : i32
    %c0_i32_0 = arith.constant 0 : i32
    %c0_i32_1 = arith.constant 0 : i32
    return %arg0, %c0_i32, %c0_i32_0 : i32, i32, i32
  }
  func.func @transform_1(%arg0: i32) -> (i32, i32, i32) {
    %c0_i32 = arith.constant 0 : i32
    %c0_i32_0 = arith.constant 0 : i32
    %c0_i32_1 = arith.constant 0 : i32
    return %arg0, %c0_i32, %c0_i32_0 : i32, i32, i32
  }
  func.func @transform_2(%arg0: i32) -> (i32, i32, i32) {
    %c0_i32 = arith.constant 0 : i32
    %c0_i32_0 = arith.constant 0 : i32
    %c0_i32_1 = arith.constant 0 : i32
    return %arg0, %c0_i32, %c0_i32_0 : i32, i32, i32
  }
  func.func @transform_3(%arg0: i32) -> (i32, i32, i32) {
    %c0_i32 = arith.constant 0 : i32
    %c0_i32_0 = arith.constant 0 : i32
    %c0_i32_1 = arith.constant 0 : i32
    return %arg0, %c0_i32, %c0_i32_0 : i32, i32, i32
  }
  func.func @transform_4(%arg0: i32) -> (i32, i32, i32) {
    %c0_i32 = arith.constant 0 : i32
    %c0_i32_0 = arith.constant 0 : i32
    %c0_i32_1 = arith.constant 0 : i32
    return %arg0, %c0_i32, %c0_i32_0 : i32, i32, i32
  }
  func.func @transform_5(%arg0: i32) -> (i32, i32) {
    %c0_i32 = arith.constant 0 : i32
    %c0_i32_0 = arith.constant 0 : i32
    %c0_i32_1 = arith.constant 0 : i32
    return %c0_i32, %c0_i32_0 : i32, i32
  }
  func.func @transform_6(%arg0: i32) -> (i32, i32) {
    %c0_i32 = arith.constant 0 : i32
    %c0_i32_0 = arith.constant 0 : i32
    %c0_i32_1 = arith.constant 0 : i32
    return %c0_i32, %c0_i32_0 : i32, i32
  }
  func.func @transform_7(%arg0: i32) -> (i32, i32, i32) {
    %c0_i32 = arith.constant 0 : i32
    %c0_i32_0 = arith.constant 0 : i32
    %c0_i32_1 = arith.constant 0 : i32
    %c0_i32_2 = arith.constant 0 : i32
    return %c0_i32, %c0_i32_0, %c0_i32_1 : i32, i32, i32
  }
  func.func @transform_8(%arg0: i32) -> (i32, i32) {
    %c0_i32 = arith.constant 0 : i32
    %c0_i32_0 = arith.constant 0 : i32
    %c0_i32_1 = arith.constant 0 : i32
    return %c0_i32, %c0_i32_0 : i32, i32
  }
  func.func @transform_9(%arg0: i32) -> (i32, i32) {
    %c0_i32 = arith.constant 0 : i32
    %c0_i32_0 = arith.constant 0 : i32
    %c0_i32_1 = arith.constant 0 : i32
    return %c0_i32, %c0_i32_0 : i32, i32
  }
  func.func @transform_10(%arg0: i32) -> (i32, i32, i32) {
    %c0_i32 = arith.constant 0 : i32
    %c0_i32_0 = arith.constant 0 : i32
    %c0_i32_1 = arith.constant 0 : i32
    %c0_i32_2 = arith.constant 0 : i32
    return %c0_i32, %c0_i32_0, %c0_i32_1 : i32, i32, i32
  }
  func.func @transform_11(%arg0: i32) -> (i32, i32) {
    %c0_i32 = arith.constant 0 : i32
    %c0_i32_0 = arith.constant 0 : i32
    %c0_i32_1 = arith.constant 0 : i32
    return %c0_i32, %c0_i32_0 : i32, i32
  }
  func.func @transform_12(%arg0: i32) -> (i32, i32) {
    %c0_i32 = arith.constant 0 : i32
    %c0_i32_0 = arith.constant 0 : i32
    %c0_i32_1 = arith.constant 0 : i32
    return %c0_i32, %c0_i32_0 : i32, i32
  }
  func.func @transform_13(%arg0: i32) -> (i32, i32) {
    %c0_i32 = arith.constant 0 : i32
    %c0_i32_0 = arith.constant 0 : i32
    %c0_i32_1 = arith.constant 0 : i32
    return %c0_i32, %c0_i32_0 : i32, i32
  }
  func.func @transform_14(%arg0: i32) -> (i32, i32) {
    %c0_i32 = arith.constant 0 : i32
    %c0_i32_0 = arith.constant 0 : i32
    %c0_i32_1 = arith.constant 0 : i32
    return %c0_i32, %c0_i32_0 : i32, i32
  }
  func.func @transform_15(%arg0: i32) -> (i32, i32) {
    %c0_i32 = arith.constant 0 : i32
    %c0_i32_0 = arith.constant 0 : i32
    %c0_i32_1 = arith.constant 0 : i32
    return %c0_i32, %c0_i32_0 : i32, i32
  }
  func.func @transform_16(%arg0: i32) -> (i32, i32) {
    %c0_i32 = arith.constant 0 : i32
    %c0_i32_0 = arith.constant 0 : i32
    %c0_i32_1 = arith.constant 0 : i32
    return %c0_i32, %c0_i32_0 : i32, i32
  }
  func.func @transform_17(%arg0: i32) -> (i32, i32) {
    %c0_i32 = arith.constant 0 : i32
    %c0_i32_0 = arith.constant 0 : i32
    %c0_i32_1 = arith.constant 0 : i32
    return %c0_i32, %c0_i32_0 : i32, i32
  }
  func.func @transform_18(%arg0: i32) -> (i32, i32, i32) {
    %c0_i32 = arith.constant 0 : i32
    %c0_i32_0 = arith.constant 0 : i32
    %c0_i32_1 = arith.constant 0 : i32
    return %arg0, %c0_i32, %c0_i32_0 : i32, i32, i32
  }
  func.func @transform_19(%arg0: i32) -> (i32, i32, i32, i32) {
    %c0_i32 = arith.constant 0 : i32
    %c0_i32_0 = arith.constant 0 : i32
    %c0_i32_1 = arith.constant 0 : i32
    %c0_i32_2 = arith.constant 0 : i32
    return %arg0, %c0_i32, %c0_i32_0, %c0_i32_1 : i32, i32, i32, i32
  }
  func.func @transform_20(%arg0: i32) -> (i32, i32, i32, i32) {
    %c0_i32 = arith.constant 0 : i32
    %c0_i32_0 = arith.constant 0 : i32
    %c0_i32_1 = arith.constant 0 : i32
    %c0_i32_2 = arith.constant 0 : i32
    return %arg0, %c0_i32, %c0_i32_0, %c0_i32_1 : i32, i32, i32, i32
  }
}

</mosaic_0001>

<llo_original>
// kernel: decoder_layer_forward.1
$region0: #{decoder_layer_forward.1}
  #allocation0 [shape = 'u32[]', space=smem, size = 0x4, offset = 0x4, fixed_abs, tag = 'smem constant byte address 0x4 - core index']
  #allocation1 [shape = 'u32[144,128]{1,0:T(1,128)}', space=vmem, size = 0x12000, scoped, tag = 'internal scratch']
  %s0 = inlined_call_operand.vmem [shape: f32[2,8,128], index: 0, kind: input, shape index: {}]
  %s1 = inlined_call_operand.vmem [shape: f32[2,8,128], index: 1, kind: input, shape index: {}]
  %s2 = inlined_call_operand.vmem [shape: f32[2,16,128], index: 2, kind: input, shape index: {}]
  %s3 = inlined_call_operand.vmem [shape: f32[2,8,8], index: 3, kind: input, shape index: {}]
  %s4 = inlined_call_operand.vmem [shape: f32[2,8,16], index: 4, kind: input, shape index: {}]
  %s5 = inlined_call_operand.vmem [shape: f32[128,768], index: 5, kind: input, shape index: {}]
  %s6 = inlined_call_operand.vmem [shape: f32[128,768], index: 6, kind: input, shape index: {}]
  %s7 = inlined_call_operand.vmem [shape: f32[2,128,128], index: 7, kind: input, shape index: {}]
  %s8 = inlined_call_operand.vmem [shape: f32[128,256], index: 8, kind: input, shape index: {}]
  %s9 = inlined_call_operand.vmem [shape: f32[128,512], index: 9, kind: input, shape index: {}]
  %s10 = inlined_call_operand.vmem [shape: f32[2,128,128], index: 10, kind: input, shape index: {}]
  %s11 = inlined_call_operand.vmem [shape: f32[128,128], index: 11, kind: input, shape index: {}]
  %s12 = inlined_call_operand.vmem [shape: f32[1,128], index: 12, kind: input, shape index: {}]
  %s13 = inlined_call_operand.vmem [shape: f32[128,128], index: 13, kind: input, shape index: {}]
  %s14 = inlined_call_operand.vmem [shape: f32[1,128], index: 14, kind: input, shape index: {}]
  %s15 = inlined_call_operand.vmem [shape: f32[3,128], index: 15, kind: input, shape index: {}]
  %s16 = inlined_call_operand.vmem [shape: f32[3,128], index: 16, kind: input, shape index: {}]
  %s17 = inlined_call_operand.vmem [shape: f32[1,128], index: 17, kind: input, shape index: {}]
  %s18 = inlined_call_operand.hbm [shape: f32[2,8,128], index: 18, kind: output, shape index: {0}]
  %s19 = inlined_call_operand.hbm [shape: f32[2,2,8,8], index: 19, kind: output, shape index: {1}]
  %s20 = inlined_call_operand.hbm [shape: f32[2,2,8,16], index: 20, kind: output, shape index: {2}]
  %21 = xla_tuple %s18, %s19, %s20
  %s22 = sld [smem:[#allocation0]]
  $region121: #{decoder_layer_forward.1} parent=0
    _
  %s24 = ssub.s32 1, %s22
  %s25 = scalar_select 0, %s24, %s22
  $region1: #{decoder_layer_forward.1} parent=0
    #allocation2 [shape = 'u8[8192]{0}', space=vmem, size = 0x2000, scoped, tag = 'output window, operand 0']
    #allocation3 [shape = 's32[2]{0}', space=sflag, size = 0x8, scoped, tag = 'scoped memory for decoder_layer_forward.1']
    #allocation4 [shape = 'u8[16384]{0}', space=vmem, size = 0x4000, scoped, tag = 'output window, operand 1']
    #allocation5 [shape = 's32[2]{0}', space=sflag, size = 0x8, scoped, tag = 'scoped memory for decoder_layer_forward.1']
    #allocation6 [shape = 'u8[16384]{0}', space=vmem, size = 0x4000, scoped, tag = 'output window, operand 2']
    %26 = vsyncpa [#allocation3], 0
    %s27 = scalar_lea.sflag [#allocation3], 1
    %28 = vsyncpa %s27, 0
    %29 = vsyncpa [#allocation5], 0
    %s30 = scalar_lea.sflag [#allocation5], 1
    %31 = vsyncpa %s30, 0
    loop: start=0, step=1, limit=4
    $region2: #{decoder_layer_forward.1} parent=1 // loop_pre_header
      _
    $region3: #{decoder_layer_forward.1} parent=1 // loop_header
      %s33 = sphi 0, %s37
      %p34 = scmp.ge.s32.totalorder %s33, 4
      %s43 = sphi 0, %s45
      %s46 = sphi 0, %s43
      %s47 = sphi 0, %s46
      %s63 = sphi 0, %s47
      %s69 = sphi 0, %s71
      %s72 = sphi 0, %s69
      %s73 = sphi 0, %s72
      %s89 = sphi 0, %s73
      %s95 = sphi 0, %s97
      %s98 = sphi 0, %s95
      %s99 = sphi 0, %s98
      %s115 = sphi 0, %s99
      %s121 = sphi 0, %s123
      %s124 = sphi 0, %s121
      %s125 = sphi 0, %s124
      %s141 = sphi 0, %s125
      %s147 = sphi 0, %s149
      %s150 = sphi 0, %s147
      %s151 = sphi 0, %s150
      %s167 = sphi 0, %s151
      %s171 = sphi 0, %s171
      %s173 = sphi 0, %s171
      %s174 = sphi 0, %s173
      %s188 = sphi 0, %s174
      %s192 = sphi 0, %s192
      %s194 = sphi 0, %s192
      %s195 = sphi 0, %s194
      %s209 = sphi 0, %s195
      %s213 = sphi 0, %s213
      %s215 = sphi 0, %s213
      %s216 = sphi 0, %s215
      %s230 = sphi 0, %s216
      %s234 = sphi 0, %s234
      %s236 = sphi 0, %s234
      %s237 = sphi 0, %s236
      %s251 = sphi 0, %s237
      %s255 = sphi 0, %s255
      %s257 = sphi 0, %s255
      %s258 = sphi 0, %s257
      %s272 = sphi 0, %s258
      %s276 = sphi 0, %s276
      %s278 = sphi 0, %s276
      %s279 = sphi 0, %s278
      %s293 = sphi 0, %s279
      %s297 = sphi 0, %s297
      %s299 = sphi 0, %s297
      %s300 = sphi 0, %s299
      %s314 = sphi 0, %s300
      %s318 = sphi 0, %s318
      %s320 = sphi 0, %s318
      %s321 = sphi 0, %s320
      %s335 = sphi 0, %s321
      %s339 = sphi 0, %s339
      %s341 = sphi 0, %s339
      %s342 = sphi 0, %s341
      %s356 = sphi 0, %s342
      %s360 = sphi 0, %s360
      %s362 = sphi 0, %s360
      %s363 = sphi 0, %s362
      %s377 = sphi 0, %s363
      %s381 = sphi 0, %s381
      %s383 = sphi 0, %s381
      %s384 = sphi 0, %s383
      %s398 = sphi 0, %s384
      %s402 = sphi 0, %s402
      %s404 = sphi 0, %s402
      %s405 = sphi 0, %s404
      %s419 = sphi 0, %s405
      %s423 = sphi 0, %s423
      %s425 = sphi 0, %s423
      %s426 = sphi 0, %s425
      %s440 = sphi 0, %s426
      %s446 = sphi 0, %s448
      %s449 = sphi 0, %s446
      %s450 = sphi 0, %s449
      %s466 = sphi 0, %s450
      %s472 = sphi 0, %s474
      %s475 = sphi 0, %s472
      %s476 = sphi 0, %s475
      %s492 = sphi 0, %s476
      %s498 = sphi 0, %s500
      %s501 = sphi 0, %s498
      %s502 = sphi 0, %s501
      %s518 = sphi 0, %s502
    $region4: #{decoder_layer_forward.1} parent=1 // loop_header_branch
      %36 = sbr.rel (%p34) target = $region8
    $region5: #{decoder_layer_forward.1} parent=1 // loop_body
      %s38 = ssub.s32 %s33, 1
      %s39 = ssub.s32 %s33, 2
      %s40 = sadd.s32 %s33, 1
      %s41 = ssub.s32 %s33, %s40
      %p42 = scmp.eq.s32.totalorder %s41, 0
      %s44 = sadd.s32 %s43, 1
      %s45 = scalar_select %p42, %s43, %s44
      %p48 = pneg %p42
      %p49 = scmp.eq.s32.totalorder %s33, 1
      %p50 = por %p48, %p49
      %p51 = scmp.ne.s32.totalorder %s43, %s46
      %p52 = scmp.eq.s32.totalorder %s33, 0
      %p53 = por %p51, %p52
      %p54 = scmp.ne.s32.totalorder %s43, %s46
      %p55 = scmp.eq.s32.totalorder %s38, 1
      %p56 = por %p54, %p55
      %p57 = scmp.ne.s32.totalorder %s46, %s47
      %p58 = scmp.eq.s32.totalorder %s38, 0
      %p59 = por %p57, %p58
      %p60 = scmp.ne.s32.totalorder %s46, %s47
      %p61 = scmp.eq.s32.totalorder %s39, 1
      %p62 = por %p60, %p61
      %p64 = scmp.ne.s32.totalorder %s47, %s63
      %p65 = scmp.eq.s32.totalorder %s39, 0
      %p66 = por %p64, %p65
      %s67 = ssub.s32 %s33, %s40
      %p68 = scmp.eq.s32.totalorder %s67, 0
      %s70 = sadd.s32 %s69, 1
      %s71 = scalar_select %p68, %s69, %s70
      %p74 = pneg %p68
      %p75 = scmp.eq.s32.totalorder %s33, 1
      %p76 = por %p74, %p75
      %p77 = scmp.ne.s32.totalorder %s69, %s72
      %p78 = scmp.eq.s32.totalorder %s33, 0
      %p79 = por %p77, %p78
      %p80 = scmp.ne.s32.totalorder %s69, %s72
      %p81 = scmp.eq.s32.totalorder %s38, 1
      %p82 = por %p80, %p81
      %p83 = scmp.ne.s32.totalorder %s72, %s73
      %p84 = scmp.eq.s32.totalorder %s38, 0
      %p85 = por %p83, %p84
      %p86 = scmp.ne.s32.totalorder %s72, %s73
      %p87 = scmp.eq.s32.totalorder %s39, 1
      %p88 = por %p86, %p87
      %p90 = scmp.ne.s32.totalorder %s73, %s89
      %p91 = scmp.eq.s32.totalorder %s39, 0
      %p92 = por %p90, %p91
      %s93 = ssub.s32 %s33, %s40
      %p94 = scmp.eq.s32.totalorder %s93, 0
      %s96 = sadd.s32 %s95, 1
      %s97 = scalar_select %p94, %s95, %s96
      %p100 = pneg %p94
      %p101 = scmp.eq.s32.totalorder %s33, 1
      %p102 = por %p100, %p101
      %p103 = scmp.ne.s32.totalorder %s95, %s98
      %p104 = scmp.eq.s32.totalorder %s33, 0
      %p105 = por %p103, %p104
      %p106 = scmp.ne.s32.totalorder %s95, %s98
      %p107 = scmp.eq.s32.totalorder %s38, 1
      %p108 = por %p106, %p107
      %p109 = scmp.ne.s32.totalorder %s98, %s99
      %p110 = scmp.eq.s32.totalorder %s38, 0
      %p111 = por %p109, %p110
      %p112 = scmp.ne.s32.totalorder %s98, %s99
      %p113 = scmp.eq.s32.totalorder %s39, 1
      %p114 = por %p112, %p113
      %p116 = scmp.ne.s32.totalorder %s99, %s115
      %p117 = scmp.eq.s32.totalorder %s39, 0
      %p118 = por %p116, %p117
      %s119 = ssub.s32 %s33, %s40
      %p120 = scmp.eq.s32.totalorder %s119, 0
      %s122 = sadd.s32 %s121, 1
      %s123 = scalar_select %p120, %s121, %s122
      %p126 = pneg %p120
      %p127 = scmp.eq.s32.totalorder %s33, 1
      %p128 = por %p126, %p127
      %p129 = scmp.ne.s32.totalorder %s121, %s124
      %p130 = scmp.eq.s32.totalorder %s33, 0
      %p131 = por %p129, %p130
      %p132 = scmp.ne.s32.totalorder %s121, %s124
      %p133 = scmp.eq.s32.totalorder %s38, 1
      %p134 = por %p132, %p133
      %p135 = scmp.ne.s32.totalorder %s124, %s125
      %p136 = scmp.eq.s32.totalorder %s38, 0
      %p137 = por %p135, %p136
      %p138 = scmp.ne.s32.totalorder %s124, %s125
      %p139 = scmp.eq.s32.totalorder %s39, 1
      %p140 = por %p138, %p139
      %p142 = scmp.ne.s32.totalorder %s125, %s141
      %p143 = scmp.eq.s32.totalorder %s39, 0
      %p144 = por %p142, %p143
      %s145 = ssub.s32 %s33, %s40
      %p146 = scmp.eq.s32.totalorder %s145, 0
      %s148 = sadd.s32 %s147, 1
      %s149 = scalar_select %p146, %s147, %s148
      %p152 = pneg %p146
      %p153 = scmp.eq.s32.totalorder %s33, 1
      %p154 = por %p152, %p153
      %p155 = scmp.ne.s32.totalorder %s147, %s150
      %p156 = scmp.eq.s32.totalorder %s33, 0
      %p157 = por %p155, %p156
      %p158 = scmp.ne.s32.totalorder %s147, %s150
      %p159 = scmp.eq.s32.totalorder %s38, 1
      %p160 = por %p158, %p159
      %p161 = scmp.ne.s32.totalorder %s150, %s151
      %p162 = scmp.eq.s32.totalorder %s38, 0
      %p163 = por %p161, %p162
      %p164 = scmp.ne.s32.totalorder %s150, %s151
      %p165 = scmp.eq.s32.totalorder %s39, 1
      %p166 = por %p164, %p165
      %p168 = scmp.ne.s32.totalorder %s151, %s167
      %p169 = scmp.eq.s32.totalorder %s39, 0
      %p170 = por %p168, %p169
      %s172 = sadd.s32 %s171, 1
      %p175 = scmp.eq.s32.totalorder %s33, 1
      %p176 = scmp.ne.s32.totalorder %s171, %s173
      %p177 = scmp.eq.s32.totalorder %s33, 0
      %p178 = por %p176, %p177
      %p179 = scmp.ne.s32.totalorder %s171, %s173
      %p180 = scmp.eq.s32.totalorder %s38, 1
      %p181 = por %p179, %p180
      %p182 = scmp.ne.s32.totalorder %s173, %s174
      %p183 = scmp.eq.s32.totalorder %s38, 0
      %p184 = por %p182, %p183
      %p185 = scmp.ne.s32.totalorder %s173, %s174
      %p186 = scmp.eq.s32.totalorder %s39, 1
      %p187 = por %p185, %p186
      %p189 = scmp.ne.s32.totalorder %s174, %s188
      %p190 = scmp.eq.s32.totalorder %s39, 0
      %p191 = por %p189, %p190
      %s193 = sadd.s32 %s192, 1
      %p196 = scmp.eq.s32.totalorder %s33, 1
      %p197 = scmp.ne.s32.totalorder %s192, %s194
      %p198 = scmp.eq.s32.totalorder %s33, 0
      %p199 = por %p197, %p198
      %p200 = scmp.ne.s32.totalorder %s192, %s194
      %p201 = scmp.eq.s32.totalorder %s38, 1
      %p202 = por %p200, %p201
      %p203 = scmp.ne.s32.totalorder %s194, %s195
      %p204 = scmp.eq.s32.totalorder %s38, 0
      %p205 = por %p203, %p204
      %p206 = scmp.ne.s32.totalorder %s194, %s195
      %p207 = scmp.eq.s32.totalorder %s39, 1
      %p208 = por %p206, %p207
      %p210 = scmp.ne.s32.totalorder %s195, %s209
      %p211 = scmp.eq.s32.totalorder %s39, 0
      %p212 = por %p210, %p211
      %s214 = sadd.s32 %s213, 1
      %p217 = scmp.eq.s32.totalorder %s33, 1
      %p218 = scmp.ne.s32.totalorder %s213, %s215
      %p219 = scmp.eq.s32.totalorder %s33, 0
      %p220 = por %p218, %p219
      %p221 = scmp.ne.s32.totalorder %s213, %s215
      %p222 = scmp.eq.s32.totalorder %s38, 1
      %p223 = por %p221, %p222
      %p224 = scmp.ne.s32.totalorder %s215, %s216
      %p225 = scmp.eq.s32.totalorder %s38, 0
      %p226 = por %p224, %p225
      %p227 = scmp.ne.s32.totalorder %s215, %s216
      %p228 = scmp.eq.s32.totalorder %s39, 1
      %p229 = por %p227, %p228
      %p231 = scmp.ne.s32.totalorder %s216, %s230
      %p232 = scmp.eq.s32.totalorder %s39, 0
      %p233 = por %p231, %p232
      %s235 = sadd.s32 %s234, 1
      %p238 = scmp.eq.s32.totalorder %s33, 1
      %p239 = scmp.ne.s32.totalorder %s234, %s236
      %p240 = scmp.eq.s32.totalorder %s33, 0
      %p241 = por %p239, %p240
      %p242 = scmp.ne.s32.totalorder %s234, %s236
      %p243 = scmp.eq.s32.totalorder %s38, 1
      %p244 = por %p242, %p243
      %p245 = scmp.ne.s32.totalorder %s236, %s237
      %p246 = scmp.eq.s32.totalorder %s38, 0
      %p247 = por %p245, %p246
      %p248 = scmp.ne.s32.totalorder %s236, %s237
      %p249 = scmp.eq.s32.totalorder %s39, 1
      %p250 = por %p248, %p249
      %p252 = scmp.ne.s32.totalorder %s237, %s251
      %p253 = scmp.eq.s32.totalorder %s39, 0
      %p254 = por %p252, %p253
      %s256 = sadd.s32 %s255, 1
      %p259 = scmp.eq.s32.totalorder %s33, 1
      %p260 = scmp.ne.s32.totalorder %s255, %s257
      %p261 = scmp.eq.s32.totalorder %s33, 0
      %p262 = por %p260, %p261
      %p263 = scmp.ne.s32.totalorder %s255, %s257
      %p264 = scmp.eq.s32.totalorder %s38, 1
      %p265 = por %p263, %p264
      %p266 = scmp.ne.s32.totalorder %s257, %s258
      %p267 = scmp.eq.s32.totalorder %s38, 0
      %p268 = por %p266, %p267
      %p269 = scmp.ne.s32.totalorder %s257, %s258
      %p270 = scmp.eq.s32.totalorder %s39, 1
      %p271 = por %p269, %p270
      %p273 = scmp.ne.s32.totalorder %s258, %s272
      %p274 = scmp.eq.s32.totalorder %s39, 0
      %p275 = por %p273, %p274
      %s277 = sadd.s32 %s276, 1
      %p280 = scmp.eq.s32.totalorder %s33, 1
      %p281 = scmp.ne.s32.totalorder %s276, %s278
      %p282 = scmp.eq.s32.totalorder %s33, 0
      %p283 = por %p281, %p282
      %p284 = scmp.ne.s32.totalorder %s276, %s278
      %p285 = scmp.eq.s32.totalorder %s38, 1
      %p286 = por %p284, %p285
      %p287 = scmp.ne.s32.totalorder %s278, %s279
      %p288 = scmp.eq.s32.totalorder %s38, 0
      %p289 = por %p287, %p288
      %p290 = scmp.ne.s32.totalorder %s278, %s279
      %p291 = scmp.eq.s32.totalorder %s39, 1
      %p292 = por %p290, %p291
      %p294 = scmp.ne.s32.totalorder %s279, %s293
      %p295 = scmp.eq.s32.totalorder %s39, 0
      %p296 = por %p294, %p295
      %s298 = sadd.s32 %s297, 1
      %p301 = scmp.eq.s32.totalorder %s33, 1
      %p302 = scmp.ne.s32.totalorder %s297, %s299
      %p303 = scmp.eq.s32.totalorder %s33, 0
      %p304 = por %p302, %p303
      %p305 = scmp.ne.s32.totalorder %s297, %s299
      %p306 = scmp.eq.s32.totalorder %s38, 1
      %p307 = por %p305, %p306
      %p308 = scmp.ne.s32.totalorder %s299, %s300
      %p309 = scmp.eq.s32.totalorder %s38, 0
      %p310 = por %p308, %p309
      %p311 = scmp.ne.s32.totalorder %s299, %s300
      %p312 = scmp.eq.s32.totalorder %s39, 1
      %p313 = por %p311, %p312
      %p315 = scmp.ne.s32.totalorder %s300, %s314
      %p316 = scmp.eq.s32.totalorder %s39, 0
      %p317 = por %p315, %p316
      %s319 = sadd.s32 %s318, 1
      %p322 = scmp.eq.s32.totalorder %s33, 1
      %p323 = scmp.ne.s32.totalorder %s318, %s320
      %p324 = scmp.eq.s32.totalorder %s33, 0
      %p325 = por %p323, %p324
      %p326 = scmp.ne.s32.totalorder %s318, %s320
      %p327 = scmp.eq.s32.totalorder %s38, 1
      %p328 = por %p326, %p327
      %p329 = scmp.ne.s32.totalorder %s320, %s321
      %p330 = scmp.eq.s32.totalorder %s38, 0
      %p331 = por %p329, %p330
      %p332 = scmp.ne.s32.totalorder %s320, %s321
      %p333 = scmp.eq.s32.totalorder %s39, 1
      %p334 = por %p332, %p333
      %p336 = scmp.ne.s32.totalorder %s321, %s335
      %p337 = scmp.eq.s32.totalorder %s39, 0
      %p338 = por %p336, %p337
      %s340 = sadd.s32 %s339, 1
      %p343 = scmp.eq.s32.totalorder %s33, 1
      %p344 = scmp.ne.s32.totalorder %s339, %s341
      %p345 = scmp.eq.s32.totalorder %s33, 0
      %p346 = por %p344, %p345
      %p347 = scmp.ne.s32.totalorder %s339, %s341
      %p348 = scmp.eq.s32.totalorder %s38, 1
      %p349 = por %p347, %p348
      %p350 = scmp.ne.s32.totalorder %s341, %s342
      %p351 = scmp.eq.s32.totalorder %s38, 0
      %p352 = por %p350, %p351
      %p353 = scmp.ne.s32.totalorder %s341, %s342
      %p354 = scmp.eq.s32.totalorder %s39, 1
      %p355 = por %p353, %p354
      %p357 = scmp.ne.s32.totalorder %s342, %s356
      %p358 = scmp.eq.s32.totalorder %s39, 0
      %p359 = por %p357, %p358
      %s361 = sadd.s32 %s360, 1
      %p364 = scmp.eq.s32.totalorder %s33, 1
      %p365 = scmp.ne.s32.totalorder %s360, %s362
      %p366 = scmp.eq.s32.totalorder %s33, 0
      %p367 = por %p365, %p366
      %p368 = scmp.ne.s32.totalorder %s360, %s362
      %p369 = scmp.eq.s32.totalorder %s38, 1
      %p370 = por %p368, %p369
      %p371 = scmp.ne.s32.totalorder %s362, %s363
      %p372 = scmp.eq.s32.totalorder %s38, 0
      %p373 = por %p371, %p372
      %p374 = scmp.ne.s32.totalorder %s362, %s363
      %p375 = scmp.eq.s32.totalorder %s39, 1
      %p376 = por %p374, %p375
      %p378 = scmp.ne.s32.totalorder %s363, %s377
      %p379 = scmp.eq.s32.totalorder %s39, 0
      %p380 = por %p378, %p379
      %s382 = sadd.s32 %s381, 1
      %p385 = scmp.eq.s32.totalorder %s33, 1
      %p386 = scmp.ne.s32.totalorder %s381, %s383
      %p387 = scmp.eq.s32.totalorder %s33, 0
      %p388 = por %p386, %p387
      %p389 = scmp.ne.s32.totalorder %s381, %s383
      %p390 = scmp.eq.s32.totalorder %s38, 1
      %p391 = por %p389, %p390
      %p392 = scmp.ne.s32.totalorder %s383, %s384
      %p393 = scmp.eq.s32.totalorder %s38, 0
      %p394 = por %p392, %p393
      %p395 = scmp.ne.s32.totalorder %s383, %s384
      %p396 = scmp.eq.s32.totalorder %s39, 1
      %p397 = por %p395, %p396
      %p399 = scmp.ne.s32.totalorder %s384, %s398
      %p400 = scmp.eq.s32.totalorder %s39, 0
      %p401 = por %p399, %p400
      %s403 = sadd.s32 %s402, 1
      %p406 = scmp.eq.s32.totalorder %s33, 1
      %p407 = scmp.ne.s32.totalorder %s402, %s404
      %p408 = scmp.eq.s32.totalorder %s33, 0
      %p409 = por %p407, %p408
      %p410 = scmp.ne.s32.totalorder %s402, %s404
      %p411 = scmp.eq.s32.totalorder %s38, 1
      %p412 = por %p410, %p411
      %p413 = scmp.ne.s32.totalorder %s404, %s405
      %p414 = scmp.eq.s32.totalorder %s38, 0
      %p415 = por %p413, %p414
      %p416 = scmp.ne.s32.totalorder %s404, %s405
      %p417 = scmp.eq.s32.totalorder %s39, 1
      %p418 = por %p416, %p417
      %p420 = scmp.ne.s32.totalorder %s405, %s419
      %p421 = scmp.eq.s32.totalorder %s39, 0
      %p422 = por %p420, %p421
      %s424 = sadd.s32 %s423, 1
      %p427 = scmp.eq.s32.totalorder %s33, 1
      %p428 = scmp.ne.s32.totalorder %s423, %s425
      %p429 = scmp.eq.s32.totalorder %s33, 0
      %p430 = por %p428, %p429
      %p431 = scmp.ne.s32.totalorder %s423, %s425
      %p432 = scmp.eq.s32.totalorder %s38, 1
      %p433 = por %p431, %p432
      %p434 = scmp.ne.s32.totalorder %s425, %s426
      %p435 = scmp.eq.s32.totalorder %s38, 0
      %p436 = por %p434, %p435
      %p437 = scmp.ne.s32.totalorder %s425, %s426
      %p438 = scmp.eq.s32.totalorder %s39, 1
      %p439 = por %p437, %p438
      %p441 = scmp.ne.s32.totalorder %s426, %s440
      %p442 = scmp.eq.s32.totalorder %s39, 0
      %p443 = por %p441, %p442
      %s444 = ssub.s32 %s33, %s40
      %p445 = scmp.eq.s32.totalorder %s444, 0
      %s447 = sadd.s32 %s446, 1
      %s448 = scalar_select %p445, %s446, %s447
      %p451 = pneg %p445
      %p452 = scmp.eq.s32.totalorder %s33, 1
      %p453 = por %p451, %p452
      %p454 = scmp.ne.s32.totalorder %s446, %s449
      %p455 = scmp.eq.s32.totalorder %s33, 0
      %p456 = por %p454, %p455
      %p457 = scmp.ne.s32.totalorder %s446, %s449
      %p458 = scmp.eq.s32.totalorder %s38, 1
      %p459 = por %p457, %p458
      %p460 = scmp.ne.s32.totalorder %s449, %s450
      %p461 = scmp.eq.s32.totalorder %s38, 0
      %p462 = por %p460, %p461
      %p463 = scmp.ne.s32.totalorder %s449, %s450
      %p464 = scmp.eq.s32.totalorder %s39, 1
      %p465 = por %p463, %p464
      %p467 = scmp.ne.s32.totalorder %s450, %s466
      %p468 = scmp.eq.s32.totalorder %s39, 0
      %p469 = por %p467, %p468
      %s470 = ssub.s32 %s33, %s40
      %p471 = scmp.eq.s32.totalorder %s470, 0
      %s473 = sadd.s32 %s472, 1
      %s474 = scalar_select %p471, %s472, %s473
      %p477 = pneg %p471
      %p478 = scmp.eq.s32.totalorder %s33, 1
      %p479 = por %p477, %p478
      %p480 = scmp.ne.s32.totalorder %s472, %s475
      %p481 = scmp.eq.s32.totalorder %s33, 0
      %p482 = por %p480, %p481
      %p483 = scmp.ne.s32.totalorder %s472, %s475
      %p484 = scmp.eq.s32.totalorder %s38, 1
      %p485 = por %p483, %p484
      %p486 = scmp.ne.s32.totalorder %s475, %s476
      %p487 = scmp.eq.s32.totalorder %s38, 0
      %p488 = por %p486, %p487
      %p489 = scmp.ne.s32.totalorder %s475, %s476
      %p490 = scmp.eq.s32.totalorder %s39, 1
      %p491 = por %p489, %p490
      %p493 = scmp.ne.s32.totalorder %s476, %s492
      %p494 = scmp.eq.s32.totalorder %s39, 0
      %p495 = por %p493, %p494
      %s496 = ssub.s32 %s33, %s40
      %p497 = scmp.eq.s32.totalorder %s496, 0
      %s499 = sadd.s32 %s498, 1
      %s500 = scalar_select %p497, %s498, %s499
      %p503 = pneg %p497
      %p504 = scmp.eq.s32.totalorder %s33, 1
      %p505 = por %p503, %p504
      %p506 = scmp.ne.s32.totalorder %s498, %s501
      %p507 = scmp.eq.s32.totalorder %s33, 0
      %p508 = por %p506, %p507
      %p509 = scmp.ne.s32.totalorder %s498, %s501
      %p510 = scmp.eq.s32.totalorder %s38, 1
      %p511 = por %p509, %p510
      %p512 = scmp.ne.s32.totalorder %s501, %s502
      %p513 = scmp.eq.s32.totalorder %s38, 0
      %p514 = por %p512, %p513
      %p515 = scmp.ne.s32.totalorder %s501, %s502
      %p516 = scmp.eq.s32.totalorder %s39, 1
      %p517 = por %p515, %p516
      %p519 = scmp.ne.s32.totalorder %s502, %s518
      %p520 = scmp.eq.s32.totalorder %s39, 0
      %p521 = por %p519, %p520
      %p522 = scmp.le.s32.totalorder 1, %s33
      %p523 = scmp.lt.s32.totalorder %s33, 3
      %p524 = pnand %p522, %p523
      %p525 = pneg %p524
      // Predicated region
      $region9: #{decoder_layer_forward.1} parent=5 // pred_check
        _
      $region10: #{decoder_layer_forward.1} parent=5 // pred_check_branch
        %527 = sbr.rel (%p524) target = $region12
      $region11: #{decoder_layer_forward.1} parent=5 // pred_region
        %s528 = ssub.s32 %s33, 1
        // Predicated region
        $region13: #{decoder_layer_forward.1} parent=11 // pred_check
          %p529 = pneg %p184
        $region14: #{decoder_layer_forward.1} parent=11 // pred_check_branch
          %531 = sbr.rel (%p529) target = $region16
        $region15: #{decoder_layer_forward.1} parent=11 // pred_region
          _
        $region16: #{decoder_layer_forward.1} parent=11 // pred_fallthru
          _
        // Predicated region
        $region17: #{decoder_layer_forward.1} parent=11 // pred_check
          %p532 = pneg %p205
        $region18: #{decoder_layer_forward.1} parent=11 // pred_check_branch
          %534 = sbr.rel (%p532) target = $region20
        $region19: #{decoder_layer_forward.1} parent=11 // pred_region
          _
        $region20: #{decoder_layer_forward.1} parent=11 // pred_fallthru
          _
        // Predicated region
        $region21: #{decoder_layer_forward.1} parent=11 // pred_check
          %p535 = pneg %p226
        $region22: #{decoder_layer_forward.1} parent=11 // pred_check_branch
          %537 = sbr.rel (%p535) target = $region24
        $region23: #{decoder_layer_forward.1} parent=11 // pred_region
          _
        $region24: #{decoder_layer_forward.1} parent=11 // pred_fallthru
          _
        // Predicated region
        $region25: #{decoder_layer_forward.1} parent=11 // pred_check
          %p538 = pneg %p247
        $region26: #{decoder_layer_forward.1} parent=11 // pred_check_branch
          %540 = sbr.rel (%p538) target = $region28
        $region27: #{decoder_layer_forward.1} parent=11 // pred_region
          _
        $region28: #{decoder_layer_forward.1} parent=11 // pred_fallthru
          _
        // Predicated region
        $region29: #{decoder_layer_forward.1} parent=11 // pred_check
          %p541 = pneg %p268
        $region30: #{decoder_layer_forward.1} parent=11 // pred_check_branch
          %543 = sbr.rel (%p541) target = $region32
        $region31: #{decoder_layer_forward.1} parent=11 // pred_region
          _
        $region32: #{decoder_layer_forward.1} parent=11 // pred_fallthru
          _
        // Predicated region
        $region33: #{decoder_layer_forward.1} parent=11 // pred_check
          %p544 = pneg %p289
        $region34: #{decoder_layer_forward.1} parent=11 // pred_check_branch
          %546 = sbr.rel (%p544) target = $region36
        $region35: #{decoder_layer_forward.1} parent=11 // pred_region
          _
        $region36: #{decoder_layer_forward.1} parent=11 // pred_fallthru
          _
        // Predicated region
        $region37: #{decoder_layer_forward.1} parent=11 // pred_check
          %p547 = pneg %p310
        $region38: #{decoder_layer_forward.1} parent=11 // pred_check_branch
          %549 = sbr.rel (%p547) target = $region40
        $region39: #{decoder_layer_forward.1} parent=11 // pred_region
          _
        $region40: #{decoder_layer_forward.1} parent=11 // pred_fallthru
          _
        // Predicated region
        $region41: #{decoder_layer_forward.1} parent=11 // pred_check
          %p550 = pneg %p331
        $region42: #{decoder_layer_forward.1} parent=11 // pred_check_branch
          %552 = sbr.rel (%p550) target = $region44
        $region43: #{decoder_layer_forward.1} parent=11 // pred_region
          _
        $region44: #{decoder_layer_forward.1} parent=11 // pred_fallthru
          _
        // Predicated region
        $region45: #{decoder_layer_forward.1} parent=11 // pred_check
          %p553 = pneg %p352
        $region46: #{decoder_layer_forward.1} parent=11 // pred_check_branch
          %555 = sbr.rel (%p553) target = $region48
        $region47: #{decoder_layer_forward.1} parent=11 // pred_region
          _
        $region48: #{decoder_layer_forward.1} parent=11 // pred_fallthru
          _
        // Predicated region
        $region49: #{decoder_layer_forward.1} parent=11 // pred_check
          %p556 = pneg %p373
        $region50: #{decoder_layer_forward.1} parent=11 // pred_check_branch
          %558 = sbr.rel (%p556) target = $region52
        $region51: #{decoder_layer_forward.1} parent=11 // pred_region
          _
        $region52: #{decoder_layer_forward.1} parent=11 // pred_fallthru
          _
        // Predicated region
        $region53: #{decoder_layer_forward.1} parent=11 // pred_check
          %p559 = pneg %p394
        $region54: #{decoder_layer_forward.1} parent=11 // pred_check_branch
          %561 = sbr.rel (%p559) target = $region56
        $region55: #{decoder_layer_forward.1} parent=11 // pred_region
          _
        $region56: #{decoder_layer_forward.1} parent=11 // pred_fallthru
          _
        // Predicated region
        $region57: #{decoder_layer_forward.1} parent=11 // pred_check
          %p562 = pneg %p415
        $region58: #{decoder_layer_forward.1} parent=11 // pred_check_branch
          %564 = sbr.rel (%p562) target = $region60
        $region59: #{decoder_layer_forward.1} parent=11 // pred_region
          _
        $region60: #{decoder_layer_forward.1} parent=11 // pred_fallthru
          _
        // Predicated region
        $region61: #{decoder_layer_forward.1} parent=11 // pred_check
          %p565 = pneg %p436
        $region62: #{decoder_layer_forward.1} parent=11 // pred_check_branch
          %567 = sbr.rel (%p565) target = $region64
        $region63: #{decoder_layer_forward.1} parent=11 // pred_region
          _
        $region64: #{decoder_layer_forward.1} parent=11 // pred_fallthru
          _
      $region12: #{decoder_layer_forward.1} parent=5 // pred_fallthru
        _
      %p568 = scmp.lt.s32.totalorder %s33, 2
      // Predicated region
      $region65: #{decoder_layer_forward.1} parent=5 // pred_check
        %p569 = pneg %p568
      $region66: #{decoder_layer_forward.1} parent=5 // pred_check_branch
        %571 = sbr.rel (%p569) target = $region68
      $region67: #{decoder_layer_forward.1} parent=5 // pred_region
        // Predicated region
        $region69: #{decoder_layer_forward.1} parent=67 // pred_check
          %p572 = pneg %p53
        $region70: #{decoder_layer_forward.1} parent=67 // pred_check_branch
          %574 = sbr.rel (%p572) target = $region72
        $region71: #{decoder_layer_forward.1} parent=67 // pred_region
          %p575 = scmp.lt.s32.totalorder %s33, 1
          %s576 = scalar_select %p575, %s33, 1
          %s577 = smul.addr %s576, 8
          %s578 = scalar_lea.vmem %s0, %s577
        $region72: #{decoder_layer_forward.1} parent=67 // pred_fallthru
          _
        // Predicated region
        $region73: #{decoder_layer_forward.1} parent=67 // pred_check
          %p579 = pneg %p79
        $region74: #{decoder_layer_forward.1} parent=67 // pred_check_branch
          %581 = sbr.rel (%p579) target = $region76
        $region75: #{decoder_layer_forward.1} parent=67 // pred_region
          %p582 = scmp.lt.s32.totalorder %s33, 1
          %s583 = scalar_select %p582, %s33, 1
          %s584 = smul.addr %s583, 8
          %s585 = scalar_lea.vmem %s1, %s584
        $region76: #{decoder_layer_forward.1} parent=67 // pred_fallthru
          _
        // Predicated region
        $region77: #{decoder_layer_forward.1} parent=67 // pred_check
          %p586 = pneg %p105
        $region78: #{decoder_layer_forward.1} parent=67 // pred_check_branch
          %588 = sbr.rel (%p586) target = $region80
        $region79: #{decoder_layer_forward.1} parent=67 // pred_region
          %p589 = scmp.lt.s32.totalorder %s33, 1
          %s590 = scalar_select %p589, %s33, 1
          %s591 = smul.addr %s590, 2
          %s592 = smul.addr %s591, 8
          %s593 = scalar_lea.vmem %s2, %s592
        $region80: #{decoder_layer_forward.1} parent=67 // pred_fallthru
          _
        // Predicated region
        $region81: #{decoder_layer_forward.1} parent=67 // pred_check
          %p594 = pneg %p131
        $region82: #{decoder_layer_forward.1} parent=67 // pred_check_branch
          %596 = sbr.rel (%p594) target = $region84
        $region83: #{decoder_layer_forward.1} parent=67 // pred_region
          %p597 = scmp.lt.s32.totalorder %s33, 1
          %s598 = scalar_select %p597, %s33, 1
          %s599 = smul.addr %s598, 8
          %s600 = scalar_lea.vmem %s3, %s599
        $region84: #{decoder_layer_forward.1} parent=67 // pred_fallthru
          _
        // Predicated region
        $region85: #{decoder_layer_forward.1} parent=67 // pred_check
          %p601 = pneg %p157
        $region86: #{decoder_layer_forward.1} parent=67 // pred_check_branch
          %603 = sbr.rel (%p601) target = $region88
        $region87: #{decoder_layer_forward.1} parent=67 // pred_region
          %p604 = scmp.lt.s32.totalorder %s33, 1
          %s605 = scalar_select %p604, %s33, 1
          %s606 = smul.addr %s605, 8
          %s607 = scalar_lea.vmem %s4, %s606
        $region88: #{decoder_layer_forward.1} parent=67 // pred_fallthru
          _
      $region68: #{decoder_layer_forward.1} parent=5 // pred_fallthru
        _
      %p608 = scmp.le.s32.totalorder 1, %s33
      %p609 = scmp.lt.s32.totalorder %s33, 3
      %p610 = pnand %p608, %p609
      %p611 = pneg %p610
      // Predicated region
      $region89: #{decoder_layer_forward.1} parent=5 // pred_check
        _
      $region90: #{decoder_layer_forward.1} parent=5 // pred_check_branch
        %613 = sbr.rel (%p610) target = $region92
      $region91: #{decoder_layer_forward.1} parent=5 // pred_region
        %s614 = ssub.s32 %s33, 1
        %p615 = scmp.lt.s32.totalorder %s38, 1
        %s616 = scalar_select %p615, %s38, 1
        %s617 = smul.addr %s616, 8
        %s618 = scalar_lea.vmem %s0, %s617
        %p619 = pneg %p59
        %p620 = pneg %p56
        %p621 = scmp.lt.s32.totalorder %s38, 1
        %s622 = scalar_select %p621, %s38, 1
        %s623 = smul.addr %s622, 8
        %s624 = scalar_lea.vmem %s1, %s623
        %p625 = pneg %p85
        %p626 = pneg %p82
        %p627 = scmp.lt.s32.totalorder %s38, 1
        %s628 = scalar_select %p627, %s38, 1
        %s629 = smul.addr %s628, 2
        %s630 = smul.addr %s629, 8
        %s631 = scalar_lea.vmem %s2, %s630
        %p632 = pneg %p111
        %p633 = pneg %p108
        %p634 = scmp.lt.s32.totalorder %s38, 1
        %s635 = scalar_select %p634, %s38, 1
        %s636 = smul.addr %s635, 8
        %s637 = scalar_lea.vmem %s3, %s636
        %p638 = pneg %p137
        %p639 = pneg %p134
        %p640 = scmp.lt.s32.totalorder %s38, 1
        %s641 = scalar_select %p640, %s38, 1
        %s642 = smul.addr %s641, 8
        %s643 = scalar_lea.vmem %s4, %s642
        %p644 = pneg %p163
        %p645 = pneg %p160
        %p646 = pneg %p184
        %p647 = pneg %p181
        %p648 = pneg %p205
        %p649 = pneg %p202
        %p650 = pneg %p226
        %p651 = pneg %p223
        %p652 = pneg %p247
        %p653 = pneg %p244
        %p654 = pneg %p268
        %p655 = pneg %p265
        %p656 = pneg %p289
        %p657 = pneg %p286
        %p658 = pneg %p310
        %p659 = pneg %p307
        %p660 = pneg %p331
        %p661 = pneg %p328
        %p662 = pneg %p352
        %p663 = pneg %p349
        %p664 = pneg %p373
        %p665 = pneg %p370
        %p666 = pneg %p394
        %p667 = pneg %p391
        %p668 = pneg %p415
        %p669 = pneg %p412
        %p670 = pneg %p436
        %p671 = pneg %p433
        %p672 = pneg %p462
        %p673 = pneg %p459
        %s674 = sand.u32 %s449, 1
        %s675 = scalar_lea.sflag [#allocation3], %s674
        %s676 = sand.u32 %s449, 1
        %s677 = smul.addr %s676, 8
        %s678 = scalar_lea.vmem [#allocation2], %s677
        %p679 = pneg %p488
        %p680 = pneg %p485
        %s681 = sand.u32 %s38, 1
        %s682 = scalar_lea.sflag [#allocation5], %s681
        %s683 = sand.u32 %s475, 1
        %s684 = smul.addr %s683, 16
        %s685 = scalar_lea.vmem [#allocation4], %s684
        %p686 = pneg %p514
        %p687 = pneg %p511
        %s688 = sand.u32 %s38, 1
        %s689 = scalar_lea.sflag [#allocation5], %s688
        %s690 = sand.u32 %s501, 1
        %s691 = smul.addr %s690, 16
        %s692 = scalar_lea.vmem [#allocation6], %s691
        %p693 = scmp.lt.s32.totalorder %s38, 1
        %s694 = scalar_select %p693, %s38, 1
        %s695 = smul.addr %s694, 8
        %s696 = scalar_lea.vmem %s0, %s695
        %p697 = scmp.lt.s32.totalorder %s38, 1
        %s698 = scalar_select %p697, %s38, 1
        %s699 = smul.addr %s698, 8
        %s700 = scalar_lea.vmem %s1, %s699
        %p701 = scmp.lt.s32.totalorder %s38, 1
        %s702 = scalar_select %p701, %s38, 1
        %s703 = smul.addr %s702, 2
        %s704 = smul.addr %s703, 8
        %s705 = scalar_lea.vmem %s2, %s704
        %p706 = scmp.lt.s32.totalorder %s38, 1
        %s707 = scalar_select %p706, %s38, 1
        %s708 = smul.addr %s707, 8
        %s709 = scalar_lea.vmem %s3, %s708
        %p710 = scmp.lt.s32.totalorder %s38, 1
        %s711 = scalar_select %p710, %s38, 1
        %s712 = smul.addr %s711, 8
        %s713 = scalar_lea.vmem %s4, %s712
        %v714 = vld [vmem:[%s696] sm:$0xff]
        %v715 = vld [vmem:[%s700] sm:$0xff]
        %v716 = vld [vmem:[%s705] sm:$0xff]
        %v717 = vld [vmem:[%s705 + $0x8] sm:$0xff]
        %v718 = vld [vmem:[%s709] sm:$0xff]
        %v719 = vld [vmem:[%s713] sm:$0xff]
        %v720 = vld [vmem:[%s17] sm:$0x1]
        %v721 = vld [vmem:[%s15] sm:$0x7]
        %v722 = vld [vmem:[%s16] sm:$0x7]
        %v723 = vld [vmem:[%s5] sm:$0xff]
        %v724 = vld [vmem:[%s5 + $0x8] sm:$0xff]
        %v725 = vld [vmem:[%s5 + $0x10] sm:$0xff]
        %v726 = vld [vmem:[%s5 + $0x18] sm:$0xff]
        %v727 = vld [vmem:[%s5 + $0x20] sm:$0xff]
        %v728 = vld [vmem:[%s5 + $0x28] sm:$0xff]
        %v729 = vld [vmem:[%s5 + $0x30] sm:$0xff]
        %v730 = vld [vmem:[%s5 + $0x38] sm:$0xff]
        %v731 = vld [vmem:[%s5 + $0x40] sm:$0xff]
        %v732 = vld [vmem:[%s5 + $0x48] sm:$0xff]
        %v733 = vld [vmem:[%s5 + $0x50] sm:$0xff]
        %v734 = vld [vmem:[%s5 + $0x58] sm:$0xff]
        %v735 = vld [vmem:[%s5 + $0x60] sm:$0xff]
        %v736 = vld [vmem:[%s5 + $0x68] sm:$0xff]
        %v737 = vld [vmem:[%s5 + $0x70] sm:$0xff]
        %v738 = vld [vmem:[%s5 + $0x78] sm:$0xff]
        %v739 = vld [vmem:[%s5 + $0x80] sm:$0xff]
        %v740 = vld [vmem:[%s5 + $0x88] sm:$0xff]
        %v741 = vld [vmem:[%s5 + $0x90] sm:$0xff]
        %v742 = vld [vmem:[%s5 + $0x98] sm:$0xff]
        %v743 = vld [vmem:[%s5 + $0xa0] sm:$0xff]
        %v744 = vld [vmem:[%s5 + $0xa8] sm:$0xff]
        %v745 = vld [vmem:[%s5 + $0xb0] sm:$0xff]
        %v746 = vld [vmem:[%s5 + $0xb8] sm:$0xff]
        %v747 = vld [vmem:[%s5 + $0xc0] sm:$0xff]
        %v748 = vld [vmem:[%s5 + $0xc8] sm:$0xff]
        %v749 = vld [vmem:[%s5 + $0xd0] sm:$0xff]
        %v750 = vld [vmem:[%s5 + $0xd8] sm:$0xff]
        %v751 = vld [vmem:[%s5 + $0xe0] sm:$0xff]
        %v752 = vld [vmem:[%s5 + $0xe8] sm:$0xff]
        %v753 = vld [vmem:[%s5 + $0xf0] sm:$0xff]
        %v754 = vld [vmem:[%s5 + $0xf8] sm:$0xff]
        %v755 = vld [vmem:[%s5 + $0x100] sm:$0xff]
        %v756 = vld [vmem:[%s5 + $0x108] sm:$0xff]
        %v757 = vld [vmem:[%s5 + $0x110] sm:$0xff]
        %v758 = vld [vmem:[%s5 + $0x118] sm:$0xff]
        %v759 = vld [vmem:[%s5 + $0x120] sm:$0xff]
        %v760 = vld [vmem:[%s5 + $0x128] sm:$0xff]
        %v761 = vld [vmem:[%s5 + $0x130] sm:$0xff]
        %v762 = vld [vmem:[%s5 + $0x138] sm:$0xff]
        %v763 = vld [vmem:[%s5 + $0x140] sm:$0xff]
        %v764 = vld [vmem:[%s5 + $0x148] sm:$0xff]
        %v765 = vld [vmem:[%s5 + $0x150] sm:$0xff]
        %v766 = vld [vmem:[%s5 + $0x158] sm:$0xff]
        %v767 = vld [vmem:[%s5 + $0x160] sm:$0xff]
        %v768 = vld [vmem:[%s5 + $0x168] sm:$0xff]
        %v769 = vld [vmem:[%s5 + $0x170] sm:$0xff]
        %v770 = vld [vmem:[%s5 + $0x178] sm:$0xff]
        %v771 = vld [vmem:[%s5 + $0x180] sm:$0xff]
        %v772 = vld [vmem:[%s5 + $0x188] sm:$0xff]
        %v773 = vld [vmem:[%s5 + $0x190] sm:$0xff]
        %v774 = vld [vmem:[%s5 + $0x198] sm:$0xff]
        %v775 = vld [vmem:[%s5 + $0x1a0] sm:$0xff]
        %v776 = vld [vmem:[%s5 + $0x1a8] sm:$0xff]
        %v777 = vld [vmem:[%s5 + $0x1b0] sm:$0xff]
        %v778 = vld [vmem:[%s5 + $0x1b8] sm:$0xff]
        %v779 = vld [vmem:[%s5 + $0x1c0] sm:$0xff]
        %v780 = vld [vmem:[%s5 + $0x1c8] sm:$0xff]
        %v781 = vld [vmem:[%s5 + $0x1d0] sm:$0xff]
        %v782 = vld [vmem:[%s5 + $0x1d8] sm:$0xff]
        %v783 = vld [vmem:[%s5 + $0x1e0] sm:$0xff]
        %v784 = vld [vmem:[%s5 + $0x1e8] sm:$0xff]
        %v785 = vld [vmem:[%s5 + $0x1f0] sm:$0xff]
        %v786 = vld [vmem:[%s5 + $0x1f8] sm:$0xff]
        %v787 = vld [vmem:[%s5 + $0x200] sm:$0xff]
        %v788 = vld [vmem:[%s5 + $0x208] sm:$0xff]
        %v789 = vld [vmem:[%s5 + $0x210] sm:$0xff]
        %v790 = vld [vmem:[%s5 + $0x218] sm:$0xff]
        %v791 = vld [vmem:[%s5 + $0x220] sm:$0xff]
        %v792 = vld [vmem:[%s5 + $0x228] sm:$0xff]
        %v793 = vld [vmem:[%s5 + $0x230] sm:$0xff]
        %v794 = vld [vmem:[%s5 + $0x238] sm:$0xff]
        %v795 = vld [vmem:[%s5 + $0x240] sm:$0xff]
        %v796 = vld [vmem:[%s5 + $0x248] sm:$0xff]
        %v797 = vld [vmem:[%s5 + $0x250] sm:$0xff]
        %v798 = vld [vmem:[%s5 + $0x258] sm:$0xff]
        %v799 = vld [vmem:[%s5 + $0x260] sm:$0xff]
        %v800 = vld [vmem:[%s5 + $0x268] sm:$0xff]
        %v801 = vld [vmem:[%s5 + $0x270] sm:$0xff]
        %v802 = vld [vmem:[%s5 + $0x278] sm:$0xff]
        %v803 = vld [vmem:[%s5 + $0x280] sm:$0xff]
        %v804 = vld [vmem:[%s5 + $0x288] sm:$0xff]
        %v805 = vld [vmem:[%s5 + $0x290] sm:$0xff]
        %v806 = vld [vmem:[%s5 + $0x298] sm:$0xff]
        %v807 = vld [vmem:[%s5 + $0x2a0] sm:$0xff]
        %v808 = vld [vmem:[%s5 + $0x2a8] sm:$0xff]
        %v809 = vld [vmem:[%s5 + $0x2b0] sm:$0xff]
        %v810 = vld [vmem:[%s5 + $0x2b8] sm:$0xff]
        %v811 = vld [vmem:[%s5 + $0x2c0] sm:$0xff]
        %v812 = vld [vmem:[%s5 + $0x2c8] sm:$0xff]
        %v813 = vld [vmem:[%s5 + $0x2d0] sm:$0xff]
        %v814 = vld [vmem:[%s5 + $0x2d8] sm:$0xff]
        %v815 = vld [vmem:[%s5 + $0x2e0] sm:$0xff]
        %v816 = vld [vmem:[%s5 + $0x2e8] sm:$0xff]
        %v817 = vld [vmem:[%s5 + $0x2f0] sm:$0xff]
        %v818 = vld [vmem:[%s5 + $0x2f8] sm:$0xff]
        %v819 = vld [vmem:[%s6] sm:$0xff]
        %v820 = vld [vmem:[%s6 + $0x8] sm:$0xff]
        %v821 = vld [vmem:[%s6 + $0x10] sm:$0xff]
        %v822 = vld [vmem:[%s6 + $0x18] sm:$0xff]
        %v823 = vld [vmem:[%s6 + $0x20] sm:$0xff]
        %v824 = vld [vmem:[%s6 + $0x28] sm:$0xff]
        %v825 = vld [vmem:[%s6 + $0x30] sm:$0xff]
        %v826 = vld [vmem:[%s6 + $0x38] sm:$0xff]
        %v827 = vld [vmem:[%s6 + $0x40] sm:$0xff]
        %v828 = vld [vmem:[%s6 + $0x48] sm:$0xff]
        %v829 = vld [vmem:[%s6 + $0x50] sm:$0xff]
        %v830 = vld [vmem:[%s6 + $0x58] sm:$0xff]
        %v831 = vld [vmem:[%s6 + $0x60] sm:$0xff]
        %v832 = vld [vmem:[%s6 + $0x68] sm:$0xff]
        %v833 = vld [vmem:[%s6 + $0x70] sm:$0xff]
        %v834 = vld [vmem:[%s6 + $0x78] sm:$0xff]
        %v835 = vld [vmem:[%s6 + $0x80] sm:$0xff]
        %v836 = vld [vmem:[%s6 + $0x88] sm:$0xff]
        %v837 = vld [vmem:[%s6 + $0x90] sm:$0xff]
        %v838 = vld [vmem:[%s6 + $0x98] sm:$0xff]
        %v839 = vld [vmem:[%s6 + $0xa0] sm:$0xff]
        %v840 = vld [vmem:[%s6 + $0xa8] sm:$0xff]
        %v841 = vld [vmem:[%s6 + $0xb0] sm:$0xff]
        %v842 = vld [vmem:[%s6 + $0xb8] sm:$0xff]
        %v843 = vld [vmem:[%s6 + $0xc0] sm:$0xff]
        %v844 = vld [vmem:[%s6 + $0xc8] sm:$0xff]
        %v845 = vld [vmem:[%s6 + $0xd0] sm:$0xff]
        %v846 = vld [vmem:[%s6 + $0xd8] sm:$0xff]
        %v847 = vld [vmem:[%s6 + $0xe0] sm:$0xff]
        %v848 = vld [vmem:[%s6 + $0xe8] sm:$0xff]
        %v849 = vld [vmem:[%s6 + $0xf0] sm:$0xff]
        %v850 = vld [vmem:[%s6 + $0xf8] sm:$0xff]
        %v851 = vld [vmem:[%s6 + $0x100] sm:$0xff]
        %v852 = vld [vmem:[%s6 + $0x108] sm:$0xff]
        %v853 = vld [vmem:[%s6 + $0x110] sm:$0xff]
        %v854 = vld [vmem:[%s6 + $0x118] sm:$0xff]
        %v855 = vld [vmem:[%s6 + $0x120] sm:$0xff]
        %v856 = vld [vmem:[%s6 + $0x128] sm:$0xff]
        %v857 = vld [vmem:[%s6 + $0x130] sm:$0xff]
        %v858 = vld [vmem:[%s6 + $0x138] sm:$0xff]
        %v859 = vld [vmem:[%s6 + $0x140] sm:$0xff]
        %v860 = vld [vmem:[%s6 + $0x148] sm:$0xff]
        %v861 = vld [vmem:[%s6 + $0x150] sm:$0xff]
        %v862 = vld [vmem:[%s6 + $0x158] sm:$0xff]
        %v863 = vld [vmem:[%s6 + $0x160] sm:$0xff]
        %v864 = vld [vmem:[%s6 + $0x168] sm:$0xff]
        %v865 = vld [vmem:[%s6 + $0x170] sm:$0xff]
        %v866 = vld [vmem:[%s6 + $0x178] sm:$0xff]
        %v867 = vld [vmem:[%s6 + $0x180] sm:$0xff]
        %v868 = vld [vmem:[%s6 + $0x188] sm:$0xff]
        %v869 = vld [vmem:[%s6 + $0x190] sm:$0xff]
        %v870 = vld [vmem:[%s6 + $0x198] sm:$0xff]
        %v871 = vld [vmem:[%s6 + $0x1a0] sm:$0xff]
        %v872 = vld [vmem:[%s6 + $0x1a8] sm:$0xff]
        %v873 = vld [vmem:[%s6 + $0x1b0] sm:$0xff]
        %v874 = vld [vmem:[%s6 + $0x1b8] sm:$0xff]
        %v875 = vld [vmem:[%s6 + $0x1c0] sm:$0xff]
        %v876 = vld [vmem:[%s6 + $0x1c8] sm:$0xff]
        %v877 = vld [vmem:[%s6 + $0x1d0] sm:$0xff]
        %v878 = vld [vmem:[%s6 + $0x1d8] sm:$0xff]
        %v879 = vld [vmem:[%s6 + $0x1e0] sm:$0xff]
        %v880 = vld [vmem:[%s6 + $0x1e8] sm:$0xff]
        %v881 = vld [vmem:[%s6 + $0x1f0] sm:$0xff]
        %v882 = vld [vmem:[%s6 + $0x1f8] sm:$0xff]
        %v883 = vld [vmem:[%s6 + $0x200] sm:$0xff]
        %v884 = vld [vmem:[%s6 + $0x208] sm:$0xff]
        %v885 = vld [vmem:[%s6 + $0x210] sm:$0xff]
        %v886 = vld [vmem:[%s6 + $0x218] sm:$0xff]
        %v887 = vld [vmem:[%s6 + $0x220] sm:$0xff]
        %v888 = vld [vmem:[%s6 + $0x228] sm:$0xff]
        %v889 = vld [vmem:[%s6 + $0x230] sm:$0xff]
        %v890 = vld [vmem:[%s6 + $0x238] sm:$0xff]
        %v891 = vld [vmem:[%s6 + $0x240] sm:$0xff]
        %v892 = vld [vmem:[%s6 + $0x248] sm:$0xff]
        %v893 = vld [vmem:[%s6 + $0x250] sm:$0xff]
        %v894 = vld [vmem:[%s6 + $0x258] sm:$0xff]
        %v895 = vld [vmem:[%s6 + $0x260] sm:$0xff]
        %v896 = vld [vmem:[%s6 + $0x268] sm:$0xff]
        %v897 = vld [vmem:[%s6 + $0x270] sm:$0xff]
        %v898 = vld [vmem:[%s6 + $0x278] sm:$0xff]
        %v899 = vld [vmem:[%s6 + $0x280] sm:$0xff]
        %v900 = vld [vmem:[%s6 + $0x288] sm:$0xff]
        %v901 = vld [vmem:[%s6 + $0x290] sm:$0xff]
        %v902 = vld [vmem:[%s6 + $0x298] sm:$0xff]
        %v903 = vld [vmem:[%s6 + $0x2a0] sm:$0xff]
        %v904 = vld [vmem:[%s6 + $0x2a8] sm:$0xff]
        %v905 = vld [vmem:[%s6 + $0x2b0] sm:$0xff]
        %v906 = vld [vmem:[%s6 + $0x2b8] sm:$0xff]
        %v907 = vld [vmem:[%s6 + $0x2c0] sm:$0xff]
        %v908 = vld [vmem:[%s6 + $0x2c8] sm:$0xff]
        %v909 = vld [vmem:[%s6 + $0x2d0] sm:$0xff]
        %v910 = vld [vmem:[%s6 + $0x2d8] sm:$0xff]
        %v911 = vld [vmem:[%s6 + $0x2e0] sm:$0xff]
        %v912 = vld [vmem:[%s6 + $0x2e8] sm:$0xff]
        %v913 = vld [vmem:[%s6 + $0x2f0] sm:$0xff]
        %v914 = vld [vmem:[%s6 + $0x2f8] sm:$0xff]
        %915 = vmatprep.subr.mxu0 %v820
        %916 = vmatpush1.msra.mxu0 %v819
        %917 = vmatprep.subr.mxu0 %v826
        %918 = vmatpush1.msra.mxu0 %v825
        %919 = vmatprep.subr.mxu0 %v832
        %920 = vmatpush1.msra.mxu0 %v831
        %921 = vmatprep.subr.mxu0 %v838
        %922 = vmatpush1.msra.mxu0 %v837
        %923 = vmatprep.subr.mxu0 %v844
        %924 = vmatpush1.msra.mxu0 %v843
        %925 = vmatprep.subr.mxu0 %v850
        %926 = vmatpush1.msra.mxu0 %v849
        %927 = vmatprep.subr.mxu0 %v856
        %928 = vmatpush1.msra.mxu0 %v855
        %929 = vmatprep.subr.mxu0 %v862
        %930 = vmatpush1.msra.mxu0 %v861
        %931 = vmatprep.subr.mxu0 %v868
        %932 = vmatpush1.msra.mxu0 %v867
        %933 = vmatprep.subr.mxu0 %v874
        %934 = vmatpush1.msra.mxu0 %v873
        %935 = vmatprep.subr.mxu0 %v880
        %936 = vmatpush1.msra.mxu0 %v879
        %937 = vmatprep.subr.mxu0 %v886
        %938 = vmatpush1.msra.mxu0 %v885
        %939 = vmatprep.subr.mxu0 %v892
        %940 = vmatpush1.msra.mxu0 %v891
        %941 = vmatprep.subr.mxu0 %v898
        %942 = vmatpush1.msra.mxu0 %v897
        %943 = vmatprep.subr.mxu0 %v904
        %944 = vmatpush1.msra.mxu0 %v903
        %945 = vmatprep.subr.mxu0 %v910
        %946 = vmatpush1.msra.mxu0 %v909
        %947 = vmatprep.subr.mxu0 0.0
        %948 = vmatpush1.msra.mxu0 0.0
        %949 = vmatprep.subr.mxu0 0.0
        %950 = vmatpush1.msra.mxu0 0.0
        %951 = vmatprep.subr.mxu0 0.0
        %952 = vmatpush1.msra.mxu0 0.0
        %953 = vmatprep.subr.mxu0 0.0
        %954 = vmatpush1.msra.mxu0 0.0
        %955 = vmatprep.subr.mxu0 0.0
        %956 = vmatpush1.msra.mxu0 0.0
        %957 = vmatprep.subr.mxu0 0.0
        %958 = vmatpush1.msra.mxu0 0.0
        %959 = vmatprep.subr.mxu0 0.0
        %960 = vmatpush1.msra.mxu0 0.0
        %961 = vmatprep.subr.mxu0 0.0
        %962 = vmatpush1.msra.mxu0 0.0
        %963 = vmatprep.subr.mxu0 0.0
        %964 = vmatpush1.msra.mxu0 0.0
        %965 = vmatprep.subr.mxu0 0.0
        %966 = vmatpush1.msra.mxu0 0.0
        %967 = vmatprep.subr.mxu0 0.0
        %968 = vmatpush1.msra.mxu0 0.0
        %969 = vmatprep.subr.mxu0 0.0
        %970 = vmatpush1.msra.mxu0 0.0
        %971 = vmatprep.subr.mxu0 0.0
        %972 = vmatpush1.msra.mxu0 0.0
        %973 = vmatprep.subr.mxu0 0.0
        %974 = vmatpush1.msra.mxu0 0.0
        %975 = vmatprep.subr.mxu0 0.0
        %976 = vmatpush1.msra.mxu0 0.0
        %977 = vmatprep.subr.mxu0 0.0
        %978 = vmatpush1.msra.mxu0 0.0
        %979 = vmatprep.mubr.f32.mxu0 0.0
        %980 = vmatmul.mubr.f32.gmra.mrb[0].mxu0 %v715
        %v981 = vpop.f32.mrb[0].mxu0
        %v982 = vadd.f32 0.0, %v981
        %v983 = vpop.f32.mrb[0].mxu0
        %v984 = vadd.f32 0.0, %v983
        %985 = vdwg.mxu0
        %986 = vmatprep.subr.mxu0 %v822
        %987 = vmatpush1.msra.mxu0 %v821
        %988 = vmatprep.subr.mxu0 %v828
        %989 = vmatpush1.msra.mxu0 %v827
        %990 = vmatprep.subr.mxu0 %v834
        %991 = vmatpush1.msra.mxu0 %v833
        %992 = vmatprep.subr.mxu0 %v840
        %993 = vmatpush1.msra.mxu0 %v839
        %994 = vmatprep.subr.mxu0 %v846
        %995 = vmatpush1.msra.mxu0 %v845
        %996 = vmatprep.subr.mxu0 %v852
        %997 = vmatpush1.msra.mxu0 %v851
        %998 = vmatprep.subr.mxu0 %v858
        %999 = vmatpush1.msra.mxu0 %v857
        %1000 = vmatprep.subr.mxu0 %v864
        %1001 = vmatpush1.msra.mxu0 %v863
        %1002 = vmatprep.subr.mxu0 %v870
        %1003 = vmatpush1.msra.mxu0 %v869
        %1004 = vmatprep.subr.mxu0 %v876
        %1005 = vmatpush1.msra.mxu0 %v875
        %1006 = vmatprep.subr.mxu0 %v882
        %1007 = vmatpush1.msra.mxu0 %v881
        %1008 = vmatprep.subr.mxu0 %v888
        %1009 = vmatpush1.msra.mxu0 %v887
        %1010 = vmatprep.subr.mxu0 %v894
        %1011 = vmatpush1.msra.mxu0 %v893
        %1012 = vmatprep.subr.mxu0 %v900
        %1013 = vmatpush1.msra.mxu0 %v899
        %1014 = vmatprep.subr.mxu0 %v906
        %1015 = vmatpush1.msra.mxu0 %v905
        %1016 = vmatprep.subr.mxu0 %v912
        %1017 = vmatpush1.msra.mxu0 %v911
        %1018 = vmatprep.subr.mxu0 0.0
        %1019 = vmatpush1.msra.mxu0 0.0
        %1020 = vmatprep.subr.mxu0 0.0
        %1021 = vmatpush1.msra.mxu0 0.0
        %1022 = vmatprep.subr.mxu0 0.0
        %1023 = vmatpush1.msra.mxu0 0.0
        %1024 = vmatprep.subr.mxu0 0.0
        %1025 = vmatpush1.msra.mxu0 0.0
        %1026 = vmatprep.subr.mxu0 0.0
        %1027 = vmatpush1.msra.mxu0 0.0
        %1028 = vmatprep.subr.mxu0 0.0
        %1029 = vmatpush1.msra.mxu0 0.0
        %1030 = vmatprep.subr.mxu0 0.0
        %1031 = vmatpush1.msra.mxu0 0.0
        %1032 = vmatprep.subr.mxu0 0.0
        %1033 = vmatpush1.msra.mxu0 0.0
        %1034 = vmatprep.subr.mxu0 0.0
        %1035 = vmatpush1.msra.mxu0 0.0
        %1036 = vmatprep.subr.mxu0 0.0
        %1037 = vmatpush1.msra.mxu0 0.0
        %1038 = vmatprep.subr.mxu0 0.0
        %1039 = vmatpush1.msra.mxu0 0.0
        %1040 = vmatprep.subr.mxu0 0.0
        %1041 = vmatpush1.msra.mxu0 0.0
        %1042 = vmatprep.subr.mxu0 0.0
        %1043 = vmatpush1.msra.mxu0 0.0
        %1044 = vmatprep.subr.mxu0 0.0
        %1045 = vmatpush1.msra.mxu0 0.0
        %1046 = vmatprep.subr.mxu0 0.0
        %1047 = vmatpush1.msra.mxu0 0.0
        %1048 = vmatprep.subr.mxu0 0.0
        %1049 = vmatpush1.msra.mxu0 0.0
        %1050 = vmatprep.mubr.f32.mxu0 0.0
        %1051 = vmatmul.mubr.f32.gmra.mrb[0].mxu0 %v715
        %v1052 = vpop.f32.mrb[0].mxu0
        %v1053 = vadd.f32 0.0, %v1052
        %v1054 = vpop.f32.mrb[0].mxu0
        %v1055 = vadd.f32 0.0, %v1054
        %1056 = vdwg.mxu0
        %1057 = vmatprep.subr.mxu0 %v824
        %1058 = vmatpush1.msra.mxu0 %v823
        %1059 = vmatprep.subr.mxu0 %v830
        %1060 = vmatpush1.msra.mxu0 %v829
        %1061 = vmatprep.subr.mxu0 %v836
        %1062 = vmatpush1.msra.mxu0 %v835
        %1063 = vmatprep.subr.mxu0 %v842
        %1064 = vmatpush1.msra.mxu0 %v841
        %1065 = vmatprep.subr.mxu0 %v848
        %1066 = vmatpush1.msra.mxu0 %v847
        %1067 = vmatprep.subr.mxu0 %v854
        %1068 = vmatpush1.msra.mxu0 %v853
        %1069 = vmatprep.subr.mxu0 %v860
        %1070 = vmatpush1.msra.mxu0 %v859
        %1071 = vmatprep.subr.mxu0 %v866
        %1072 = vmatpush1.msra.mxu0 %v865
        %1073 = vmatprep.subr.mxu0 %v872
        %1074 = vmatpush1.msra.mxu0 %v871
        %1075 = vmatprep.subr.mxu0 %v878
        %1076 = vmatpush1.msra.mxu0 %v877
        %1077 = vmatprep.subr.mxu0 %v884
        %1078 = vmatpush1.msra.mxu0 %v883
        %1079 = vmatprep.subr.mxu0 %v890
        %1080 = vmatpush1.msra.mxu0 %v889
        %1081 = vmatprep.subr.mxu0 %v896
        %1082 = vmatpush1.msra.mxu0 %v895
        %1083 = vmatprep.subr.mxu0 %v902
        %1084 = vmatpush1.msra.mxu0 %v901
        %1085 = vmatprep.subr.mxu0 %v908
        %1086 = vmatpush1.msra.mxu0 %v907
        %1087 = vmatprep.subr.mxu0 %v914
        %1088 = vmatpush1.msra.mxu0 %v913
        %1089 = vmatprep.subr.mxu0 0.0
        %1090 = vmatpush1.msra.mxu0 0.0
        %1091 = vmatprep.subr.mxu0 0.0
        %1092 = vmatpush1.msra.mxu0 0.0
        %1093 = vmatprep.subr.mxu0 0.0
        %1094 = vmatpush1.msra.mxu0 0.0
        %1095 = vmatprep.subr.mxu0 0.0
        %1096 = vmatpush1.msra.mxu0 0.0
        %1097 = vmatprep.subr.mxu0 0.0
        %1098 = vmatpush1.msra.mxu0 0.0
        %1099 = vmatprep.subr.mxu0 0.0
        %1100 = vmatpush1.msra.mxu0 0.0
        %1101 = vmatprep.subr.mxu0 0.0
        %1102 = vmatpush1.msra.mxu0 0.0
        %1103 = vmatprep.subr.mxu0 0.0
        %1104 = vmatpush1.msra.mxu0 0.0
        %1105 = vmatprep.subr.mxu0 0.0
        %1106 = vmatpush1.msra.mxu0 0.0
        %1107 = vmatprep.subr.mxu0 0.0
        %1108 = vmatpush1.msra.mxu0 0.0
        %1109 = vmatprep.subr.mxu0 0.0
        %1110 = vmatpush1.msra.mxu0 0.0
        %1111 = vmatprep.subr.mxu0 0.0
        %1112 = vmatpush1.msra.mxu0 0.0
        %1113 = vmatprep.subr.mxu0 0.0
        %1114 = vmatpush1.msra.mxu0 0.0
        %1115 = vmatprep.subr.mxu0 0.0
        %1116 = vmatpush1.msra.mxu0 0.0
        %1117 = vmatprep.subr.mxu0 0.0
        %1118 = vmatpush1.msra.mxu0 0.0
        %1119 = vmatprep.subr.mxu0 0.0
        %1120 = vmatpush1.msra.mxu0 0.0
        %1121 = vmatprep.mubr.f32.mxu0 0.0
        %1122 = vmatmul.mubr.f32.gmra.mrb[0].mxu0 %v715
        %v1123 = vpop.f32.mrb[0].mxu0
        %v1124 = vadd.f32 0.0, %v1123
        %v1125 = vpop.f32.mrb[0].mxu0
        %v1126 = vadd.f32 0.0, %v1125
        %1127 = vdwg.mxu0
        %1128 = vmatprep.subr.mxu0 %v724
        %1129 = vmatpush1.msra.mxu0 %v723
        %1130 = vmatprep.subr.mxu0 %v730
        %1131 = vmatpush1.msra.mxu0 %v729
        %1132 = vmatprep.subr.mxu0 %v736
        %1133 = vmatpush1.msra.mxu0 %v735
        %1134 = vmatprep.subr.mxu0 %v742
        %1135 = vmatpush1.msra.mxu0 %v741
        %1136 = vmatprep.subr.mxu0 %v748
        %1137 = vmatpush1.msra.mxu0 %v747
        %1138 = vmatprep.subr.mxu0 %v754
        %1139 = vmatpush1.msra.mxu0 %v753
        %1140 = vmatprep.subr.mxu0 %v760
        %1141 = vmatpush1.msra.mxu0 %v759
        %1142 = vmatprep.subr.mxu0 %v766
        %1143 = vmatpush1.msra.mxu0 %v765
        %1144 = vmatprep.subr.mxu0 %v772
        %1145 = vmatpush1.msra.mxu0 %v771
        %1146 = vmatprep.subr.mxu0 %v778
        %1147 = vmatpush1.msra.mxu0 %v777
        %1148 = vmatprep.subr.mxu0 %v784
        %1149 = vmatpush1.msra.mxu0 %v783
        %1150 = vmatprep.subr.mxu0 %v790
        %1151 = vmatpush1.msra.mxu0 %v789
        %1152 = vmatprep.subr.mxu0 %v796
        %1153 = vmatpush1.msra.mxu0 %v795
        %1154 = vmatprep.subr.mxu0 %v802
        %1155 = vmatpush1.msra.mxu0 %v801
        %1156 = vmatprep.subr.mxu0 %v808
        %1157 = vmatpush1.msra.mxu0 %v807
        %1158 = vmatprep.subr.mxu0 %v814
        %1159 = vmatpush1.msra.mxu0 %v813
        %1160 = vmatprep.subr.mxu0 0.0
        %1161 = vmatpush1.msra.mxu0 0.0
        %1162 = vmatprep.subr.mxu0 0.0
        %1163 = vmatpush1.msra.mxu0 0.0
        %1164 = vmatprep.subr.mxu0 0.0
        %1165 = vmatpush1.msra.mxu0 0.0
        %1166 = vmatprep.subr.mxu0 0.0
        %1167 = vmatpush1.msra.mxu0 0.0
        %1168 = vmatprep.subr.mxu0 0.0
        %1169 = vmatpush1.msra.mxu0 0.0
        %1170 = vmatprep.subr.mxu0 0.0
        %1171 = vmatpush1.msra.mxu0 0.0
        %1172 = vmatprep.subr.mxu0 0.0
        %1173 = vmatpush1.msra.mxu0 0.0
        %1174 = vmatprep.subr.mxu0 0.0
        %1175 = vmatpush1.msra.mxu0 0.0
        %1176 = vmatprep.subr.mxu0 0.0
        %1177 = vmatpush1.msra.mxu0 0.0
        %1178 = vmatprep.subr.mxu0 0.0
        %1179 = vmatpush1.msra.mxu0 0.0
        %1180 = vmatprep.subr.mxu0 0.0
        %1181 = vmatpush1.msra.mxu0 0.0
        %1182 = vmatprep.subr.mxu0 0.0
        %1183 = vmatpush1.msra.mxu0 0.0
        %1184 = vmatprep.subr.mxu0 0.0
        %1185 = vmatpush1.msra.mxu0 0.0
        %1186 = vmatprep.subr.mxu0 0.0
        %1187 = vmatpush1.msra.mxu0 0.0
        %1188 = vmatprep.subr.mxu0 0.0
        %1189 = vmatpush1.msra.mxu0 0.0
        %1190 = vmatprep.subr.mxu0 0.0
        %1191 = vmatpush1.msra.mxu0 0.0
        %1192 = vmatprep.mubr.f32.mxu0 0.0
        %1193 = vmatmul.mubr.f32.gmra.mrb[0].mxu0 %v714
        %v1194 = vpop.f32.mrb[0].mxu0
        %v1195 = vadd.f32 %v982, %v1194
        %v1196 = vpop.f32.mrb[0].mxu0
        %v1197 = vadd.f32 %v984, %v1196
        %1198 = vdwg.mxu0
        %1199 = vmatprep.subr.mxu0 %v726
        %1200 = vmatpush1.msra.mxu0 %v725
        %1201 = vmatprep.subr.mxu0 %v732
        %1202 = vmatpush1.msra.mxu0 %v731
        %1203 = vmatprep.subr.mxu0 %v738
        %1204 = vmatpush1.msra.mxu0 %v737
        %1205 = vmatprep.subr.mxu0 %v744
        %1206 = vmatpush1.msra.mxu0 %v743
        %1207 = vmatprep.subr.mxu0 %v750
        %1208 = vmatpush1.msra.mxu0 %v749
        %1209 = vmatprep.subr.mxu0 %v756
        %1210 = vmatpush1.msra.mxu0 %v755
        %1211 = vmatprep.subr.mxu0 %v762
        %1212 = vmatpush1.msra.mxu0 %v761
        %1213 = vmatprep.subr.mxu0 %v768
        %1214 = vmatpush1.msra.mxu0 %v767
        %1215 = vmatprep.subr.mxu0 %v774
        %1216 = vmatpush1.msra.mxu0 %v773
        %1217 = vmatprep.subr.mxu0 %v780
        %1218 = vmatpush1.msra.mxu0 %v779
        %1219 = vmatprep.subr.mxu0 %v786
        %1220 = vmatpush1.msra.mxu0 %v785
        %1221 = vmatprep.subr.mxu0 %v792
        %1222 = vmatpush1.msra.mxu0 %v791
        %1223 = vmatprep.subr.mxu0 %v798
        %1224 = vmatpush1.msra.mxu0 %v797
        %1225 = vmatprep.subr.mxu0 %v804
        %1226 = vmatpush1.msra.mxu0 %v803
        %1227 = vmatprep.subr.mxu0 %v810
        %1228 = vmatpush1.msra.mxu0 %v809
        %1229 = vmatprep.subr.mxu0 %v816
        %1230 = vmatpush1.msra.mxu0 %v815
        %1231 = vmatprep.subr.mxu0 0.0
        %1232 = vmatpush1.msra.mxu0 0.0
        %1233 = vmatprep.subr.mxu0 0.0
        %1234 = vmatpush1.msra.mxu0 0.0
        %1235 = vmatprep.subr.mxu0 0.0
        %1236 = vmatpush1.msra.mxu0 0.0
        %1237 = vmatprep.subr.mxu0 0.0
        %1238 = vmatpush1.msra.mxu0 0.0
        %1239 = vmatprep.subr.mxu0 0.0
        %1240 = vmatpush1.msra.mxu0 0.0
        %1241 = vmatprep.subr.mxu0 0.0
        %1242 = vmatpush1.msra.mxu0 0.0
        %1243 = vmatprep.subr.mxu0 0.0
        %1244 = vmatpush1.msra.mxu0 0.0
        %1245 = vmatprep.subr.mxu0 0.0
        %1246 = vmatpush1.msra.mxu0 0.0
        %1247 = vmatprep.subr.mxu0 0.0
        %1248 = vmatpush1.msra.mxu0 0.0
        %1249 = vmatprep.subr.mxu0 0.0
        %1250 = vmatpush1.msra.mxu0 0.0
        %1251 = vmatprep.subr.mxu0 0.0
        %1252 = vmatpush1.msra.mxu0 0.0
        %1253 = vmatprep.subr.mxu0 0.0
        %1254 = vmatpush1.msra.mxu0 0.0
        %1255 = vmatprep.subr.mxu0 0.0
        %1256 = vmatpush1.msra.mxu0 0.0
        %1257 = vmatprep.subr.mxu0 0.0
        %1258 = vmatpush1.msra.mxu0 0.0
        %1259 = vmatprep.subr.mxu0 0.0
        %1260 = vmatpush1.msra.mxu0 0.0
        %1261 = vmatprep.subr.mxu0 0.0
        %1262 = vmatpush1.msra.mxu0 0.0
        %1263 = vmatprep.mubr.f32.mxu0 0.0
        %1264 = vmatmul.mubr.f32.gmra.mrb[0].mxu0 %v714
        %v1265 = vpop.f32.mrb[0].mxu0
        %v1266 = vadd.f32 %v1053, %v1265
        %v1267 = vpop.f32.mrb[0].mxu0
        %v1268 = vadd.f32 %v1055, %v1267
        %1269 = vdwg.mxu0
        %1270 = vmatprep.subr.mxu0 %v728
        %1271 = vmatpush1.msra.mxu0 %v727
        %1272 = vmatprep.subr.mxu0 %v734
        %1273 = vmatpush1.msra.mxu0 %v733
        %1274 = vmatprep.subr.mxu0 %v740
        %1275 = vmatpush1.msra.mxu0 %v739
        %1276 = vmatprep.subr.mxu0 %v746
        %1277 = vmatpush1.msra.mxu0 %v745
        %1278 = vmatprep.subr.mxu0 %v752
        %1279 = vmatpush1.msra.mxu0 %v751
        %1280 = vmatprep.subr.mxu0 %v758
        %1281 = vmatpush1.msra.mxu0 %v757
        %1282 = vmatprep.subr.mxu0 %v764
        %1283 = vmatpush1.msra.mxu0 %v763
        %1284 = vmatprep.subr.mxu0 %v770
        %1285 = vmatpush1.msra.mxu0 %v769
        %1286 = vmatprep.subr.mxu0 %v776
        %1287 = vmatpush1.msra.mxu0 %v775
        %1288 = vmatprep.subr.mxu0 %v782
        %1289 = vmatpush1.msra.mxu0 %v781
        %1290 = vmatprep.subr.mxu0 %v788
        %1291 = vmatpush1.msra.mxu0 %v787
        %1292 = vmatprep.subr.mxu0 %v794
        %1293 = vmatpush1.msra.mxu0 %v793
        %1294 = vmatprep.subr.mxu0 %v800
        %1295 = vmatpush1.msra.mxu0 %v799
        %1296 = vmatprep.subr.mxu0 %v806
        %1297 = vmatpush1.msra.mxu0 %v805
        %1298 = vmatprep.subr.mxu0 %v812
        %1299 = vmatpush1.msra.mxu0 %v811
        %1300 = vmatprep.subr.mxu0 %v818
        %1301 = vmatpush1.msra.mxu0 %v817
        %1302 = vmatprep.subr.mxu0 0.0
        %1303 = vmatpush1.msra.mxu0 0.0
        %1304 = vmatprep.subr.mxu0 0.0
        %1305 = vmatpush1.msra.mxu0 0.0
        %1306 = vmatprep.subr.mxu0 0.0
        %1307 = vmatpush1.msra.mxu0 0.0
        %1308 = vmatprep.subr.mxu0 0.0
        %1309 = vmatpush1.msra.mxu0 0.0
        %1310 = vmatprep.subr.mxu0 0.0
        %1311 = vmatpush1.msra.mxu0 0.0
        %1312 = vmatprep.subr.mxu0 0.0
        %1313 = vmatpush1.msra.mxu0 0.0
        %1314 = vmatprep.subr.mxu0 0.0
        %1315 = vmatpush1.msra.mxu0 0.0
        %1316 = vmatprep.subr.mxu0 0.0
        %1317 = vmatpush1.msra.mxu0 0.0
        %1318 = vmatprep.subr.mxu0 0.0
        %1319 = vmatpush1.msra.mxu0 0.0
        %1320 = vmatprep.subr.mxu0 0.0
        %1321 = vmatpush1.msra.mxu0 0.0
        %1322 = vmatprep.subr.mxu0 0.0
        %1323 = vmatpush1.msra.mxu0 0.0
        %1324 = vmatprep.subr.mxu0 0.0
        %1325 = vmatpush1.msra.mxu0 0.0
        %1326 = vmatprep.subr.mxu0 0.0
        %1327 = vmatpush1.msra.mxu0 0.0
        %1328 = vmatprep.subr.mxu0 0.0
        %1329 = vmatpush1.msra.mxu0 0.0
        %1330 = vmatprep.subr.mxu0 0.0
        %1331 = vmatpush1.msra.mxu0 0.0
        %1332 = vmatprep.subr.mxu0 0.0
        %1333 = vmatpush1.msra.mxu0 0.0
        %1334 = vmatprep.mubr.f32.mxu0 0.0
        %1335 = vmatmul.mubr.f32.gmra.mrb[0].mxu0 %v714
        %v1336 = vpop.f32.mrb[0].mxu0
        %v1337 = vadd.f32 %v1124, %v1336
        %v1338 = vpop.f32.mrb[0].mxu0
        %v1339 = vadd.f32 %v1126, %v1338
        %1340 = vdwg.mxu0
        %1341 = vmatprep.subr.mxu0 0.0
        %1342 = vmatpush1.xpose.msra.mxu0 %v1266
        %1343 = vmatprep.subr.mxu0 0.0
        %1344 = vmatpush1.xpose.msra.mxu0 0.0
        %1345 = vmatprep.subr.mxu0 0.0
        %1346 = vmatpush1.xpose.msra.mxu0 0.0
        %1347 = vmatprep.subr.mxu0 0.0
        %1348 = vmatpush1.xpose.msra.mxu0 0.0
        %1349 = vmatprep.subr.mxu0 0.0
        %1350 = vmatpush1.xpose.msra.mxu0 0.0
        %1351 = vmatprep.subr.mxu0 0.0
        %1352 = vmatpush1.xpose.msra.mxu0 0.0
        %1353 = vmatprep.subr.mxu0 0.0
        %1354 = vmatpush1.xpose.msra.mxu0 0.0
        %1355 = vmatprep.subr.mxu0 0.0
        %1356 = vmatpush1.xpose.msra.mxu0 0.0
        %1357 = vmatprep.subr.mxu0 0.0
        %1358 = vmatpush1.xpose.msra.mxu0 0.0
        %1359 = vmatprep.subr.mxu0 0.0
        %1360 = vmatpush1.xpose.msra.mxu0 0.0
        %1361 = vmatprep.subr.mxu0 0.0
        %1362 = vmatpush1.xpose.msra.mxu0 0.0
        %1363 = vmatprep.subr.mxu0 0.0
        %1364 = vmatpush1.xpose.msra.mxu0 0.0
        %1365 = vmatprep.subr.mxu0 0.0
        %1366 = vmatpush1.xpose.msra.mxu0 0.0
        %1367 = vmatprep.subr.mxu0 0.0
        %1368 = vmatpush1.xpose.msra.mxu0 0.0
        %1369 = vmatprep.subr.mxu0 0.0
        %1370 = vmatpush1.xpose.msra.mxu0 0.0
        %1371 = vmatprep.subr.mxu0 0.0
        %1372 = vmatpush1.xpose.msra.mxu0 0.0
        %1373 = vmatprep.subr.mxu0 0.0
        %1374 = vmatpush1.xpose.msra.mxu0 0.0
        %1375 = vmatprep.subr.mxu0 0.0
        %1376 = vmatpush1.xpose.msra.mxu0 0.0
        %1377 = vmatprep.subr.mxu0 0.0
        %1378 = vmatpush1.xpose.msra.mxu0 0.0
        %1379 = vmatprep.subr.mxu0 0.0
        %1380 = vmatpush1.xpose.msra.mxu0 0.0
        %1381 = vmatprep.subr.mxu0 0.0
        %1382 = vmatpush1.xpose.msra.mxu0 0.0
        %1383 = vmatprep.subr.mxu0 0.0
        %1384 = vmatpush1.xpose.msra.mxu0 0.0
        %1385 = vmatprep.subr.mxu0 0.0
        %1386 = vmatpush1.xpose.msra.mxu0 0.0
        %1387 = vmatprep.subr.mxu0 0.0
        %1388 = vmatpush1.xpose.msra.mxu0 0.0
        %1389 = vmatprep.subr.mxu0 0.0
        %1390 = vmatpush1.xpose.msra.mxu0 0.0
        %1391 = vmatprep.subr.mxu0 0.0
        %1392 = vmatpush1.xpose.msra.mxu0 0.0
        %1393 = vmatprep.subr.mxu0 0.0
        %1394 = vmatpush1.xpose.msra.mxu0 0.0
        %1395 = vmatprep.subr.mxu0 0.0
        %1396 = vmatpush1.xpose.msra.mxu0 0.0
        %1397 = vmatprep.subr.mxu0 0.0
        %1398 = vmatpush1.xpose.msra.mxu0 0.0
        %1399 = vmatprep.subr.mxu0 0.0
        %1400 = vmatpush1.xpose.msra.mxu0 0.0
        %1401 = vmatprep.subr.mxu0 0.0
        %1402 = vmatpush1.xpose.msra.mxu0 0.0
        %1403 = vmatprep.subr.mxu0 0.0
        %1404 = vmatpush1.xpose.msra.mxu0 0.0
        %1405 = vmatprep.mubr.f32.mxu0 0.0
        %1406 = vmatmul.mubr.f32.gmra.mrb[0].mxu0 %v1195
        %v1407 = vpop.f32.mrb[0].mxu0
        %v1408 = vadd.f32 0.0, %v1407
        %v1409 = vpop.f32.mrb[0].mxu0
        %1410 = vdwg.mxu0
        %v1411 = vmul.f32 %v1408, 0.25
        %vm1412 = vcmp.gt.f32.partialorder %v718, 0.0
        %v1413 = vsel %vm1412, %v1411, -1e+09
        %vm1414 = vcmask 64512
        %v1415 = vsel %vm1414, %v1413, -inf
        %1416 = vmax.xlane.f32.xlu0 %v1415
        %v1417 = vpop.xlane.xlu0 %1416
        %v1418 = vsub.f32 %v1413, %v1417
        %v1419 = vmul.f32 %v1418, 1.442695
        %v1420 = vpow.pop %v1419
        %v1421 = vsel %vm1414, %v1420, 0.0
        %1422 = vadd.xlane.f32.xlu0 %v1421
        %v1423 = vpop.xlane.xlu0 %1422
        %v1424 = vrcp.pop %v1423
        %v1425 = vmul.f32 %v1420, %v1424
        %1426 = vst.msk [vmem:[%s685] sm:$0xff] %vm1414, %v1425
        %v1428 = vsel %vm1414, %v1425, 0
        %1430 = vmatprep.subr.mxu0 0.0
        %1431 = vmatpush1.msra.mxu0 %v1337
        %1432 = vmatprep.subr.mxu0 0.0
        %1433 = vmatpush1.msra.mxu0 0.0
        %1434 = vmatprep.subr.mxu0 0.0
        %1435 = vmatpush1.msra.mxu0 0.0
        %1436 = vmatprep.subr.mxu0 0.0
        %1437 = vmatpush1.msra.mxu0 0.0
        %1438 = vmatprep.subr.mxu0 0.0
        %1439 = vmatpush1.msra.mxu0 0.0
        %1440 = vmatprep.subr.mxu0 0.0
        %1441 = vmatpush1.msra.mxu0 0.0
        %1442 = vmatprep.subr.mxu0 0.0
        %1443 = vmatpush1.msra.mxu0 0.0
        %1444 = vmatprep.subr.mxu0 0.0
        %1445 = vmatpush1.msra.mxu0 0.0
        %1446 = vmatprep.subr.mxu0 0.0
        %1447 = vmatpush1.msra.mxu0 0.0
        %1448 = vmatprep.subr.mxu0 0.0
        %1449 = vmatpush1.msra.mxu0 0.0
        %1450 = vmatprep.subr.mxu0 0.0
        %1451 = vmatpush1.msra.mxu0 0.0
        %1452 = vmatprep.subr.mxu0 0.0
        %1453 = vmatpush1.msra.mxu0 0.0
        %1454 = vmatprep.subr.mxu0 0.0
        %1455 = vmatpush1.msra.mxu0 0.0
        %1456 = vmatprep.subr.mxu0 0.0
        %1457 = vmatpush1.msra.mxu0 0.0
        %1458 = vmatprep.subr.mxu0 0.0
        %1459 = vmatpush1.msra.mxu0 0.0
        %1460 = vmatprep.subr.mxu0 0.0
        %1461 = vmatpush1.msra.mxu0 0.0
        %1462 = vmatprep.subr.mxu0 0.0
        %1463 = vmatpush1.msra.mxu0 0.0
        %1464 = vmatprep.subr.mxu0 0.0
        %1465 = vmatpush1.msra.mxu0 0.0
        %1466 = vmatprep.subr.mxu0 0.0
        %1467 = vmatpush1.msra.mxu0 0.0
        %1468 = vmatprep.subr.mxu0 0.0
        %1469 = vmatpush1.msra.mxu0 0.0
        %1470 = vmatprep.subr.mxu0 0.0
        %1471 = vmatpush1.msra.mxu0 0.0
        %1472 = vmatprep.subr.mxu0 0.0
        %1473 = vmatpush1.msra.mxu0 0.0
        %1474 = vmatprep.subr.mxu0 0.0
        %1475 = vmatpush1.msra.mxu0 0.0
        %1476 = vmatprep.subr.mxu0 0.0
        %1477 = vmatpush1.msra.mxu0 0.0
        %1478 = vmatprep.subr.mxu0 0.0
        %1479 = vmatpush1.msra.mxu0 0.0
        %1480 = vmatprep.subr.mxu0 0.0
        %1481 = vmatpush1.msra.mxu0 0.0
        %1482 = vmatprep.subr.mxu0 0.0
        %1483 = vmatpush1.msra.mxu0 0.0
        %1484 = vmatprep.subr.mxu0 0.0
        %1485 = vmatpush1.msra.mxu0 0.0
        %1486 = vmatprep.subr.mxu0 0.0
        %1487 = vmatpush1.msra.mxu0 0.0
        %1488 = vmatprep.subr.mxu0 0.0
        %1489 = vmatpush1.msra.mxu0 0.0
        %1490 = vmatprep.subr.mxu0 0.0
        %1491 = vmatpush1.msra.mxu0 0.0
        %1492 = vmatprep.subr.mxu0 0.0
        %1493 = vmatpush1.msra.mxu0 0.0
        %1494 = vmatprep.mubr.f32.mxu0 0.0
        %1495 = vmatmul.mubr.f32.gmra.mrb[0].mxu0 %v1428
        %v1496 = vpop.f32.mrb[0].mxu0
        %v1497 = vadd.f32 0.0, %v1496
        %v1498 = vpop.f32.mrb[0].mxu0
        %1499 = vdwg.mxu0
        %v1500 = vld [vmem:[%s7] sm:$0xff]
        %v1501 = vld [vmem:[%s7 + $0x8] sm:$0xff]
        %v1502 = vld [vmem:[%s7 + $0x10] sm:$0xff]
        %v1503 = vld [vmem:[%s7 + $0x18] sm:$0xff]
        %v1504 = vld [vmem:[%s7 + $0x20] sm:$0xff]
        %v1505 = vld [vmem:[%s7 + $0x28] sm:$0xff]
        %v1506 = vld [vmem:[%s7 + $0x30] sm:$0xff]
        %v1507 = vld [vmem:[%s7 + $0x38] sm:$0xff]
        %v1508 = vld [vmem:[%s7 + $0x40] sm:$0xff]
        %v1509 = vld [vmem:[%s7 + $0x48] sm:$0xff]
        %v1510 = vld [vmem:[%s7 + $0x50] sm:$0xff]
        %v1511 = vld [vmem:[%s7 + $0x58] sm:$0xff]
        %v1512 = vld [vmem:[%s7 + $0x60] sm:$0xff]
        %v1513 = vld [vmem:[%s7 + $0x68] sm:$0xff]
        %v1514 = vld [vmem:[%s7 + $0x70] sm:$0xff]
        %v1515 = vld [vmem:[%s7 + $0x78] sm:$0xff]
        %1516 = vmatprep.subr.mxu0 0.0
        %1517 = vmatpush1.xpose.msra.mxu0 %v1268
        %1518 = vmatprep.subr.mxu0 0.0
        %1519 = vmatpush1.xpose.msra.mxu0 0.0
        %1520 = vmatprep.subr.mxu0 0.0
        %1521 = vmatpush1.xpose.msra.mxu0 0.0
        %1522 = vmatprep.subr.mxu0 0.0
        %1523 = vmatpush1.xpose.msra.mxu0 0.0
        %1524 = vmatprep.subr.mxu0 0.0
        %1525 = vmatpush1.xpose.msra.mxu0 0.0
        %1526 = vmatprep.subr.mxu0 0.0
        %1527 = vmatpush1.xpose.msra.mxu0 0.0
        %1528 = vmatprep.subr.mxu0 0.0
        %1529 = vmatpush1.xpose.msra.mxu0 0.0
        %1530 = vmatprep.subr.mxu0 0.0
        %1531 = vmatpush1.xpose.msra.mxu0 0.0
        %1532 = vmatprep.subr.mxu0 0.0
        %1533 = vmatpush1.xpose.msra.mxu0 0.0
        %1534 = vmatprep.subr.mxu0 0.0
        %1535 = vmatpush1.xpose.msra.mxu0 0.0
        %1536 = vmatprep.subr.mxu0 0.0
        %1537 = vmatpush1.xpose.msra.mxu0 0.0
        %1538 = vmatprep.subr.mxu0 0.0
        %1539 = vmatpush1.xpose.msra.mxu0 0.0
        %1540 = vmatprep.subr.mxu0 0.0
        %1541 = vmatpush1.xpose.msra.mxu0 0.0
        %1542 = vmatprep.subr.mxu0 0.0
        %1543 = vmatpush1.xpose.msra.mxu0 0.0
        %1544 = vmatprep.subr.mxu0 0.0
        %1545 = vmatpush1.xpose.msra.mxu0 0.0
        %1546 = vmatprep.subr.mxu0 0.0
        %1547 = vmatpush1.xpose.msra.mxu0 0.0
        %1548 = vmatprep.subr.mxu0 0.0
        %1549 = vmatpush1.xpose.msra.mxu0 0.0
        %1550 = vmatprep.subr.mxu0 0.0
        %1551 = vmatpush1.xpose.msra.mxu0 0.0
        %1552 = vmatprep.subr.mxu0 0.0
        %1553 = vmatpush1.xpose.msra.mxu0 0.0
        %1554 = vmatprep.subr.mxu0 0.0
        %1555 = vmatpush1.xpose.msra.mxu0 0.0
        %1556 = vmatprep.subr.mxu0 0.0
        %1557 = vmatpush1.xpose.msra.mxu0 0.0
        %1558 = vmatprep.subr.mxu0 0.0
        %1559 = vmatpush1.xpose.msra.mxu0 0.0
        %1560 = vmatprep.subr.mxu0 0.0
        %1561 = vmatpush1.xpose.msra.mxu0 0.0
        %1562 = vmatprep.subr.mxu0 0.0
        %1563 = vmatpush1.xpose.msra.mxu0 0.0
        %1564 = vmatprep.subr.mxu0 0.0
        %1565 = vmatpush1.xpose.msra.mxu0 0.0
        %1566 = vmatprep.subr.mxu0 0.0
        %1567 = vmatpush1.xpose.msra.mxu0 0.0
        %1568 = vmatprep.subr.mxu0 0.0
        %1569 = vmatpush1.xpose.msra.mxu0 0.0
        %1570 = vmatprep.subr.mxu0 0.0
        %1571 = vmatpush1.xpose.msra.mxu0 0.0
        %1572 = vmatprep.subr.mxu0 0.0
        %1573 = vmatpush1.xpose.msra.mxu0 0.0
        %1574 = vmatprep.subr.mxu0 0.0
        %1575 = vmatpush1.xpose.msra.mxu0 0.0
        %1576 = vmatprep.subr.mxu0 0.0
        %1577 = vmatpush1.xpose.msra.mxu0 0.0
        %1578 = vmatprep.subr.mxu0 0.0
        %1579 = vmatpush1.xpose.msra.mxu0 0.0
        %1580 = vmatprep.mubr.f32.mxu0 0.0
        %1581 = vmatmul.mubr.f32.gmra.mrb[0].mxu0 %v1197
        %v1582 = vpop.f32.mrb[0].mxu0
        %v1583 = vadd.f32 0.0, %v1582
        %v1584 = vpop.f32.mrb[0].mxu0
        %1585 = vdwg.mxu0
        %v1586 = vmul.f32 %v1583, 0.25
        %v1587 = vsel %vm1412, %v1586, -1e+09
        %v1588 = vsel %vm1414, %v1587, -inf
        %1589 = vmax.xlane.f32.xlu0 %v1588
        %v1590 = vpop.xlane.xlu0 %1589
        %v1591 = vsub.f32 %v1587, %v1590
        %v1592 = vmul.f32 %v1591, 1.442695
        %v1593 = vpow.pop %v1592
        %v1594 = vsel %vm1414, %v1593, 0.0
        %1595 = vadd.xlane.f32.xlu0 %v1594
        %v1596 = vpop.xlane.xlu0 %1595
        %v1597 = vrcp.pop %v1596
        %v1598 = vmul.f32 %v1593, %v1597
        %s1599 = scalar_lea.vmem %s685, 8 [#allocation4]
        %1600 = vst.msk [vmem:[%s1599] sm:$0xff] %vm1414, %v1598
        %v1602 = vsel %vm1414, %v1598, 0
        %1604 = vmatprep.subr.mxu0 0.0
        %1605 = vmatpush1.msra.mxu0 %v1339
        %1606 = vmatprep.subr.mxu0 0.0
        %1607 = vmatpush1.msra.mxu0 0.0
        %1608 = vmatprep.subr.mxu0 0.0
        %1609 = vmatpush1.msra.mxu0 0.0
        %1610 = vmatprep.subr.mxu0 0.0
        %1611 = vmatpush1.msra.mxu0 0.0
        %1612 = vmatprep.subr.mxu0 0.0
        %1613 = vmatpush1.msra.mxu0 0.0
        %1614 = vmatprep.subr.mxu0 0.0
        %1615 = vmatpush1.msra.mxu0 0.0
        %1616 = vmatprep.subr.mxu0 0.0
        %1617 = vmatpush1.msra.mxu0 0.0
        %1618 = vmatprep.subr.mxu0 0.0
        %1619 = vmatpush1.msra.mxu0 0.0
        %1620 = vmatprep.subr.mxu0 0.0
        %1621 = vmatpush1.msra.mxu0 0.0
        %1622 = vmatprep.subr.mxu0 0.0
        %1623 = vmatpush1.msra.mxu0 0.0
        %1624 = vmatprep.subr.mxu0 0.0
        %1625 = vmatpush1.msra.mxu0 0.0
        %1626 = vmatprep.subr.mxu0 0.0
        %1627 = vmatpush1.msra.mxu0 0.0
        %1628 = vmatprep.subr.mxu0 0.0
        %1629 = vmatpush1.msra.mxu0 0.0
        %1630 = vmatprep.subr.mxu0 0.0
        %1631 = vmatpush1.msra.mxu0 0.0
        %1632 = vmatprep.subr.mxu0 0.0
        %1633 = vmatpush1.msra.mxu0 0.0
        %1634 = vmatprep.subr.mxu0 0.0
        %1635 = vmatpush1.msra.mxu0 0.0
        %1636 = vmatprep.subr.mxu0 0.0
        %1637 = vmatpush1.msra.mxu0 0.0
        %1638 = vmatprep.subr.mxu0 0.0
        %1639 = vmatpush1.msra.mxu0 0.0
        %1640 = vmatprep.subr.mxu0 0.0
        %1641 = vmatpush1.msra.mxu0 0.0
        %1642 = vmatprep.subr.mxu0 0.0
        %1643 = vmatpush1.msra.mxu0 0.0
        %1644 = vmatprep.subr.mxu0 0.0
        %1645 = vmatpush1.msra.mxu0 0.0
        %1646 = vmatprep.subr.mxu0 0.0
        %1647 = vmatpush1.msra.mxu0 0.0
        %1648 = vmatprep.subr.mxu0 0.0
        %1649 = vmatpush1.msra.mxu0 0.0
        %1650 = vmatprep.subr.mxu0 0.0
        %1651 = vmatpush1.msra.mxu0 0.0
        %1652 = vmatprep.subr.mxu0 0.0
        %1653 = vmatpush1.msra.mxu0 0.0
        %1654 = vmatprep.subr.mxu0 0.0
        %1655 = vmatpush1.msra.mxu0 0.0
        %1656 = vmatprep.subr.mxu0 0.0
        %1657 = vmatpush1.msra.mxu0 0.0
        %1658 = vmatprep.subr.mxu0 0.0
        %1659 = vmatpush1.msra.mxu0 0.0
        %1660 = vmatprep.subr.mxu0 0.0
        %1661 = vmatpush1.msra.mxu0 0.0
        %1662 = vmatprep.subr.mxu0 0.0
        %1663 = vmatpush1.msra.mxu0 0.0
        %1664 = vmatprep.subr.mxu0 0.0
        %1665 = vmatpush1.msra.mxu0 0.0
        %1666 = vmatprep.subr.mxu0 0.0
        %1667 = vmatpush1.msra.mxu0 0.0
        %1668 = vmatprep.mubr.f32.mxu0 0.0
        %1669 = vmatmul.mubr.f32.gmra.mrb[0].mxu0 %v1602
        %v1670 = vpop.f32.mrb[0].mxu0
        %v1671 = vadd.f32 0.0, %v1670
        %v1672 = vpop.f32.mrb[0].mxu0
        %1673 = vdwg.mxu0
        %s1674 = scalar_lea.vmem %s7, 128
        %v1675 = vld [vmem:[%s1674] sm:$0xff]
        %v1676 = vld [vmem:[%s1674 + $0x8] sm:$0xff]
        %v1677 = vld [vmem:[%s1674 + $0x10] sm:$0xff]
        %v1678 = vld [vmem:[%s1674 + $0x18] sm:$0xff]
        %v1679 = vld [vmem:[%s1674 + $0x20] sm:$0xff]
        %v1680 = vld [vmem:[%s1674 + $0x28] sm:$0xff]
        %v1681 = vld [vmem:[%s1674 + $0x30] sm:$0xff]
        %v1682 = vld [vmem:[%s1674 + $0x38] sm:$0xff]
        %v1683 = vld [vmem:[%s1674 + $0x40] sm:$0xff]
        %v1684 = vld [vmem:[%s1674 + $0x48] sm:$0xff]
        %v1685 = vld [vmem:[%s1674 + $0x50] sm:$0xff]
        %v1686 = vld [vmem:[%s1674 + $0x58] sm:$0xff]
        %v1687 = vld [vmem:[%s1674 + $0x60] sm:$0xff]
        %v1688 = vld [vmem:[%s1674 + $0x68] sm:$0xff]
        %v1689 = vld [vmem:[%s1674 + $0x70] sm:$0xff]
        %v1690 = vld [vmem:[%s1674 + $0x78] sm:$0xff]
        %1691 = vmatprep.subr.mxu0 0.0
        %1692 = vmatpush1.msra.mxu0 %v1675
        %1693 = vmatprep.subr.mxu0 0.0
        %1694 = vmatpush1.msra.mxu0 %v1676
        %1695 = vmatprep.subr.mxu0 0.0
        %1696 = vmatpush1.msra.mxu0 %v1677
        %1697 = vmatprep.subr.mxu0 0.0
        %1698 = vmatpush1.msra.mxu0 %v1678
        %1699 = vmatprep.subr.mxu0 0.0
        %1700 = vmatpush1.msra.mxu0 %v1679
        %1701 = vmatprep.subr.mxu0 0.0
        %1702 = vmatpush1.msra.mxu0 %v1680
        %1703 = vmatprep.subr.mxu0 0.0
        %1704 = vmatpush1.msra.mxu0 %v1681
        %1705 = vmatprep.subr.mxu0 0.0
        %1706 = vmatpush1.msra.mxu0 %v1682
        %1707 = vmatprep.subr.mxu0 0.0
        %1708 = vmatpush1.msra.mxu0 %v1683
        %1709 = vmatprep.subr.mxu0 0.0
        %1710 = vmatpush1.msra.mxu0 %v1684
        %1711 = vmatprep.subr.mxu0 0.0
        %1712 = vmatpush1.msra.mxu0 %v1685
        %1713 = vmatprep.subr.mxu0 0.0
        %1714 = vmatpush1.msra.mxu0 %v1686
        %1715 = vmatprep.subr.mxu0 0.0
        %1716 = vmatpush1.msra.mxu0 %v1687
        %1717 = vmatprep.subr.mxu0 0.0
        %1718 = vmatpush1.msra.mxu0 %v1688
        %1719 = vmatprep.subr.mxu0 0.0
        %1720 = vmatpush1.msra.mxu0 %v1689
        %1721 = vmatprep.subr.mxu0 0.0
        %1722 = vmatpush1.msra.mxu0 %v1690
        %1723 = vmatprep.subr.mxu0 0.0
        %1724 = vmatpush1.msra.mxu0 0.0
        %1725 = vmatprep.subr.mxu0 0.0
        %1726 = vmatpush1.msra.mxu0 0.0
        %1727 = vmatprep.subr.mxu0 0.0
        %1728 = vmatpush1.msra.mxu0 0.0
        %1729 = vmatprep.subr.mxu0 0.0
        %1730 = vmatpush1.msra.mxu0 0.0
        %1731 = vmatprep.subr.mxu0 0.0
        %1732 = vmatpush1.msra.mxu0 0.0
        %1733 = vmatprep.subr.mxu0 0.0
        %1734 = vmatpush1.msra.mxu0 0.0
        %1735 = vmatprep.subr.mxu0 0.0
        %1736 = vmatpush1.msra.mxu0 0.0
        %1737 = vmatprep.subr.mxu0 0.0
        %1738 = vmatpush1.msra.mxu0 0.0
        %1739 = vmatprep.subr.mxu0 0.0
        %1740 = vmatpush1.msra.mxu0 0.0
        %1741 = vmatprep.subr.mxu0 0.0
        %1742 = vmatpush1.msra.mxu0 0.0
        %1743 = vmatprep.subr.mxu0 0.0
        %1744 = vmatpush1.msra.mxu0 0.0
        %1745 = vmatprep.subr.mxu0 0.0
        %1746 = vmatpush1.msra.mxu0 0.0
        %1747 = vmatprep.subr.mxu0 0.0
        %1748 = vmatpush1.msra.mxu0 0.0
        %1749 = vmatprep.subr.mxu0 0.0
        %1750 = vmatpush1.msra.mxu0 0.0
        %1751 = vmatprep.subr.mxu0 0.0
        %1752 = vmatpush1.msra.mxu0 0.0
        %1753 = vmatprep.subr.mxu0 0.0
        %1754 = vmatpush1.msra.mxu0 0.0
        %1755 = vmatprep.mubr.f32.mxu0 0.0
        %1756 = vmatmul.mubr.f32.gmra.mrb[0].mxu0 %v1671
        %v1757 = vpop.f32.mrb[0].mxu0
        %v1758 = vadd.f32 0.0, %v1757
        %v1759 = vpop.f32.mrb[0].mxu0
        %1760 = vdwg.mxu0
        %1761 = vmatprep.subr.mxu0 0.0
        %1762 = vmatpush1.msra.mxu0 %v1500
        %1763 = vmatprep.subr.mxu0 0.0
        %1764 = vmatpush1.msra.mxu0 %v1501
        %1765 = vmatprep.subr.mxu0 0.0
        %1766 = vmatpush1.msra.mxu0 %v1502
        %1767 = vmatprep.subr.mxu0 0.0
        %1768 = vmatpush1.msra.mxu0 %v1503
        %1769 = vmatprep.subr.mxu0 0.0
        %1770 = vmatpush1.msra.mxu0 %v1504
        %1771 = vmatprep.subr.mxu0 0.0
        %1772 = vmatpush1.msra.mxu0 %v1505
        %1773 = vmatprep.subr.mxu0 0.0
        %1774 = vmatpush1.msra.mxu0 %v1506
        %1775 = vmatprep.subr.mxu0 0.0
        %1776 = vmatpush1.msra.mxu0 %v1507
        %1777 = vmatprep.subr.mxu0 0.0
        %1778 = vmatpush1.msra.mxu0 %v1508
        %1779 = vmatprep.subr.mxu0 0.0
        %1780 = vmatpush1.msra.mxu0 %v1509
        %1781 = vmatprep.subr.mxu0 0.0
        %1782 = vmatpush1.msra.mxu0 %v1510
        %1783 = vmatprep.subr.mxu0 0.0
        %1784 = vmatpush1.msra.mxu0 %v1511
        %1785 = vmatprep.subr.mxu0 0.0
        %1786 = vmatpush1.msra.mxu0 %v1512
        %1787 = vmatprep.subr.mxu0 0.0
        %1788 = vmatpush1.msra.mxu0 %v1513
        %1789 = vmatprep.subr.mxu0 0.0
        %1790 = vmatpush1.msra.mxu0 %v1514
        %1791 = vmatprep.subr.mxu0 0.0
        %1792 = vmatpush1.msra.mxu0 %v1515
        %1793 = vmatprep.subr.mxu0 0.0
        %1794 = vmatpush1.msra.mxu0 0.0
        %1795 = vmatprep.subr.mxu0 0.0
        %1796 = vmatpush1.msra.mxu0 0.0
        %1797 = vmatprep.subr.mxu0 0.0
        %1798 = vmatpush1.msra.mxu0 0.0
        %1799 = vmatprep.subr.mxu0 0.0
        %1800 = vmatpush1.msra.mxu0 0.0
        %1801 = vmatprep.subr.mxu0 0.0
        %1802 = vmatpush1.msra.mxu0 0.0
        %1803 = vmatprep.subr.mxu0 0.0
        %1804 = vmatpush1.msra.mxu0 0.0
        %1805 = vmatprep.subr.mxu0 0.0
        %1806 = vmatpush1.msra.mxu0 0.0
        %1807 = vmatprep.subr.mxu0 0.0
        %1808 = vmatpush1.msra.mxu0 0.0
        %1809 = vmatprep.subr.mxu0 0.0
        %1810 = vmatpush1.msra.mxu0 0.0
        %1811 = vmatprep.subr.mxu0 0.0
        %1812 = vmatpush1.msra.mxu0 0.0
        %1813 = vmatprep.subr.mxu0 0.0
        %1814 = vmatpush1.msra.mxu0 0.0
        %1815 = vmatprep.subr.mxu0 0.0
        %1816 = vmatpush1.msra.mxu0 0.0
        %1817 = vmatprep.subr.mxu0 0.0
        %1818 = vmatpush1.msra.mxu0 0.0
        %1819 = vmatprep.subr.mxu0 0.0
        %1820 = vmatpush1.msra.mxu0 0.0
        %1821 = vmatprep.subr.mxu0 0.0
        %1822 = vmatpush1.msra.mxu0 0.0
        %1823 = vmatprep.subr.mxu0 0.0
        %1824 = vmatpush1.msra.mxu0 0.0
        %1825 = vmatprep.mubr.f32.mxu0 0.0
        %1826 = vmatmul.mubr.f32.gmra.mrb[0].mxu0 %v1497
        %v1827 = vpop.f32.mrb[0].mxu0
        %v1828 = vadd.f32 %v1758, %v1827
        %v1829 = vpop.f32.mrb[0].mxu0
        %1830 = vdwg.mxu0
        %v1831 = vadd.f32 %v1828, %v714
        %v1832 = vadd.f32 %v1831, %v715
        %1833 = vadd.xlane.f32.xlu0 %v1832
        %v1834 = vpop.xlane.xlu0 %1833
        %v1835 = vmul.f32 %v1834, 0.03125
        %v1836 = vsub.f32 %v1832, %v1835
        %v1838 = vlaneseq
        %v1839 = vshrl.u32 %v1838, 7
        %v1840 = vsub.s32 0, %v1839
        %v1841 = vrot.slane %v720, %v1840
        %v1843 = vmul.f32 %v1836, %v1841
        %v1844 = vmul.f32 %v1843, %v1843
        %1845 = vadd.xlane.f32.xlu0 %v1844
        %v1846 = vpop.xlane.xlu0 %1845
        %v1847 = vmul.f32 %v1846, 0.03125
        %v1848 = vadd.f32 %v1847, 1e-06
        %v1849 = vrsqrt.pop %v1848
        %v1850 = vmul.f32 %v1843, %v1849
        %v1851 = vlaneseq
        %v1852 = vshrl.u32 %v1851, 7
        %v1853 = vsub.s32 0, %v1852
        %v1854 = vrot.slane %v721, %v1853
        %v1855 = vmul.f32 %v1850, %v1854
        %v1856 = vlaneseq
        %v1857 = vshrl.u32 %v1856, 7
        %v1858 = vsub.s32 0, %v1857
        %v1859 = vrot.slane %v722, %v1858
        %v1860 = vadd.f32 %v1855, %v1859
        %v1861 = vld [vmem:[%s8] sm:$0xff]
        %v1862 = vld [vmem:[%s8 + $0x8] sm:$0xff]
        %v1863 = vld [vmem:[%s8 + $0x10] sm:$0xff]
        %v1864 = vld [vmem:[%s8 + $0x18] sm:$0xff]
        %v1865 = vld [vmem:[%s8 + $0x20] sm:$0xff]
        %v1866 = vld [vmem:[%s8 + $0x28] sm:$0xff]
        %v1867 = vld [vmem:[%s8 + $0x30] sm:$0xff]
        %v1868 = vld [vmem:[%s8 + $0x38] sm:$0xff]
        %v1869 = vld [vmem:[%s8 + $0x40] sm:$0xff]
        %v1870 = vld [vmem:[%s8 + $0x48] sm:$0xff]
        %v1871 = vld [vmem:[%s8 + $0x50] sm:$0xff]
        %v1872 = vld [vmem:[%s8 + $0x58] sm:$0xff]
        %v1873 = vld [vmem:[%s8 + $0x60] sm:$0xff]
        %v1874 = vld [vmem:[%s8 + $0x68] sm:$0xff]
        %v1875 = vld [vmem:[%s8 + $0x70] sm:$0xff]
        %v1876 = vld [vmem:[%s8 + $0x78] sm:$0xff]
        %v1877 = vld [vmem:[%s8 + $0x80] sm:$0xff]
        %v1878 = vld [vmem:[%s8 + $0x88] sm:$0xff]
        %v1879 = vld [vmem:[%s8 + $0x90] sm:$0xff]
        %v1880 = vld [vmem:[%s8 + $0x98] sm:$0xff]
        %v1881 = vld [vmem:[%s8 + $0xa0] sm:$0xff]
        %v1882 = vld [vmem:[%s8 + $0xa8] sm:$0xff]
        %v1883 = vld [vmem:[%s8 + $0xb0] sm:$0xff]
        %v1884 = vld [vmem:[%s8 + $0xb8] sm:$0xff]
        %v1885 = vld [vmem:[%s8 + $0xc0] sm:$0xff]
        %v1886 = vld [vmem:[%s8 + $0xc8] sm:$0xff]
        %v1887 = vld [vmem:[%s8 + $0xd0] sm:$0xff]
        %v1888 = vld [vmem:[%s8 + $0xd8] sm:$0xff]
        %v1889 = vld [vmem:[%s8 + $0xe0] sm:$0xff]
        %v1890 = vld [vmem:[%s8 + $0xe8] sm:$0xff]
        %v1891 = vld [vmem:[%s8 + $0xf0] sm:$0xff]
        %v1892 = vld [vmem:[%s8 + $0xf8] sm:$0xff]
        %1893 = vmatprep.subr.mxu0 %v1862
        %1894 = vmatpush1.msra.mxu0 %v1861
        %1895 = vmatprep.subr.mxu0 %v1864
        %1896 = vmatpush1.msra.mxu0 %v1863
        %1897 = vmatprep.subr.mxu0 %v1866
        %1898 = vmatpush1.msra.mxu0 %v1865
        %1899 = vmatprep.subr.mxu0 %v1868
        %1900 = vmatpush1.msra.mxu0 %v1867
        %1901 = vmatprep.subr.mxu0 %v1870
        %1902 = vmatpush1.msra.mxu0 %v1869
        %1903 = vmatprep.subr.mxu0 %v1872
        %1904 = vmatpush1.msra.mxu0 %v1871
        %1905 = vmatprep.subr.mxu0 %v1874
        %1906 = vmatpush1.msra.mxu0 %v1873
        %1907 = vmatprep.subr.mxu0 %v1876
        %1908 = vmatpush1.msra.mxu0 %v1875
        %1909 = vmatprep.subr.mxu0 %v1878
        %1910 = vmatpush1.msra.mxu0 %v1877
        %1911 = vmatprep.subr.mxu0 %v1880
        %1912 = vmatpush1.msra.mxu0 %v1879
        %1913 = vmatprep.subr.mxu0 %v1882
        %1914 = vmatpush1.msra.mxu0 %v1881
        %1915 = vmatprep.subr.mxu0 %v1884
        %1916 = vmatpush1.msra.mxu0 %v1883
        %1917 = vmatprep.subr.mxu0 %v1886
        %1918 = vmatpush1.msra.mxu0 %v1885
        %1919 = vmatprep.subr.mxu0 %v1888
        %1920 = vmatpush1.msra.mxu0 %v1887
        %1921 = vmatprep.subr.mxu0 %v1890
        %1922 = vmatpush1.msra.mxu0 %v1889
        %1923 = vmatprep.subr.mxu0 %v1892
        %1924 = vmatpush1.msra.mxu0 %v1891
        %1925 = vmatprep.subr.mxu0 0.0
        %1926 = vmatpush1.msra.mxu0 0.0
        %1927 = vmatprep.subr.mxu0 0.0
        %1928 = vmatpush1.msra.mxu0 0.0
        %1929 = vmatprep.subr.mxu0 0.0
        %1930 = vmatpush1.msra.mxu0 0.0
        %1931 = vmatprep.subr.mxu0 0.0
        %1932 = vmatpush1.msra.mxu0 0.0
        %1933 = vmatprep.subr.mxu0 0.0
        %1934 = vmatpush1.msra.mxu0 0.0
        %1935 = vmatprep.subr.mxu0 0.0
        %1936 = vmatpush1.msra.mxu0 0.0
        %1937 = vmatprep.subr.mxu0 0.0
        %1938 = vmatpush1.msra.mxu0 0.0
        %1939 = vmatprep.subr.mxu0 0.0
        %1940 = vmatpush1.msra.mxu0 0.0
        %1941 = vmatprep.subr.mxu0 0.0
        %1942 = vmatpush1.msra.mxu0 0.0
        %1943 = vmatprep.subr.mxu0 0.0
        %1944 = vmatpush1.msra.mxu0 0.0
        %1945 = vmatprep.subr.mxu0 0.0
        %1946 = vmatpush1.msra.mxu0 0.0
        %1947 = vmatprep.subr.mxu0 0.0
        %1948 = vmatpush1.msra.mxu0 0.0
        %1949 = vmatprep.subr.mxu0 0.0
        %1950 = vmatpush1.msra.mxu0 0.0
        %1951 = vmatprep.subr.mxu0 0.0
        %1952 = vmatpush1.msra.mxu0 0.0
        %1953 = vmatprep.subr.mxu0 0.0
        %1954 = vmatpush1.msra.mxu0 0.0
        %1955 = vmatprep.subr.mxu0 0.0
        %1956 = vmatpush1.msra.mxu0 0.0
        %1957 = vmatprep.mubr.f32.mxu0 0.0
        %1958 = vmatmul.mubr.f32.gmra.mrb[0].mxu0 %v1860
        %v1959 = vpop.f32.mrb[0].mxu0
        %v1960 = vadd.f32 0.0, %v1959
        %v1961 = vpop.f32.mrb[0].mxu0
        %v1962 = vadd.f32 0.0, %v1961
        %1963 = vdwg.mxu0
        %v1964 = vld [vmem:[%s9] sm:$0xff]
        %v1965 = vld [vmem:[%s9 + $0x8] sm:$0xff]
        %v1966 = vld [vmem:[%s9 + $0x10] sm:$0xff]
        %v1967 = vld [vmem:[%s9 + $0x18] sm:$0xff]
        %v1968 = vld [vmem:[%s9 + $0x20] sm:$0xff]
        %v1969 = vld [vmem:[%s9 + $0x28] sm:$0xff]
        %v1970 = vld [vmem:[%s9 + $0x30] sm:$0xff]
        %v1971 = vld [vmem:[%s9 + $0x38] sm:$0xff]
        %v1972 = vld [vmem:[%s9 + $0x40] sm:$0xff]
        %v1973 = vld [vmem:[%s9 + $0x48] sm:$0xff]
        %v1974 = vld [vmem:[%s9 + $0x50] sm:$0xff]
        %v1975 = vld [vmem:[%s9 + $0x58] sm:$0xff]
        %v1976 = vld [vmem:[%s9 + $0x60] sm:$0xff]
        %v1977 = vld [vmem:[%s9 + $0x68] sm:$0xff]
        %v1978 = vld [vmem:[%s9 + $0x70] sm:$0xff]
        %v1979 = vld [vmem:[%s9 + $0x78] sm:$0xff]
        %v1980 = vld [vmem:[%s9 + $0x80] sm:$0xff]
        %v1981 = vld [vmem:[%s9 + $0x88] sm:$0xff]
        %v1982 = vld [vmem:[%s9 + $0x90] sm:$0xff]
        %v1983 = vld [vmem:[%s9 + $0x98] sm:$0xff]
        %v1984 = vld [vmem:[%s9 + $0xa0] sm:$0xff]
        %v1985 = vld [vmem:[%s9 + $0xa8] sm:$0xff]
        %v1986 = vld [vmem:[%s9 + $0xb0] sm:$0xff]
        %v1987 = vld [vmem:[%s9 + $0xb8] sm:$0xff]
        %v1988 = vld [vmem:[%s9 + $0xc0] sm:$0xff]
        %v1989 = vld [vmem:[%s9 + $0xc8] sm:$0xff]
        %v1990 = vld [vmem:[%s9 + $0xd0] sm:$0xff]
        %v1991 = vld [vmem:[%s9 + $0xd8] sm:$0xff]
        %v1992 = vld [vmem:[%s9 + $0xe0] sm:$0xff]
        %v1993 = vld [vmem:[%s9 + $0xe8] sm:$0xff]
        %v1994 = vld [vmem:[%s9 + $0xf0] sm:$0xff]
        %v1995 = vld [vmem:[%s9 + $0xf8] sm:$0xff]
        %v1996 = vld [vmem:[%s9 + $0x100] sm:$0xff]
        %v1997 = vld [vmem:[%s9 + $0x108] sm:$0xff]
        %v1998 = vld [vmem:[%s9 + $0x110] sm:$0xff]
        %v1999 = vld [vmem:[%s9 + $0x118] sm:$0xff]
        %v2000 = vld [vmem:[%s9 + $0x120] sm:$0xff]
        %v2001 = vld [vmem:[%s9 + $0x128] sm:$0xff]
        %v2002 = vld [vmem:[%s9 + $0x130] sm:$0xff]
        %v2003 = vld [vmem:[%s9 + $0x138] sm:$0xff]
        %v2004 = vld [vmem:[%s9 + $0x140] sm:$0xff]
        %v2005 = vld [vmem:[%s9 + $0x148] sm:$0xff]
        %v2006 = vld [vmem:[%s9 + $0x150] sm:$0xff]
        %v2007 = vld [vmem:[%s9 + $0x158] sm:$0xff]
        %v2008 = vld [vmem:[%s9 + $0x160] sm:$0xff]
        %v2009 = vld [vmem:[%s9 + $0x168] sm:$0xff]
        %v2010 = vld [vmem:[%s9 + $0x170] sm:$0xff]
        %v2011 = vld [vmem:[%s9 + $0x178] sm:$0xff]
        %v2012 = vld [vmem:[%s9 + $0x180] sm:$0xff]
        %v2013 = vld [vmem:[%s9 + $0x188] sm:$0xff]
        %v2014 = vld [vmem:[%s9 + $0x190] sm:$0xff]
        %v2015 = vld [vmem:[%s9 + $0x198] sm:$0xff]
        %v2016 = vld [vmem:[%s9 + $0x1a0] sm:$0xff]
        %v2017 = vld [vmem:[%s9 + $0x1a8] sm:$0xff]
        %v2018 = vld [vmem:[%s9 + $0x1b0] sm:$0xff]
        %v2019 = vld [vmem:[%s9 + $0x1b8] sm:$0xff]
        %v2020 = vld [vmem:[%s9 + $0x1c0] sm:$0xff]
        %v2021 = vld [vmem:[%s9 + $0x1c8] sm:$0xff]
        %v2022 = vld [vmem:[%s9 + $0x1d0] sm:$0xff]
        %v2023 = vld [vmem:[%s9 + $0x1d8] sm:$0xff]
        %v2024 = vld [vmem:[%s9 + $0x1e0] sm:$0xff]
        %v2025 = vld [vmem:[%s9 + $0x1e8] sm:$0xff]
        %v2026 = vld [vmem:[%s9 + $0x1f0] sm:$0xff]
        %v2027 = vld [vmem:[%s9 + $0x1f8] sm:$0xff]
        %2028 = vmatprep.subr.mxu0 %v1965
        %2029 = vmatpush1.msra.mxu0 %v1964
        %2030 = vmatprep.subr.mxu0 %v1969
        %2031 = vmatpush1.msra.mxu0 %v1968
        %2032 = vmatprep.subr.mxu0 %v1973
        %2033 = vmatpush1.msra.mxu0 %v1972
        %2034 = vmatprep.subr.mxu0 %v1977
        %2035 = vmatpush1.msra.mxu0 %v1976
        %2036 = vmatprep.subr.mxu0 %v1981
        %2037 = vmatpush1.msra.mxu0 %v1980
        %2038 = vmatprep.subr.mxu0 %v1985
        %2039 = vmatpush1.msra.mxu0 %v1984
        %2040 = vmatprep.subr.mxu0 %v1989
        %2041 = vmatpush1.msra.mxu0 %v1988
        %2042 = vmatprep.subr.mxu0 %v1993
        %2043 = vmatpush1.msra.mxu0 %v1992
        %2044 = vmatprep.subr.mxu0 %v1997
        %2045 = vmatpush1.msra.mxu0 %v1996
        %2046 = vmatprep.subr.mxu0 %v2001
        %2047 = vmatpush1.msra.mxu0 %v2000
        %2048 = vmatprep.subr.mxu0 %v2005
        %2049 = vmatpush1.msra.mxu0 %v2004
        %2050 = vmatprep.subr.mxu0 %v2009
        %2051 = vmatpush1.msra.mxu0 %v2008
        %2052 = vmatprep.subr.mxu0 %v2013
        %2053 = vmatpush1.msra.mxu0 %v2012
        %2054 = vmatprep.subr.mxu0 %v2017
        %2055 = vmatpush1.msra.mxu0 %v2016
        %2056 = vmatprep.subr.mxu0 %v2021
        %2057 = vmatpush1.msra.mxu0 %v2020
        %2058 = vmatprep.subr.mxu0 %v2025
        %2059 = vmatpush1.msra.mxu0 %v2024
        %2060 = vmatprep.subr.mxu0 0.0
        %2061 = vmatpush1.msra.mxu0 0.0
        %2062 = vmatprep.subr.mxu0 0.0
        %2063 = vmatpush1.msra.mxu0 0.0
        %2064 = vmatprep.subr.mxu0 0.0
        %2065 = vmatpush1.msra.mxu0 0.0
        %2066 = vmatprep.subr.mxu0 0.0
        %2067 = vmatpush1.msra.mxu0 0.0
        %2068 = vmatprep.subr.mxu0 0.0
        %2069 = vmatpush1.msra.mxu0 0.0
        %2070 = vmatprep.subr.mxu0 0.0
        %2071 = vmatpush1.msra.mxu0 0.0
        %2072 = vmatprep.subr.mxu0 0.0
        %2073 = vmatpush1.msra.mxu0 0.0
        %2074 = vmatprep.subr.mxu0 0.0
        %2075 = vmatpush1.msra.mxu0 0.0
        %2076 = vmatprep.subr.mxu0 0.0
        %2077 = vmatpush1.msra.mxu0 0.0
        %2078 = vmatprep.subr.mxu0 0.0
        %2079 = vmatpush1.msra.mxu0 0.0
        %2080 = vmatprep.subr.mxu0 0.0
        %2081 = vmatpush1.msra.mxu0 0.0
        %2082 = vmatprep.subr.mxu0 0.0
        %2083 = vmatpush1.msra.mxu0 0.0
        %2084 = vmatprep.subr.mxu0 0.0
        %2085 = vmatpush1.msra.mxu0 0.0
        %2086 = vmatprep.subr.mxu0 0.0
        %2087 = vmatpush1.msra.mxu0 0.0
        %2088 = vmatprep.subr.mxu0 0.0
        %2089 = vmatpush1.msra.mxu0 0.0
        %2090 = vmatprep.subr.mxu0 0.0
        %2091 = vmatpush1.msra.mxu0 0.0
        %2092 = vmatprep.mubr.f32.mxu0 0.0
        %2093 = vmatmul.mubr.f32.gmra.mrb[0].mxu0 %v716
        %v2094 = vpop.f32.mrb[0].mxu0
        %v2095 = vadd.f32 0.0, %v2094
        %v2096 = vpop.f32.mrb[0].mxu0
        %v2097 = vadd.f32 0.0, %v2096
        %2098 = vmatprep.mubr.f32.mxu0 0.0
        %2099 = vmatmul.mubr.f32.gmra.mrb[0].mxu0 %v717
        %v2100 = vpop.f32.mrb[0].mxu0
        %v2101 = vadd.f32 0.0, %v2100
        %v2102 = vpop.f32.mrb[0].mxu0
        %v2103 = vadd.f32 0.0, %v2102
        %2104 = vdwg.mxu0
        %2105 = vmatprep.subr.mxu0 %v1967
        %2106 = vmatpush1.msra.mxu0 %v1966
        %2107 = vmatprep.subr.mxu0 %v1971
        %2108 = vmatpush1.msra.mxu0 %v1970
        %2109 = vmatprep.subr.mxu0 %v1975
        %2110 = vmatpush1.msra.mxu0 %v1974
        %2111 = vmatprep.subr.mxu0 %v1979
        %2112 = vmatpush1.msra.mxu0 %v1978
        %2113 = vmatprep.subr.mxu0 %v1983
        %2114 = vmatpush1.msra.mxu0 %v1982
        %2115 = vmatprep.subr.mxu0 %v1987
        %2116 = vmatpush1.msra.mxu0 %v1986
        %2117 = vmatprep.subr.mxu0 %v1991
        %2118 = vmatpush1.msra.mxu0 %v1990
        %2119 = vmatprep.subr.mxu0 %v1995
        %2120 = vmatpush1.msra.mxu0 %v1994
        %2121 = vmatprep.subr.mxu0 %v1999
        %2122 = vmatpush1.msra.mxu0 %v1998
        %2123 = vmatprep.subr.mxu0 %v2003
        %2124 = vmatpush1.msra.mxu0 %v2002
        %2125 = vmatprep.subr.mxu0 %v2007
        %2126 = vmatpush1.msra.mxu0 %v2006
        %2127 = vmatprep.subr.mxu0 %v2011
        %2128 = vmatpush1.msra.mxu0 %v2010
        %2129 = vmatprep.subr.mxu0 %v2015
        %2130 = vmatpush1.msra.mxu0 %v2014
        %2131 = vmatprep.subr.mxu0 %v2019
        %2132 = vmatpush1.msra.mxu0 %v2018
        %2133 = vmatprep.subr.mxu0 %v2023
        %2134 = vmatpush1.msra.mxu0 %v2022
        %2135 = vmatprep.subr.mxu0 %v2027
        %2136 = vmatpush1.msra.mxu0 %v2026
        %2137 = vmatprep.subr.mxu0 0.0
        %2138 = vmatpush1.msra.mxu0 0.0
        %2139 = vmatprep.subr.mxu0 0.0
        %2140 = vmatpush1.msra.mxu0 0.0
        %2141 = vmatprep.subr.mxu0 0.0
        %2142 = vmatpush1.msra.mxu0 0.0
        %2143 = vmatprep.subr.mxu0 0.0
        %2144 = vmatpush1.msra.mxu0 0.0
        %2145 = vmatprep.subr.mxu0 0.0
        %2146 = vmatpush1.msra.mxu0 0.0
        %2147 = vmatprep.subr.mxu0 0.0
        %2148 = vmatpush1.msra.mxu0 0.0
        %2149 = vmatprep.subr.mxu0 0.0
        %2150 = vmatpush1.msra.mxu0 0.0
        %2151 = vmatprep.subr.mxu0 0.0
        %2152 = vmatpush1.msra.mxu0 0.0
        %2153 = vmatprep.subr.mxu0 0.0
        %2154 = vmatpush1.msra.mxu0 0.0
        %2155 = vmatprep.subr.mxu0 0.0
        %2156 = vmatpush1.msra.mxu0 0.0
        %2157 = vmatprep.subr.mxu0 0.0
        %2158 = vmatpush1.msra.mxu0 0.0
        %2159 = vmatprep.subr.mxu0 0.0
        %2160 = vmatpush1.msra.mxu0 0.0
        %2161 = vmatprep.subr.mxu0 0.0
        %2162 = vmatpush1.msra.mxu0 0.0
        %2163 = vmatprep.subr.mxu0 0.0
        %2164 = vmatpush1.msra.mxu0 0.0
        %2165 = vmatprep.subr.mxu0 0.0
        %2166 = vmatpush1.msra.mxu0 0.0
        %2167 = vmatprep.subr.mxu0 0.0
        %2168 = vmatpush1.msra.mxu0 0.0
        %2169 = vmatprep.mubr.f32.mxu0 0.0
        %2170 = vmatmul.mubr.f32.gmra.mrb[0].mxu0 %v716
        %v2171 = vpop.f32.mrb[0].mxu0
        %v2172 = vadd.f32 0.0, %v2171
        %v2173 = vpop.f32.mrb[0].mxu0
        %v2174 = vadd.f32 0.0, %v2173
        %2175 = vmatprep.mubr.f32.mxu0 0.0
        %2176 = vmatmul.mubr.f32.gmra.mrb[0].mxu0 %v717
        %v2177 = vpop.f32.mrb[0].mxu0
        %v2178 = vadd.f32 0.0, %v2177
        %v2179 = vpop.f32.mrb[0].mxu0
        %v2180 = vadd.f32 0.0, %v2179
        %2181 = vdwg.mxu0
        %2182 = vmatprep.subr.mxu0 0.0
        %2183 = vmatpush1.xpose.msra.mxu0 %v2095
        %2184 = vmatprep.subr.mxu0 0.0
        %2185 = vmatpush1.xpose.msra.mxu0 %v2101
        %2186 = vmatprep.subr.mxu0 0.0
        %2187 = vmatpush1.xpose.msra.mxu0 0.0
        %2188 = vmatprep.subr.mxu0 0.0
        %2189 = vmatpush1.xpose.msra.mxu0 0.0
        %2190 = vmatprep.subr.mxu0 0.0
        %2191 = vmatpush1.xpose.msra.mxu0 0.0
        %2192 = vmatprep.subr.mxu0 0.0
        %2193 = vmatpush1.xpose.msra.mxu0 0.0
        %2194 = vmatprep.subr.mxu0 0.0
        %2195 = vmatpush1.xpose.msra.mxu0 0.0
        %2196 = vmatprep.subr.mxu0 0.0
        %2197 = vmatpush1.xpose.msra.mxu0 0.0
        %2198 = vmatprep.subr.mxu0 0.0
        %2199 = vmatpush1.xpose.msra.mxu0 0.0
        %2200 = vmatprep.subr.mxu0 0.0
        %2201 = vmatpush1.xpose.msra.mxu0 0.0
        %2202 = vmatprep.subr.mxu0 0.0
        %2203 = vmatpush1.xpose.msra.mxu0 0.0
        %2204 = vmatprep.subr.mxu0 0.0
        %2205 = vmatpush1.xpose.msra.mxu0 0.0
        %2206 = vmatprep.subr.mxu0 0.0
        %2207 = vmatpush1.xpose.msra.mxu0 0.0
        %2208 = vmatprep.subr.mxu0 0.0
        %2209 = vmatpush1.xpose.msra.mxu0 0.0
        %2210 = vmatprep.subr.mxu0 0.0
        %2211 = vmatpush1.xpose.msra.mxu0 0.0
        %2212 = vmatprep.subr.mxu0 0.0
        %2213 = vmatpush1.xpose.msra.mxu0 0.0
        %2214 = vmatprep.subr.mxu0 0.0
        %2215 = vmatpush1.xpose.msra.mxu0 0.0
        %2216 = vmatprep.subr.mxu0 0.0
        %2217 = vmatpush1.xpose.msra.mxu0 0.0
        %2218 = vmatprep.subr.mxu0 0.0
        %2219 = vmatpush1.xpose.msra.mxu0 0.0
        %2220 = vmatprep.subr.mxu0 0.0
        %2221 = vmatpush1.xpose.msra.mxu0 0.0
        %2222 = vmatprep.subr.mxu0 0.0
        %2223 = vmatpush1.xpose.msra.mxu0 0.0
        %2224 = vmatprep.subr.mxu0 0.0
        %2225 = vmatpush1.xpose.msra.mxu0 0.0
        %2226 = vmatprep.subr.mxu0 0.0
        %2227 = vmatpush1.xpose.msra.mxu0 0.0
        %2228 = vmatprep.subr.mxu0 0.0
        %2229 = vmatpush1.xpose.msra.mxu0 0.0
        %2230 = vmatprep.subr.mxu0 0.0
        %2231 = vmatpush1.xpose.msra.mxu0 0.0
        %2232 = vmatprep.subr.mxu0 0.0
        %2233 = vmatpush1.xpose.msra.mxu0 0.0
        %2234 = vmatprep.subr.mxu0 0.0
        %2235 = vmatpush1.xpose.msra.mxu0 0.0
        %2236 = vmatprep.subr.mxu0 0.0
        %2237 = vmatpush1.xpose.msra.mxu0 0.0
        %2238 = vmatprep.subr.mxu0 0.0
        %2239 = vmatpush1.xpose.msra.mxu0 0.0
        %2240 = vmatprep.subr.mxu0 0.0
        %2241 = vmatpush1.xpose.msra.mxu0 0.0
        %2242 = vmatprep.subr.mxu0 0.0
        %2243 = vmatpush1.xpose.msra.mxu0 0.0
        %2244 = vmatprep.subr.mxu0 0.0
        %2245 = vmatpush1.xpose.msra.mxu0 0.0
        %2246 = vmatprep.mubr.f32.mxu0 0.0
        %2247 = vmatmul.mubr.f32.gmra.mrb[0].mxu0 %v1960
        %v2248 = vpop.f32.mrb[0].mxu0
        %v2249 = vadd.f32 0.0, %v2248
        %v2250 = vpop.f32.mrb[0].mxu0
        %2251 = vdwg.mxu0
        %v2252 = vmul.f32 %v2249, 0.25
        %vm2253 = vcmp.gt.f32.partialorder %v719, 0.0
        %v2254 = vsel %vm2253, %v2252, -1e+09
        %vm2255 = vcmask 130048
        %v2256 = vsel %vm2255, %v2254, -inf
        %2257 = vmax.xlane.f32.xlu0 %v2256
        %v2258 = vpop.xlane.xlu0 %2257
        %v2259 = vsub.f32 %v2254, %v2258
        %v2260 = vmul.f32 %v2259, 1.442695
        %v2261 = vpow.pop %v2260
        %v2262 = vsel %vm2255, %v2261, 0.0
        %2263 = vadd.xlane.f32.xlu0 %v2262
        %v2264 = vpop.xlane.xlu0 %2263
        %v2265 = vrcp.pop %v2264
        %v2266 = vmul.f32 %v2261, %v2265
        %2267 = vst.msk [vmem:[%s692] sm:$0xff] %vm2255, %v2266
        %v2269 = vsel %vm2255, %v2266, 0
        %2271 = vmatprep.subr.mxu0 0.0
        %2272 = vmatpush1.msra.mxu0 %v2172
        %2273 = vmatprep.subr.mxu0 0.0
        %2274 = vmatpush1.msra.mxu0 %v2178
        %2275 = vmatprep.subr.mxu0 0.0
        %2276 = vmatpush1.msra.mxu0 0.0
        %2277 = vmatprep.subr.mxu0 0.0
        %2278 = vmatpush1.msra.mxu0 0.0
        %2279 = vmatprep.subr.mxu0 0.0
        %2280 = vmatpush1.msra.mxu0 0.0
        %2281 = vmatprep.subr.mxu0 0.0
        %2282 = vmatpush1.msra.mxu0 0.0
        %2283 = vmatprep.subr.mxu0 0.0
        %2284 = vmatpush1.msra.mxu0 0.0
        %2285 = vmatprep.subr.mxu0 0.0
        %2286 = vmatpush1.msra.mxu0 0.0
        %2287 = vmatprep.subr.mxu0 0.0
        %2288 = vmatpush1.msra.mxu0 0.0
        %2289 = vmatprep.subr.mxu0 0.0
        %2290 = vmatpush1.msra.mxu0 0.0
        %2291 = vmatprep.subr.mxu0 0.0
        %2292 = vmatpush1.msra.mxu0 0.0
        %2293 = vmatprep.subr.mxu0 0.0
        %2294 = vmatpush1.msra.mxu0 0.0
        %2295 = vmatprep.subr.mxu0 0.0
        %2296 = vmatpush1.msra.mxu0 0.0
        %2297 = vmatprep.subr.mxu0 0.0
        %2298 = vmatpush1.msra.mxu0 0.0
        %2299 = vmatprep.subr.mxu0 0.0
        %2300 = vmatpush1.msra.mxu0 0.0
        %2301 = vmatprep.subr.mxu0 0.0
        %2302 = vmatpush1.msra.mxu0 0.0
        %2303 = vmatprep.subr.mxu0 0.0
        %2304 = vmatpush1.msra.mxu0 0.0
        %2305 = vmatprep.subr.mxu0 0.0
        %2306 = vmatpush1.msra.mxu0 0.0
        %2307 = vmatprep.subr.mxu0 0.0
        %2308 = vmatpush1.msra.mxu0 0.0
        %2309 = vmatprep.subr.mxu0 0.0
        %2310 = vmatpush1.msra.mxu0 0.0
        %2311 = vmatprep.subr.mxu0 0.0
        %2312 = vmatpush1.msra.mxu0 0.0
        %2313 = vmatprep.subr.mxu0 0.0
        %2314 = vmatpush1.msra.mxu0 0.0
        %2315 = vmatprep.subr.mxu0 0.0
        %2316 = vmatpush1.msra.mxu0 0.0
        %2317 = vmatprep.subr.mxu0 0.0
        %2318 = vmatpush1.msra.mxu0 0.0
        %2319 = vmatprep.subr.mxu0 0.0
        %2320 = vmatpush1.msra.mxu0 0.0
        %2321 = vmatprep.subr.mxu0 0.0
        %2322 = vmatpush1.msra.mxu0 0.0
        %2323 = vmatprep.subr.mxu0 0.0
        %2324 = vmatpush1.msra.mxu0 0.0
        %2325 = vmatprep.subr.mxu0 0.0
        %2326 = vmatpush1.msra.mxu0 0.0
        %2327 = vmatprep.subr.mxu0 0.0
        %2328 = vmatpush1.msra.mxu0 0.0
        %2329 = vmatprep.subr.mxu0 0.0
        %2330 = vmatpush1.msra.mxu0 0.0
        %2331 = vmatprep.subr.mxu0 0.0
        %2332 = vmatpush1.msra.mxu0 0.0
        %2333 = vmatprep.subr.mxu0 0.0
        %2334 = vmatpush1.msra.mxu0 0.0
        %2335 = vmatprep.mubr.f32.mxu0 0.0
        %2336 = vmatmul.mubr.f32.gmra.mrb[0].mxu0 %v2269
        %v2337 = vpop.f32.mrb[0].mxu0
        %v2338 = vadd.f32 0.0, %v2337
        %v2339 = vpop.f32.mrb[0].mxu0
        %2340 = vdwg.mxu0
        %v2341 = vld [vmem:[%s10] sm:$0xff]
        %v2342 = vld [vmem:[%s10 + $0x8] sm:$0xff]
        %v2343 = vld [vmem:[%s10 + $0x10] sm:$0xff]
        %v2344 = vld [vmem:[%s10 + $0x18] sm:$0xff]
        %v2345 = vld [vmem:[%s10 + $0x20] sm:$0xff]
        %v2346 = vld [vmem:[%s10 + $0x28] sm:$0xff]
        %v2347 = vld [vmem:[%s10 + $0x30] sm:$0xff]
        %v2348 = vld [vmem:[%s10 + $0x38] sm:$0xff]
        %v2349 = vld [vmem:[%s10 + $0x40] sm:$0xff]
        %v2350 = vld [vmem:[%s10 + $0x48] sm:$0xff]
        %v2351 = vld [vmem:[%s10 + $0x50] sm:$0xff]
        %v2352 = vld [vmem:[%s10 + $0x58] sm:$0xff]
        %v2353 = vld [vmem:[%s10 + $0x60] sm:$0xff]
        %v2354 = vld [vmem:[%s10 + $0x68] sm:$0xff]
        %v2355 = vld [vmem:[%s10 + $0x70] sm:$0xff]
        %v2356 = vld [vmem:[%s10 + $0x78] sm:$0xff]
        %2357 = vmatprep.subr.mxu0 0.0
        %2358 = vmatpush1.xpose.msra.mxu0 %v2097
        %2359 = vmatprep.subr.mxu0 0.0
        %2360 = vmatpush1.xpose.msra.mxu0 %v2103
        %2361 = vmatprep.subr.mxu0 0.0
        %2362 = vmatpush1.xpose.msra.mxu0 0.0
        %2363 = vmatprep.subr.mxu0 0.0
        %2364 = vmatpush1.xpose.msra.mxu0 0.0
        %2365 = vmatprep.subr.mxu0 0.0
        %2366 = vmatpush1.xpose.msra.mxu0 0.0
        %2367 = vmatprep.subr.mxu0 0.0
        %2368 = vmatpush1.xpose.msra.mxu0 0.0
        %2369 = vmatprep.subr.mxu0 0.0
        %2370 = vmatpush1.xpose.msra.mxu0 0.0
        %2371 = vmatprep.subr.mxu0 0.0
        %2372 = vmatpush1.xpose.msra.mxu0 0.0
        %2373 = vmatprep.subr.mxu0 0.0
        %2374 = vmatpush1.xpose.msra.mxu0 0.0
        %2375 = vmatprep.subr.mxu0 0.0
        %2376 = vmatpush1.xpose.msra.mxu0 0.0
        %2377 = vmatprep.subr.mxu0 0.0
        %2378 = vmatpush1.xpose.msra.mxu0 0.0
        %2379 = vmatprep.subr.mxu0 0.0
        %2380 = vmatpush1.xpose.msra.mxu0 0.0
        %2381 = vmatprep.subr.mxu0 0.0
        %2382 = vmatpush1.xpose.msra.mxu0 0.0
        %2383 = vmatprep.subr.mxu0 0.0
        %2384 = vmatpush1.xpose.msra.mxu0 0.0
        %2385 = vmatprep.subr.mxu0 0.0
        %2386 = vmatpush1.xpose.msra.mxu0 0.0
        %2387 = vmatprep.subr.mxu0 0.0
        %2388 = vmatpush1.xpose.msra.mxu0 0.0
        %2389 = vmatprep.subr.mxu0 0.0
        %2390 = vmatpush1.xpose.msra.mxu0 0.0
        %2391 = vmatprep.subr.mxu0 0.0
        %2392 = vmatpush1.xpose.msra.mxu0 0.0
        %2393 = vmatprep.subr.mxu0 0.0
        %2394 = vmatpush1.xpose.msra.mxu0 0.0
        %2395 = vmatprep.subr.mxu0 0.0
        %2396 = vmatpush1.xpose.msra.mxu0 0.0
        %2397 = vmatprep.subr.mxu0 0.0
        %2398 = vmatpush1.xpose.msra.mxu0 0.0
        %2399 = vmatprep.subr.mxu0 0.0
        %2400 = vmatpush1.xpose.msra.mxu0 0.0
        %2401 = vmatprep.subr.mxu0 0.0
        %2402 = vmatpush1.xpose.msra.mxu0 0.0
        %2403 = vmatprep.subr.mxu0 0.0
        %2404 = vmatpush1.xpose.msra.mxu0 0.0
        %2405 = vmatprep.subr.mxu0 0.0
        %2406 = vmatpush1.xpose.msra.mxu0 0.0
        %2407 = vmatprep.subr.mxu0 0.0
        %2408 = vmatpush1.xpose.msra.mxu0 0.0
        %2409 = vmatprep.subr.mxu0 0.0
        %2410 = vmatpush1.xpose.msra.mxu0 0.0
        %2411 = vmatprep.subr.mxu0 0.0
        %2412 = vmatpush1.xpose.msra.mxu0 0.0
        %2413 = vmatprep.subr.mxu0 0.0
        %2414 = vmatpush1.xpose.msra.mxu0 0.0
        %2415 = vmatprep.subr.mxu0 0.0
        %2416 = vmatpush1.xpose.msra.mxu0 0.0
        %2417 = vmatprep.subr.mxu0 0.0
        %2418 = vmatpush1.xpose.msra.mxu0 0.0
        %2419 = vmatprep.subr.mxu0 0.0
        %2420 = vmatpush1.xpose.msra.mxu0 0.0
        %2421 = vmatprep.mubr.f32.mxu0 0.0
        %2422 = vmatmul.mubr.f32.gmra.mrb[0].mxu0 %v1962
        %v2423 = vpop.f32.mrb[0].mxu0
        %v2424 = vadd.f32 0.0, %v2423
        %v2425 = vpop.f32.mrb[0].mxu0
        %2426 = vdwg.mxu0
        %v2427 = vmul.f32 %v2424, 0.25
        %v2428 = vsel %vm2253, %v2427, -1e+09
        %v2429 = vsel %vm2255, %v2428, -inf
        %2430 = vmax.xlane.f32.xlu0 %v2429
        %v2431 = vpop.xlane.xlu0 %2430
        %v2432 = vsub.f32 %v2428, %v2431
        %v2433 = vmul.f32 %v2432, 1.442695
        %v2434 = vpow.pop %v2433
        %v2435 = vsel %vm2255, %v2434, 0.0
        %2436 = vadd.xlane.f32.xlu0 %v2435
        %v2437 = vpop.xlane.xlu0 %2436
        %v2438 = vrcp.pop %v2437
        %v2439 = vmul.f32 %v2434, %v2438
        %s2440 = scalar_lea.vmem %s692, 8 [#allocation6]
        %2441 = vst.msk [vmem:[%s2440] sm:$0xff] %vm2255, %v2439
        %v2443 = vsel %vm2255, %v2439, 0
        %2445 = vmatprep.subr.mxu0 0.0
        %2446 = vmatpush1.msra.mxu0 %v2174
        %2447 = vmatprep.subr.mxu0 0.0
        %2448 = vmatpush1.msra.mxu0 %v2180
        %2449 = vmatprep.subr.mxu0 0.0
        %2450 = vmatpush1.msra.mxu0 0.0
        %2451 = vmatprep.subr.mxu0 0.0
        %2452 = vmatpush1.msra.mxu0 0.0
        %2453 = vmatprep.subr.mxu0 0.0
        %2454 = vmatpush1.msra.mxu0 0.0
        %2455 = vmatprep.subr.mxu0 0.0
        %2456 = vmatpush1.msra.mxu0 0.0
        %2457 = vmatprep.subr.mxu0 0.0
        %2458 = vmatpush1.msra.mxu0 0.0
        %2459 = vmatprep.subr.mxu0 0.0
        %2460 = vmatpush1.msra.mxu0 0.0
        %2461 = vmatprep.subr.mxu0 0.0
        %2462 = vmatpush1.msra.mxu0 0.0
        %2463 = vmatprep.subr.mxu0 0.0
        %2464 = vmatpush1.msra.mxu0 0.0
        %2465 = vmatprep.subr.mxu0 0.0
        %2466 = vmatpush1.msra.mxu0 0.0
        %2467 = vmatprep.subr.mxu0 0.0
        %2468 = vmatpush1.msra.mxu0 0.0
        %2469 = vmatprep.subr.mxu0 0.0
        %2470 = vmatpush1.msra.mxu0 0.0
        %2471 = vmatprep.subr.mxu0 0.0
        %2472 = vmatpush1.msra.mxu0 0.0
        %2473 = vmatprep.subr.mxu0 0.0
        %2474 = vmatpush1.msra.mxu0 0.0
        %2475 = vmatprep.subr.mxu0 0.0
        %2476 = vmatpush1.msra.mxu0 0.0
        %2477 = vmatprep.subr.mxu0 0.0
        %2478 = vmatpush1.msra.mxu0 0.0
        %2479 = vmatprep.subr.mxu0 0.0
        %2480 = vmatpush1.msra.mxu0 0.0
        %2481 = vmatprep.subr.mxu0 0.0
        %2482 = vmatpush1.msra.mxu0 0.0
        %2483 = vmatprep.subr.mxu0 0.0
        %2484 = vmatpush1.msra.mxu0 0.0
        %2485 = vmatprep.subr.mxu0 0.0
        %2486 = vmatpush1.msra.mxu0 0.0
        %2487 = vmatprep.subr.mxu0 0.0
        %2488 = vmatpush1.msra.mxu0 0.0
        %2489 = vmatprep.subr.mxu0 0.0
        %2490 = vmatpush1.msra.mxu0 0.0
        %2491 = vmatprep.subr.mxu0 0.0
        %2492 = vmatpush1.msra.mxu0 0.0
        %2493 = vmatprep.subr.mxu0 0.0
        %2494 = vmatpush1.msra.mxu0 0.0
        %2495 = vmatprep.subr.mxu0 0.0
        %2496 = vmatpush1.msra.mxu0 0.0
        %2497 = vmatprep.subr.mxu0 0.0
        %2498 = vmatpush1.msra.mxu0 0.0
        %2499 = vmatprep.subr.mxu0 0.0
        %2500 = vmatpush1.msra.mxu0 0.0
        %2501 = vmatprep.subr.mxu0 0.0
        %2502 = vmatpush1.msra.mxu0 0.0
        %2503 = vmatprep.subr.mxu0 0.0
        %2504 = vmatpush1.msra.mxu0 0.0
        %2505 = vmatprep.subr.mxu0 0.0
        %2506 = vmatpush1.msra.mxu0 0.0
        %2507 = vmatprep.subr.mxu0 0.0
        %2508 = vmatpush1.msra.mxu0 0.0
        %2509 = vmatprep.mubr.f32.mxu0 0.0
        %2510 = vmatmul.mubr.f32.gmra.mrb[0].mxu0 %v2443
        %v2511 = vpop.f32.mrb[0].mxu0
        %v2512 = vadd.f32 0.0, %v2511
        %v2513 = vpop.f32.mrb[0].mxu0
        %2514 = vdwg.mxu0
        %s2515 = scalar_lea.vmem %s10, 128
        %v2516 = vld [vmem:[%s2515] sm:$0xff]
        %v2517 = vld [vmem:[%s2515 + $0x8] sm:$0xff]
        %v2518 = vld [vmem:[%s2515 + $0x10] sm:$0xff]
        %v2519 = vld [vmem:[%s2515 + $0x18] sm:$0xff]
        %v2520 = vld [vmem:[%s2515 + $0x20] sm:$0xff]
        %v2521 = vld [vmem:[%s2515 + $0x28] sm:$0xff]
        %v2522 = vld [vmem:[%s2515 + $0x30] sm:$0xff]
        %v2523 = vld [vmem:[%s2515 + $0x38] sm:$0xff]
        %v2524 = vld [vmem:[%s2515 + $0x40] sm:$0xff]
        %v2525 = vld [vmem:[%s2515 + $0x48] sm:$0xff]
        %v2526 = vld [vmem:[%s2515 + $0x50] sm:$0xff]
        %v2527 = vld [vmem:[%s2515 + $0x58] sm:$0xff]
        %v2528 = vld [vmem:[%s2515 + $0x60] sm:$0xff]
        %v2529 = vld [vmem:[%s2515 + $0x68] sm:$0xff]
        %v2530 = vld [vmem:[%s2515 + $0x70] sm:$0xff]
        %v2531 = vld [vmem:[%s2515 + $0x78] sm:$0xff]
        %2532 = vmatprep.subr.mxu0 0.0
        %2533 = vmatpush1.msra.mxu0 %v2516
        %2534 = vmatprep.subr.mxu0 0.0
        %2535 = vmatpush1.msra.mxu0 %v2517
        %2536 = vmatprep.subr.mxu0 0.0
        %2537 = vmatpush1.msra.mxu0 %v2518
        %2538 = vmatprep.subr.mxu0 0.0
        %2539 = vmatpush1.msra.mxu0 %v2519
        %2540 = vmatprep.subr.mxu0 0.0
        %2541 = vmatpush1.msra.mxu0 %v2520
        %2542 = vmatprep.subr.mxu0 0.0
        %2543 = vmatpush1.msra.mxu0 %v2521
        %2544 = vmatprep.subr.mxu0 0.0
        %2545 = vmatpush1.msra.mxu0 %v2522
        %2546 = vmatprep.subr.mxu0 0.0
        %2547 = vmatpush1.msra.mxu0 %v2523
        %2548 = vmatprep.subr.mxu0 0.0
        %2549 = vmatpush1.msra.mxu0 %v2524
        %2550 = vmatprep.subr.mxu0 0.0
        %2551 = vmatpush1.msra.mxu0 %v2525
        %2552 = vmatprep.subr.mxu0 0.0
        %2553 = vmatpush1.msra.mxu0 %v2526
        %2554 = vmatprep.subr.mxu0 0.0
        %2555 = vmatpush1.msra.mxu0 %v2527
        %2556 = vmatprep.subr.mxu0 0.0
        %2557 = vmatpush1.msra.mxu0 %v2528
        %2558 = vmatprep.subr.mxu0 0.0
        %2559 = vmatpush1.msra.mxu0 %v2529
        %2560 = vmatprep.subr.mxu0 0.0
        %2561 = vmatpush1.msra.mxu0 %v2530
        %2562 = vmatprep.subr.mxu0 0.0
        %2563 = vmatpush1.msra.mxu0 %v2531
        %2564 = vmatprep.subr.mxu0 0.0
        %2565 = vmatpush1.msra.mxu0 0.0
        %2566 = vmatprep.subr.mxu0 0.0
        %2567 = vmatpush1.msra.mxu0 0.0
        %2568 = vmatprep.subr.mxu0 0.0
        %2569 = vmatpush1.msra.mxu0 0.0
        %2570 = vmatprep.subr.mxu0 0.0
        %2571 = vmatpush1.msra.mxu0 0.0
        %2572 = vmatprep.subr.mxu0 0.0
        %2573 = vmatpush1.msra.mxu0 0.0
        %2574 = vmatprep.subr.mxu0 0.0
        %2575 = vmatpush1.msra.mxu0 0.0
        %2576 = vmatprep.subr.mxu0 0.0
        %2577 = vmatpush1.msra.mxu0 0.0
        %2578 = vmatprep.subr.mxu0 0.0
        %2579 = vmatpush1.msra.mxu0 0.0
        %2580 = vmatprep.subr.mxu0 0.0
        %2581 = vmatpush1.msra.mxu0 0.0
        %2582 = vmatprep.subr.mxu0 0.0
        %2583 = vmatpush1.msra.mxu0 0.0
        %2584 = vmatprep.subr.mxu0 0.0
        %2585 = vmatpush1.msra.mxu0 0.0
        %2586 = vmatprep.subr.mxu0 0.0
        %2587 = vmatpush1.msra.mxu0 0.0
        %2588 = vmatprep.subr.mxu0 0.0
        %2589 = vmatpush1.msra.mxu0 0.0
        %2590 = vmatprep.subr.mxu0 0.0
        %2591 = vmatpush1.msra.mxu0 0.0
        %2592 = vmatprep.subr.mxu0 0.0
        %2593 = vmatpush1.msra.mxu0 0.0
        %2594 = vmatprep.subr.mxu0 0.0
        %2595 = vmatpush1.msra.mxu0 0.0
        %2596 = vmatprep.mubr.f32.mxu0 0.0
        %2597 = vmatmul.mubr.f32.gmra.mrb[0].mxu0 %v2512
        %v2598 = vpop.f32.mrb[0].mxu0
        %v2599 = vadd.f32 0.0, %v2598
        %v2600 = vpop.f32.mrb[0].mxu0
        %2601 = vdwg.mxu0
        %2602 = vmatprep.subr.mxu0 0.0
        %2603 = vmatpush1.msra.mxu0 %v2341
        %2604 = vmatprep.subr.mxu0 0.0
        %2605 = vmatpush1.msra.mxu0 %v2342
        %2606 = vmatprep.subr.mxu0 0.0
        %2607 = vmatpush1.msra.mxu0 %v2343
        %2608 = vmatprep.subr.mxu0 0.0
        %2609 = vmatpush1.msra.mxu0 %v2344
        %2610 = vmatprep.subr.mxu0 0.0
        %2611 = vmatpush1.msra.mxu0 %v2345
        %2612 = vmatprep.subr.mxu0 0.0
        %2613 = vmatpush1.msra.mxu0 %v2346
        %2614 = vmatprep.subr.mxu0 0.0
        %2615 = vmatpush1.msra.mxu0 %v2347
        %2616 = vmatprep.subr.mxu0 0.0
        %2617 = vmatpush1.msra.mxu0 %v2348
        %2618 = vmatprep.subr.mxu0 0.0
        %2619 = vmatpush1.msra.mxu0 %v2349
        %2620 = vmatprep.subr.mxu0 0.0
        %2621 = vmatpush1.msra.mxu0 %v2350
        %2622 = vmatprep.subr.mxu0 0.0
        %2623 = vmatpush1.msra.mxu0 %v2351
        %2624 = vmatprep.subr.mxu0 0.0
        %2625 = vmatpush1.msra.mxu0 %v2352
        %2626 = vmatprep.subr.mxu0 0.0
        %2627 = vmatpush1.msra.mxu0 %v2353
        %2628 = vmatprep.subr.mxu0 0.0
        %2629 = vmatpush1.msra.mxu0 %v2354
        %2630 = vmatprep.subr.mxu0 0.0
        %2631 = vmatpush1.msra.mxu0 %v2355
        %2632 = vmatprep.subr.mxu0 0.0
        %2633 = vmatpush1.msra.mxu0 %v2356
        %2634 = vmatprep.subr.mxu0 0.0
        %2635 = vmatpush1.msra.mxu0 0.0
        %2636 = vmatprep.subr.mxu0 0.0
        %2637 = vmatpush1.msra.mxu0 0.0
        %2638 = vmatprep.subr.mxu0 0.0
        %2639 = vmatpush1.msra.mxu0 0.0
        %2640 = vmatprep.subr.mxu0 0.0
        %2641 = vmatpush1.msra.mxu0 0.0
        %2642 = vmatprep.subr.mxu0 0.0
        %2643 = vmatpush1.msra.mxu0 0.0
        %2644 = vmatprep.subr.mxu0 0.0
        %2645 = vmatpush1.msra.mxu0 0.0
        %2646 = vmatprep.subr.mxu0 0.0
        %2647 = vmatpush1.msra.mxu0 0.0
        %2648 = vmatprep.subr.mxu0 0.0
        %2649 = vmatpush1.msra.mxu0 0.0
        %2650 = vmatprep.subr.mxu0 0.0
        %2651 = vmatpush1.msra.mxu0 0.0
        %2652 = vmatprep.subr.mxu0 0.0
        %2653 = vmatpush1.msra.mxu0 0.0
        %2654 = vmatprep.subr.mxu0 0.0
        %2655 = vmatpush1.msra.mxu0 0.0
        %2656 = vmatprep.subr.mxu0 0.0
        %2657 = vmatpush1.msra.mxu0 0.0
        %2658 = vmatprep.subr.mxu0 0.0
        %2659 = vmatpush1.msra.mxu0 0.0
        %2660 = vmatprep.subr.mxu0 0.0
        %2661 = vmatpush1.msra.mxu0 0.0
        %2662 = vmatprep.subr.mxu0 0.0
        %2663 = vmatpush1.msra.mxu0 0.0
        %2664 = vmatprep.subr.mxu0 0.0
        %2665 = vmatpush1.msra.mxu0 0.0
        %2666 = vmatprep.mubr.f32.mxu0 0.0
        %2667 = vmatmul.mubr.f32.gmra.mrb[0].mxu0 %v2338
        %v2668 = vpop.f32.mrb[0].mxu0
        %v2669 = vadd.f32 %v2599, %v2668
        %v2670 = vpop.f32.mrb[0].mxu0
        %2671 = vdwg.mxu0
        %v2672 = vadd.f32 %v2669, %v1860
        %2673 = vadd.xlane.f32.xlu0 %v2672
        %v2674 = vpop.xlane.xlu0 %2673
        %v2675 = vmul.f32 %v2674, 0.03125
        %v2676 = vsub.f32 %v2672, %v2675
        %v2677 = vmul.f32 %v2676, %v1841
        %v2678 = vmul.f32 %v2677, %v2677
        %2679 = vadd.xlane.f32.xlu0 %v2678
        %v2680 = vpop.xlane.xlu0 %2679
        %v2681 = vmul.f32 %v2680, 0.03125
        %v2682 = vadd.f32 %v2681, 1e-06
        %v2683 = vrsqrt.pop %v2682
        %v2684 = vmul.f32 %v2677, %v2683
        %v2685 = vlaneseq
        %v2686 = vshrl.u32 %v2685, 7
        %v2687 = vsub.s32 1, %v2686
        %v2688 = vrot.slane %v721, %v2687
        %v2689 = vmul.f32 %v2684, %v2688
        %v2690 = vlaneseq
        %v2691 = vshrl.u32 %v2690, 7
        %v2692 = vsub.s32 1, %v2691
        %v2693 = vrot.slane %v722, %v2692
        %v2694 = vadd.f32 %v2689, %v2693
        %v2695 = vld [vmem:[%s11] sm:$0xff]
        %v2696 = vld [vmem:[%s11 + $0x8] sm:$0xff]
        %v2697 = vld [vmem:[%s11 + $0x10] sm:$0xff]
        %v2698 = vld [vmem:[%s11 + $0x18] sm:$0xff]
        %v2699 = vld [vmem:[%s11 + $0x20] sm:$0xff]
        %v2700 = vld [vmem:[%s11 + $0x28] sm:$0xff]
        %v2701 = vld [vmem:[%s11 + $0x30] sm:$0xff]
        %v2702 = vld [vmem:[%s11 + $0x38] sm:$0xff]
        %v2703 = vld [vmem:[%s11 + $0x40] sm:$0xff]
        %v2704 = vld [vmem:[%s11 + $0x48] sm:$0xff]
        %v2705 = vld [vmem:[%s11 + $0x50] sm:$0xff]
        %v2706 = vld [vmem:[%s11 + $0x58] sm:$0xff]
        %v2707 = vld [vmem:[%s11 + $0x60] sm:$0xff]
        %v2708 = vld [vmem:[%s11 + $0x68] sm:$0xff]
        %v2709 = vld [vmem:[%s11 + $0x70] sm:$0xff]
        %v2710 = vld [vmem:[%s11 + $0x78] sm:$0xff]
        %v2711 = vld [vmem:[%s12] sm:$0x1]
        %v2713 = vlaneseq
        %v2714 = vshrl.u32 %v2713, 7
        %v2715 = vsub.s32 0, %v2714
        %v2716 = vrot.slane %v2711, %v2715
        %2718 = vmatprep.subr.mxu0 0.0
        %2719 = vmatpush1.msra.mxu0 %v2695
        %2720 = vmatprep.subr.mxu0 0.0
        %2721 = vmatpush1.msra.mxu0 %v2696
        %2722 = vmatprep.subr.mxu0 0.0
        %2723 = vmatpush1.msra.mxu0 %v2697
        %2724 = vmatprep.subr.mxu0 0.0
        %2725 = vmatpush1.msra.mxu0 %v2698
        %2726 = vmatprep.subr.mxu0 0.0
        %2727 = vmatpush1.msra.mxu0 %v2699
        %2728 = vmatprep.subr.mxu0 0.0
        %2729 = vmatpush1.msra.mxu0 %v2700
        %2730 = vmatprep.subr.mxu0 0.0
        %2731 = vmatpush1.msra.mxu0 %v2701
        %2732 = vmatprep.subr.mxu0 0.0
        %2733 = vmatpush1.msra.mxu0 %v2702
        %2734 = vmatprep.subr.mxu0 0.0
        %2735 = vmatpush1.msra.mxu0 %v2703
        %2736 = vmatprep.subr.mxu0 0.0
        %2737 = vmatpush1.msra.mxu0 %v2704
        %2738 = vmatprep.subr.mxu0 0.0
        %2739 = vmatpush1.msra.mxu0 %v2705
        %2740 = vmatprep.subr.mxu0 0.0
        %2741 = vmatpush1.msra.mxu0 %v2706
        %2742 = vmatprep.subr.mxu0 0.0
        %2743 = vmatpush1.msra.mxu0 %v2707
        %2744 = vmatprep.subr.mxu0 0.0
        %2745 = vmatpush1.msra.mxu0 %v2708
        %2746 = vmatprep.subr.mxu0 0.0
        %2747 = vmatpush1.msra.mxu0 %v2709
        %2748 = vmatprep.subr.mxu0 0.0
        %2749 = vmatpush1.msra.mxu0 %v2710
        %2750 = vmatprep.subr.mxu0 0.0
        %2751 = vmatpush1.msra.mxu0 0.0
        %2752 = vmatprep.subr.mxu0 0.0
        %2753 = vmatpush1.msra.mxu0 0.0
        %2754 = vmatprep.subr.mxu0 0.0
        %2755 = vmatpush1.msra.mxu0 0.0
        %2756 = vmatprep.subr.mxu0 0.0
        %2757 = vmatpush1.msra.mxu0 0.0
        %2758 = vmatprep.subr.mxu0 0.0
        %2759 = vmatpush1.msra.mxu0 0.0
        %2760 = vmatprep.subr.mxu0 0.0
        %2761 = vmatpush1.msra.mxu0 0.0
        %2762 = vmatprep.subr.mxu0 0.0
        %2763 = vmatpush1.msra.mxu0 0.0
        %2764 = vmatprep.subr.mxu0 0.0
        %2765 = vmatpush1.msra.mxu0 0.0
        %2766 = vmatprep.subr.mxu0 0.0
        %2767 = vmatpush1.msra.mxu0 0.0
        %2768 = vmatprep.subr.mxu0 0.0
        %2769 = vmatpush1.msra.mxu0 0.0
        %2770 = vmatprep.subr.mxu0 0.0
        %2771 = vmatpush1.msra.mxu0 0.0
        %2772 = vmatprep.subr.mxu0 0.0
        %2773 = vmatpush1.msra.mxu0 0.0
        %2774 = vmatprep.subr.mxu0 0.0
        %2775 = vmatpush1.msra.mxu0 0.0
        %2776 = vmatprep.subr.mxu0 0.0
        %2777 = vmatpush1.msra.mxu0 0.0
        %2778 = vmatprep.subr.mxu0 0.0
        %2779 = vmatpush1.msra.mxu0 0.0
        %2780 = vmatprep.subr.mxu0 0.0
        %2781 = vmatpush1.msra.mxu0 0.0
        %2782 = vmatprep.mubr.f32.mxu0 0.0
        %2783 = vmatmul.mubr.f32.gmra.mrb[0].mxu0 %v2694
        %v2784 = vpop.f32.mrb[0].mxu0
        %v2785 = vadd.f32 %v2716, %v2784
        %v2786 = vpop.f32.mrb[0].mxu0
        %2787 = vdwg.mxu0
        %v2788 = vmax.f32 %v2785, 0.0
        %v2789 = vld [vmem:[%s13] sm:$0xff]
        %v2790 = vld [vmem:[%s13 + $0x8] sm:$0xff]
        %v2791 = vld [vmem:[%s13 + $0x10] sm:$0xff]
        %v2792 = vld [vmem:[%s13 + $0x18] sm:$0xff]
        %v2793 = vld [vmem:[%s13 + $0x20] sm:$0xff]
        %v2794 = vld [vmem:[%s13 + $0x28] sm:$0xff]
        %v2795 = vld [vmem:[%s13 + $0x30] sm:$0xff]
        %v2796 = vld [vmem:[%s13 + $0x38] sm:$0xff]
        %v2797 = vld [vmem:[%s13 + $0x40] sm:$0xff]
        %v2798 = vld [vmem:[%s13 + $0x48] sm:$0xff]
        %v2799 = vld [vmem:[%s13 + $0x50] sm:$0xff]
        %v2800 = vld [vmem:[%s13 + $0x58] sm:$0xff]
        %v2801 = vld [vmem:[%s13 + $0x60] sm:$0xff]
        %v2802 = vld [vmem:[%s13 + $0x68] sm:$0xff]
        %v2803 = vld [vmem:[%s13 + $0x70] sm:$0xff]
        %v2804 = vld [vmem:[%s13 + $0x78] sm:$0xff]
        %v2805 = vld [vmem:[%s14] sm:$0x1]
        %v2807 = vlaneseq
        %v2808 = vshrl.u32 %v2807, 7
        %v2809 = vsub.s32 0, %v2808
        %v2810 = vrot.slane %v2805, %v2809
        %2812 = vmatprep.subr.mxu0 0.0
        %2813 = vmatpush1.msra.mxu0 %v2789
        %2814 = vmatprep.subr.mxu0 0.0
        %2815 = vmatpush1.msra.mxu0 %v2790
        %2816 = vmatprep.subr.mxu0 0.0
        %2817 = vmatpush1.msra.mxu0 %v2791
        %2818 = vmatprep.subr.mxu0 0.0
        %2819 = vmatpush1.msra.mxu0 %v2792
        %2820 = vmatprep.subr.mxu0 0.0
        %2821 = vmatpush1.msra.mxu0 %v2793
        %2822 = vmatprep.subr.mxu0 0.0
        %2823 = vmatpush1.msra.mxu0 %v2794
        %2824 = vmatprep.subr.mxu0 0.0
        %2825 = vmatpush1.msra.mxu0 %v2795
        %2826 = vmatprep.subr.mxu0 0.0
        %2827 = vmatpush1.msra.mxu0 %v2796
        %2828 = vmatprep.subr.mxu0 0.0
        %2829 = vmatpush1.msra.mxu0 %v2797
        %2830 = vmatprep.subr.mxu0 0.0
        %2831 = vmatpush1.msra.mxu0 %v2798
        %2832 = vmatprep.subr.mxu0 0.0
        %2833 = vmatpush1.msra.mxu0 %v2799
        %2834 = vmatprep.subr.mxu0 0.0
        %2835 = vmatpush1.msra.mxu0 %v2800
        %2836 = vmatprep.subr.mxu0 0.0
        %2837 = vmatpush1.msra.mxu0 %v2801
        %2838 = vmatprep.subr.mxu0 0.0
        %2839 = vmatpush1.msra.mxu0 %v2802
        %2840 = vmatprep.subr.mxu0 0.0
        %2841 = vmatpush1.msra.mxu0 %v2803
        %2842 = vmatprep.subr.mxu0 0.0
        %2843 = vmatpush1.msra.mxu0 %v2804
        %2844 = vmatprep.subr.mxu0 0.0
        %2845 = vmatpush1.msra.mxu0 0.0
        %2846 = vmatprep.subr.mxu0 0.0
        %2847 = vmatpush1.msra.mxu0 0.0
        %2848 = vmatprep.subr.mxu0 0.0
        %2849 = vmatpush1.msra.mxu0 0.0
        %2850 = vmatprep.subr.mxu0 0.0
        %2851 = vmatpush1.msra.mxu0 0.0
        %2852 = vmatprep.subr.mxu0 0.0
        %2853 = vmatpush1.msra.mxu0 0.0
        %2854 = vmatprep.subr.mxu0 0.0
        %2855 = vmatpush1.msra.mxu0 0.0
        %2856 = vmatprep.subr.mxu0 0.0
        %2857 = vmatpush1.msra.mxu0 0.0
        %2858 = vmatprep.subr.mxu0 0.0
        %2859 = vmatpush1.msra.mxu0 0.0
        %2860 = vmatprep.subr.mxu0 0.0
        %2861 = vmatpush1.msra.mxu0 0.0
        %2862 = vmatprep.subr.mxu0 0.0
        %2863 = vmatpush1.msra.mxu0 0.0
        %2864 = vmatprep.subr.mxu0 0.0
        %2865 = vmatpush1.msra.mxu0 0.0
        %2866 = vmatprep.subr.mxu0 0.0
        %2867 = vmatpush1.msra.mxu0 0.0
        %2868 = vmatprep.subr.mxu0 0.0
        %2869 = vmatpush1.msra.mxu0 0.0
        %2870 = vmatprep.subr.mxu0 0.0
        %2871 = vmatpush1.msra.mxu0 0.0
        %2872 = vmatprep.subr.mxu0 0.0
        %2873 = vmatpush1.msra.mxu0 0.0
        %2874 = vmatprep.subr.mxu0 0.0
        %2875 = vmatpush1.msra.mxu0 0.0
        %2876 = vmatprep.mubr.f32.mxu0 0.0
        %2877 = vmatmul.mubr.f32.gmra.mrb[0].mxu0 %v2788
        %v2878 = vpop.f32.mrb[0].mxu0
        %v2879 = vadd.f32 %v2810, %v2878
        %v2880 = vpop.f32.mrb[0].mxu0
        %2881 = vdwg.mxu0
        %v2882 = vadd.f32 %v2879, %v2694
        %2883 = vadd.xlane.f32.xlu0 %v2882
        %v2884 = vpop.xlane.xlu0 %2883
        %v2885 = vmul.f32 %v2884, 0.03125
        %v2886 = vsub.f32 %v2882, %v2885
        %v2887 = vmul.f32 %v2886, %v1841
        %v2888 = vmul.f32 %v2887, %v2887
        %2889 = vadd.xlane.f32.xlu0 %v2888
        %v2890 = vpop.xlane.xlu0 %2889
        %v2891 = vmul.f32 %v2890, 0.03125
        %v2892 = vadd.f32 %v2891, 1e-06
        %v2893 = vrsqrt.pop %v2892
        %v2894 = vmul.f32 %v2887, %v2893
        %v2895 = vlaneseq
        %v2896 = vshrl.u32 %v2895, 7
        %v2897 = vsub.s32 2, %v2896
        %v2898 = vrot.slane %v721, %v2897
        %v2899 = vmul.f32 %v2894, %v2898
        %v2900 = vlaneseq
        %v2901 = vshrl.u32 %v2900, 7
        %v2902 = vsub.s32 2, %v2901
        %v2903 = vrot.slane %v722, %v2902
        %v2904 = vadd.f32 %v2899, %v2903
        %2905 = vst [vmem:[%s678] sm:$0xff] %v2904
        %s2906 = sand.u32 %s449, 1
        %s2907 = scalar_lea.sflag [#allocation3], %s2906
        %s2908 = sand.u32 %s449, 1
        %s2909 = smul.addr %s2908, 8
        %s2910 = scalar_lea.vmem [#allocation2], %s2909
        %s2911 = sand.u32 %s38, 1
        %s2912 = scalar_lea.sflag [#allocation5], %s2911
        %s2913 = sand.u32 %s475, 1
        %s2914 = smul.addr %s2913, 16
        %s2915 = scalar_lea.vmem [#allocation4], %s2914
        %s2916 = sand.u32 %s38, 1
        %s2917 = scalar_lea.sflag [#allocation5], %s2916
        %s2918 = sand.u32 %s501, 1
        %s2919 = smul.addr %s2918, 16
        %s2920 = scalar_lea.vmem [#allocation6], %s2919
        // Predicated region
        $region93: #{decoder_layer_forward.1} parent=91 // pred_check
          %p2921 = pneg %p459
        $region94: #{decoder_layer_forward.1} parent=91 // pred_check_branch
          %2923 = sbr.rel (%p2921) target = $region96
        $region95: #{decoder_layer_forward.1} parent=91 // pred_region
          %s2925 = ssub.s32 128, 128
          %2926 = vsyncadd %s2907, %s2925
          %s2927 = smul.addr %s38, 128
          %s2928 = scalar_lea.hbm %s18, %s2927
          %s2930 = sshll.u32 %s2910, 4
          %s2931 = int_to_ptr.vmem [resolvable:$true] %s2930
          %2933 = dma.vmem_to_hbm [thread:$0]  %s2931, 128, %s2928, %s2907
        $region96: #{decoder_layer_forward.1} parent=91 // pred_fallthru
          _
        // Predicated region
        $region97: #{decoder_layer_forward.1} parent=91 // pred_check
          %p2934 = pneg %p485
        $region98: #{decoder_layer_forward.1} parent=91 // pred_check_branch
          %2936 = sbr.rel (%p2934) target = $region100
        $region99: #{decoder_layer_forward.1} parent=91 // pred_region
          %s2938 = ssub.s32 256, 256
          %2939 = vsyncadd %s2912, %s2938
          %s2940 = smul.addr %s38, 2
          %s2941 = smul.addr %s2940, 128
          %s2942 = scalar_lea.hbm %s19, %s2941
          %s2943 = sshll.u32 %s2915, 4
          %s2944 = int_to_ptr.vmem [resolvable:$true] %s2943
          %2949 = dma.vmem_to_hbm [thread:$0]  %s2944, 256, %s2942, %s2912, 128, 128, 8
        $region100: #{decoder_layer_forward.1} parent=91 // pred_fallthru
          _
        // Predicated region
        $region101: #{decoder_layer_forward.1} parent=91 // pred_check
          %p2950 = pneg %p511
        $region102: #{decoder_layer_forward.1} parent=91 // pred_check_branch
          %2952 = sbr.rel (%p2950) target = $region104
        $region103: #{decoder_layer_forward.1} parent=91 // pred_region
          %s2954 = ssub.s32 256, 256
          %2955 = vsyncadd %s2917, %s2954
          %s2956 = smul.addr %s38, 2
          %s2957 = smul.addr %s2956, 128
          %s2958 = scalar_lea.hbm %s20, %s2957
          %s2959 = sshll.u32 %s2920, 4
          %s2960 = int_to_ptr.vmem [resolvable:$true] %s2959
          %2965 = dma.vmem_to_hbm [thread:$0]  %s2960, 256, %s2958, %s2917, 128, 128, 8
        $region104: #{decoder_layer_forward.1} parent=91 // pred_fallthru
          _
      $region92: #{decoder_layer_forward.1} parent=5 // pred_fallthru
        _
      %p2966 = scmp.le.s32.totalorder 2, %s33
      // Predicated region
      $region105: #{decoder_layer_forward.1} parent=5 // pred_check
        %p2967 = pneg %p2966
      $region106: #{decoder_layer_forward.1} parent=5 // pred_check_branch
        %2969 = sbr.rel (%p2967) target = $region108
      $region107: #{decoder_layer_forward.1} parent=5 // pred_region
        %s2970 = ssub.s32 %s33, 2
        // Predicated region
        $region109: #{decoder_layer_forward.1} parent=107 // pred_check
          %p2971 = pneg %p465
        $region110: #{decoder_layer_forward.1} parent=107 // pred_check_branch
          %2973 = sbr.rel (%p2971) target = $region112
        $region111: #{decoder_layer_forward.1} parent=107 // pred_region
          %s2974 = sand.u32 %s450, 1
          %s2975 = scalar_lea.sflag [#allocation3], %s2974
          %s2976 = sand.u32 %s450, 1
          %s2977 = smul.addr %s2976, 8
          %s2978 = scalar_lea.vmem [#allocation2], %s2977
          %2979 = dma.done %s2975, 128
        $region112: #{decoder_layer_forward.1} parent=107 // pred_fallthru
          _
        // Predicated region
        $region113: #{decoder_layer_forward.1} parent=107 // pred_check
          %p2980 = pneg %p491
        $region114: #{decoder_layer_forward.1} parent=107 // pred_check_branch
          %2982 = sbr.rel (%p2980) target = $region116
        $region115: #{decoder_layer_forward.1} parent=107 // pred_region
          %s2983 = sand.u32 %s39, 1
          %s2984 = scalar_lea.sflag [#allocation5], %s2983
          %s2985 = sand.u32 %s476, 1
          %s2986 = smul.addr %s2985, 16
          %s2987 = scalar_lea.vmem [#allocation4], %s2986
          %2988 = dma.done %s2984, 256
        $region116: #{decoder_layer_forward.1} parent=107 // pred_fallthru
          _
        // Predicated region
        $region117: #{decoder_layer_forward.1} parent=107 // pred_check
          %p2989 = pneg %p517
        $region118: #{decoder_layer_forward.1} parent=107 // pred_check_branch
          %2991 = sbr.rel (%p2989) target = $region120
        $region119: #{decoder_layer_forward.1} parent=107 // pred_region
          %s2992 = sand.u32 %s39, 1
          %s2993 = scalar_lea.sflag [#allocation5], %s2992
          %s2994 = sand.u32 %s502, 1
          %s2995 = smul.addr %s2994, 16
          %s2996 = scalar_lea.vmem [#allocation6], %s2995
          %2997 = dma.done %s2993, 256
        $region120: #{decoder_layer_forward.1} parent=107 // pred_fallthru
          _
      $region108: #{decoder_layer_forward.1} parent=5 // pred_fallthru
        _
    $region6: #{decoder_layer_forward.1} parent=1 // loop_footer
      %s37 = sadd.s32 1, %s33
    $region7: #{decoder_layer_forward.1} parent=1 // loop_footer_branch
      %32 = sbr.rel target = $region3
    $region8: #{decoder_layer_forward.1} parent=1 // loop_exit
      _
    %2998 = vsyncpa [#allocation3], 1
    %s2999 = scalar_lea.sflag [#allocation3], 1
    %3000 = vsyncpa %s2999, 1
    %3001 = vsyncpa [#allocation5], 1
    %s3002 = scalar_lea.sflag [#allocation5], 1
    %3003 = vsyncpa %s3002, 1

</llo_original>
